<compile_context>
chip_gen: v5e
topology: v5e:2x2
jax: 0.10.0
libtpu: 0.0.40
codegen_flags: <defaults>
</compile_context>

<pallas_src>
import jax
import jax.numpy as jnp
from jax import lax
from jax.experimental import pallas as pl
from jax.experimental.pallas import tpu as pltpu


# ---------------------------------------------------------------------------
# Parameter init (deterministic, mirrors PyTorch default inits)
# ---------------------------------------------------------------------------
def _uniform(key, shape, bound):
    return jax.random.uniform(key, shape, jnp.float32, -bound, bound)


def init_params(key, vocab_size, embedding_dim, hidden_dim, output_dim):
    ks = jax.random.split(key, 18)
    H = hidden_dim
    bound = 1.0 / (H ** 0.5)

    def lstm_dir(k, in_dim):
        k1, k2, k3, k4 = jax.random.split(k, 4)
        w_ih = _uniform(k1, (4 * H, in_dim), bound)
        w_hh = _uniform(k2, (4 * H, H), bound)
        b = _uniform(k3, (4 * H,), bound) + _uniform(k4, (4 * H,), bound)
        return w_ih, w_hh, b

    p = {}
    p['emb'] = jax.random.normal(ks[0], (vocab_size, embedding_dim), jnp.float32)
    p['w_ih_f0'], p['w_hh_f0'], p['b_f0'] = lstm_dir(ks[1], embedding_dim)
    p['w_ih_b0'], p['w_hh_b0'], p['b_b0'] = lstm_dir(ks[2], embedding_dim)
    p['w_ih_f1'], p['w_hh_f1'], p['b_f1'] = lstm_dir(ks[3], 2 * H)
    p['w_ih_b1'], p['w_hh_b1'], p['b_b1'] = lstm_dir(ks[4], 2 * H)
    fc_bound = 1.0 / ((2 * H) ** 0.5)
    p['w_fc'] = _uniform(ks[5], (output_dim, 2 * H), fc_bound)
    p['b_fc'] = _uniform(ks[6], (output_dim,), fc_bound)
    return p


# ---------------------------------------------------------------------------
# Helpers
# ---------------------------------------------------------------------------
def _vmem_cap_bytes():
    """Physical VMEM of the current generation (conservative fallback = v7x)."""
    try:
        info = pltpu.get_tpu_info()
        cap = getattr(info, 'vmem_capacity_bytes', None)
        if cap:
            return int(cap)
    except Exception:
        pass
    return 64 * 1024 * 1024


def _num_chunks(T, target_timesteps, max_chunks=8):
    """Smallest divisor-count of T whose chunk length <= target (else 1)."""
    for n in range(1, min(T, max_chunks) + 1):
        if T % n == 0 and (T // n) <= target_timesteps:
            return n
    return 1


# ---------------------------------------------------------------------------
# Wrapper + kernel
# ---------------------------------------------------------------------------
def rnn_text_classification_forward(tokens, params, *, batch_tiles=1,
                                     max_chunk_timesteps=128):
    """tokens: (B, T) int32 indices.  Returns (B, output_dim) float32 logits.

    batch_tiles: grid points along the batch axis.  Keep 1 on v5e/v6e (single
    TensorCore, one big tile amortizes MXU latency); set 2 on v7x when B >= 16
    so the "parallel" axis shards across its two TensorCores.
    """
    B, T = tokens.shape
    E = params['emb'].shape[1]
    H = params['w_hh_f0'].shape[1]
    out_dim = params['w_fc'].shape[0]
    G4 = 4 * H

    # ---- batch tiling: pad batch so each per-timestep row block is 8-aligned
    nbt = max(1, int(batch_tiles))
    bt = -(-B // nbt)
    bt = -(-bt // 8) * 8                      # round up to sublane multiple
    Bp = nbt * bt

    # ---- T-chunking of the layer-0 input projection (emb DMA / MXU overlap)
    n_chunks = _num_chunks(T, max(1, int(max_chunk_timesteps)))
    chunk_rows = (T // n_chunks) * bt

    tok_p = jnp.zeros((Bp, T), tokens.dtype).at[:B].set(tokens)
    # Gather the embedding directly into per-tile TIME-MAJOR layout, bf16:
    # (nbt, bt, T) -> (nbt, T, bt) -> gather -> (nbt, T, bt, E) -> (nbt, T*bt, E)
    tok_tiles = tok_p.reshape(nbt, bt, T).transpose(0, 2, 1)
    emb2d = jnp.take(params['emb'].astype(jnp.bfloat16), tok_tiles,
                     axis=0).reshape(nbt, T * bt, E)

    f32 = lambda a: jnp.asarray(a, jnp.float32)
    bf16 = lambda a: jnp.asarray(a, jnp.bfloat16)

    def reorder_gates(w):
        # PyTorch gate row order (i, f, g, o) -> (i, f, o, g) so sigmoid gates
        # are contiguous (3H) and tanh gate is a single trailing H slice.
        return jnp.concatenate([w[:H], w[H:2 * H], w[3 * H:], w[2 * H:3 * H]],
                               axis=0)

    # Fused fwd|bwd input-projection weights (bf16), biases separate (f32).
    w_in0 = bf16(jnp.concatenate([reorder_gates(f32(params['w_ih_f0'])).T,
                                  reorder_gates(f32(params['w_ih_b0'])).T],
                                 axis=1))                                # (E, 8H)
    b0 = jnp.concatenate([reorder_gates(f32(params['b_f0'])),
                          reorder_gates(f32(params['b_b0']))])[None, :]  # (1, 8H)

    wf1t = reorder_gates(f32(params['w_ih_f1'])).T                       # (2H, 4H)
    wb1t = reorder_gates(f32(params['w_ih_b1'])).T
    w1_top = bf16(jnp.concatenate([wf1t[:H], wb1t[:H]], axis=1))         # (H, 8H)
    w1_bot = bf16(jnp.concatenate([wf1t[H:], wb1t[H:]], axis=1))         # (H, 8H)
    b1 = jnp.concatenate([reorder_gates(f32(params['b_f1'])),
                          reorder_gates(f32(params['b_b1']))])[None, :]

    # Block-diagonal recurrent weights: one MXU push covers both directions.
    def block_diag_whh(w_f, w_b):
        blk = jnp.zeros((2 * H, 8 * H), jnp.float32)
        blk = blk.at[:H, :4 * H].set(reorder_gates(f32(w_f)).T)
        blk = blk.at[H:, 4 * H:].set(reorder_gates(f32(w_b)).T)
        return blk

    whh0_blk = block_diag_whh(params['w_hh_f0'], params['w_hh_b0'])      # (2H, 8H)
    whh1_blk = block_diag_whh(params['w_hh_f1'], params['w_hh_b1'])

    wfc_t = f32(params['w_fc']).T                                        # (2H, out)
    wfc_f, wfc_b = wfc_t[:H], wfc_t[H:]
    bfc = f32(params['b_fc'])[None, :]

    unroll = min(T, 8) if T <= 16 else 4

    def kernel(emb_ref, w_in0_ref, b0_ref, whh0_ref,
               w1t_ref, w1b_ref, b1_ref, whh1_ref,
               wfc_f_ref, wfc_b_ref, bfc_ref,
               out_ref,
               proj_ref, of0_ref, ob0_ref):
        kchunk = pl.program_id(1)

        # ---- per chunk: layer-0 input projection for this chunk.
        # BlockSpec pipelining streams chunk k+1's emb while this matmul runs.
        r0 = pl.multiple_of(kchunk * chunk_rows, 8)
        proj_ref[pl.ds(r0, chunk_rows), :] = (
            jnp.dot(emb_ref[...], w_in0_ref[...],
                    preferred_element_type=jnp.float32) + b0_ref[...])

        @pl.when(kchunk == pl.num_programs(1) - 1)
        def _():
            # Hoist weight loads out of the recurrent loops.
            Whh0 = whh0_ref[...]
            Whh1 = whh1_ref[...]

            def lstm_dir_step(g, c):
                # gate column order: [i, f, o | g]
                s = jax.nn.sigmoid(g[:, 0:3 * H])        # one wide EUP issue
                i = s[:, 0:H]
                f = s[:, H:2 * H]
                o = s[:, 2 * H:3 * H]
                gg = jnp.tanh(g[:, 3 * H:4 * H])
                c_new = f * c + i * gg
                return o * jnp.tanh(c_new), c_new

            zero_h2 = jnp.zeros((bt, 2 * H), jnp.float32)
            zero_h = jnp.zeros((bt, H), jnp.float32)

            # ---- layer 0 recurrence (fwd+bwd fused per step) ----
            def l0_body(t, carry):
                h_fb, c_f, c_b = carry
                rf = pl.multiple_of(t * bt, 8)
                rb = pl.multiple_of((T - 1 - t) * bt, 8)
                g_rec = jnp.dot(h_fb, Whh0, preferred_element_type=jnp.float32)
                gf = proj_ref[pl.ds(rf, bt), 0:G4] + g_rec[:, 0:G4]
                gb = proj_ref[pl.ds(rb, bt), G4:2 * G4] + g_rec[:, G4:2 * G4]
                h_f, c_f = lstm_dir_step(gf, c_f)
                h_b, c_b = lstm_dir_step(gb, c_b)
                of0_ref[pl.ds(rf, bt), :] = h_f
                ob0_ref[pl.ds(rb, bt), :] = h_b
                return jnp.concatenate([h_f, h_b], axis=1), c_f, c_b

            lax.fori_loop(0, T, l0_body, (zero_h2, zero_h, zero_h),
                          unroll=unroll)

            # TODO(synk): inter-layer dropout (p=0.3) is training-mode only.

            # ---- layer 1: batched input projection (bf16 operands, f32 acc)
            proj_ref[...] = (
                jnp.dot(of0_ref[...].astype(jnp.bfloat16), w1t_ref[...],
                        preferred_element_type=jnp.float32)
                + jnp.dot(ob0_ref[...].astype(jnp.bfloat16), w1b_ref[...],
                          preferred_element_type=jnp.float32)
                + b1_ref[...])

            # ---- layer 1 recurrence ----
            def l1_body(t, carry):
                h_fb, c_f, c_b = carry
                rf = pl.multiple_of(t * bt, 8)
                rb = pl.multiple_of((T - 1 - t) * bt, 8)
                g_rec = jnp.dot(h_fb, Whh1, preferred_element_type=jnp.float32)
                gf = proj_ref[pl.ds(rf, bt), 0:G4] + g_rec[:, 0:G4]
                gb = proj_ref[pl.ds(rb, bt), G4:2 * G4] + g_rec[:, G4:2 * G4]
                h_f, c_f = lstm_dir_step(gf, c_f)
                h_b, c_b = lstm_dir_step(gb, c_b)
                return jnp.concatenate([h_f, h_b], axis=1), c_f, c_b

            h_fb1, _, _ = lax.fori_loop(0, T, l1_body,
                                        (zero_h2, zero_h, zero_h),
                                        unroll=unroll)

            # hidden[-2] = layer-1 fwd final, hidden[-1] = layer-1 bwd final.
            # Split FC weights avoid the concat; Dropout is identity in eval.
            out_ref[...] = (
                jnp.dot(h_fb1[:, :H], wfc_f_ref[...],
                        preferred_element_type=jnp.float32)
                + jnp.dot(h_fb1[:, H:], wfc_b_ref[...],
                          preferred_element_type=jnp.float32)
                + bfc_ref[...])

    def full(shape):
        nd = len(shape)
        return pl.BlockSpec(shape, lambda i, k, nd=nd: (0,) * nd)

    in_specs = [
        pl.BlockSpec((None, chunk_rows, E), lambda i, k: (i, k, 0)),  # emb (bf16, chunked)
        full((E, 8 * H)), full((1, 8 * H)),                           # w_in0, b0
        full((2 * H, 8 * H)),                                         # whh0 block-diag
        full((H, 8 * H)), full((H, 8 * H)), full((1, 8 * H)),         # w1_top, w1_bot, b1
        full((2 * H, 8 * H)),                                         # whh1 block-diag
        full((H, out_dim)), full((H, out_dim)), full((1, out_dim)),   # fc
    ]
    out_spec = pl.BlockSpec((None, bt, out_dim), lambda i, k: (i, 0, 0))

    # ---- generation-aware scoped-VMEM budget (never exceed physical cap) ----
    est = (2 * chunk_rows * E * 2                      # emb chunk, double-buffered, bf16
           + T * bt * 8 * H * 4                        # proj scratch f32
           + 2 * T * bt * H * 4                        # of0/ob0 scratch f32
           + 2 * (E + 2 * H) * 8 * H * 2               # bf16 feeder weights (x2 buffering)
           + 2 * 2 * (2 * H) * (8 * H) * 4             # block-diag whh f32 (x2 buffering)
           + 2 * (2 * H * out_dim + 2 * 8 * H + out_dim) * 4
           + 2 * bt * out_dim * 4)
    cap = _vmem_cap_bytes()
    vmem_limit = int(min(max(2 * est, 16 * 1024 * 1024), cap - 8 * 1024 * 1024))

    flops = int(nbt * (2 * T * bt * E * 8 * H                   # L0 input proj
                       + 2 * T * bt * 2 * H * 8 * H             # L1 input proj
                       + 2 * 2 * T * bt * 2 * H * 8 * H         # recurrences (2 layers)
                       + 2 * bt * 2 * H * out_dim))             # fc
    transcendentals = int(nbt * 2 * T * bt * 10 * H)
    bytes_accessed = int(emb2d.size * 2
                         + (w_in0.size + w1_top.size + w1_bot.size) * 2
                         + (whh0_blk.size + whh1_blk.size + wfc_f.size
                            + wfc_b.size + b0.size + b1.size + bfc.size) * 4
                         + nbt * bt * out_dim * 4)

    out_tiles = pl.pallas_call(
        kernel,
        out_shape=jax.ShapeDtypeStruct((nbt, bt, out_dim), jnp.float32),
        grid=(nbt, n_chunks),
        in_specs=in_specs,
        out_specs=out_spec,
        scratch_shapes=[
            pltpu.VMEM((T * bt, 8 * H), jnp.float32),  # fused gate projections (L0/L1)
            pltpu.VMEM((T * bt, H), jnp.float32),      # layer-0 fwd outputs
            pltpu.VMEM((T * bt, H), jnp.float32),      # layer-0 bwd outputs
        ],
        compiler_params=pltpu.CompilerParams(
            dimension_semantics=("parallel", "arbitrary"),
            vmem_limit_bytes=vmem_limit),
        cost_estimate=pl.CostEstimate(flops=flops,
                                      transcendentals=transcendentals,
                                      bytes_accessed=bytes_accessed),
    )(emb2d, w_in0, b0, whh0_blk, w1_top, w1_bot, b1, whh1_blk,
      wfc_f, wfc_b, bfc)

    return out_tiles.reshape(Bp, out_dim)[:B]


# ---------------------------------------------------------------------------
# Pure-JAX reference (for correctness check)
# ---------------------------------------------------------------------------
def _ref_forward(tokens, params):
    emb = jnp.take(params['emb'], tokens, axis=0)
    x = jnp.transpose(emb, (1, 0, 2)).astype(jnp.float32)      # (T, B, E)
    H = params['w_hh_f0'].shape[1]

    def run_dir(seq, w_ih, w_hh, b, reverse):
        B = seq.shape[1]
        h0 = jnp.zeros((B, H), jnp.float32)
        c0 = jnp.zeros((B, H), jnp.float32)

        def step(carry, xt):
            h, c = carry
            gates = xt @ w_ih.T + h @ w_hh.T + b
            i, f, g, o = jnp.split(gates, 4, axis=-1)
            c = jax.nn.sigmoid(f) * c + jax.nn.sigmoid(i) * jnp.tanh(g)
            h = jax.nn.sigmoid(o) * jnp.tanh(c)
            return (h, c), h

        (hT, _), hs = lax.scan(step, (h0, c0), seq, reverse=reverse)
        return hT, hs

    hfT, hf = run_dir(x, params['w_ih_f0'], params['w_hh_f0'], params['b_f0'], False)
    hbT, hb = run_dir(x, params['w_ih_b0'], params['w_hh_b0'], params['b_b0'], True)
    out0 = jnp.concatenate([hf, hb], axis=-1)
    h1f, _ = run_dir(out0, params['w_ih_f1'], params['w_hh_f1'], params['b_f1'], False)
    h1b, _ = run_dir(out0, params['w_ih_b1'], params['w_hh_b1'], params['b_b1'], True)
    hidden_cat = jnp.concatenate([h1f, h1b], axis=-1)
    return hidden_cat @ params['w_fc'].T + params['b_fc']


if __name__ == "__main__":
    VOCAB, E, H, OUT = 50, 32, 32, 2
    B, T = 2, 8

    key = jax.random.PRNGKey(0)
    kp, kx = jax.random.split(key)
    params = init_params(kp, VOCAB, E, H, OUT)
    tokens = jax.random.randint(kx, (B, T), 0, VOCAB, dtype=jnp.int32)

    # max_chunk_timesteps=4 exercises the multi-chunk (pipelined emb) path.
    out = jax.block_until_ready(
        rnn_text_classification_forward(tokens, params, max_chunk_timesteps=4))
    ref = jax.block_until_ready(_ref_forward(tokens, params))

    assert out.shape == (B, OUT)
    # bf16 MXU feeders => slightly looser tolerance than the pure-f32 reference.
    assert jnp.allclose(out, ref, atol=2e-2, rtol=2e-2), (out, ref)
    print("KERNEL_OK")
</pallas_src>

<mosaic_0001>
module attributes {stable_mosaic.version = 11 : i64} {
  func.func @kernel(%arg0: i32, %arg1: i32, %arg2: memref<1x32x32xbf16, #tpu.memory_space<vmem>>, %arg3: memref<32x256xbf16, #tpu.memory_space<vmem>>, %arg4: memref<1x256xf32, #tpu.memory_space<vmem>>, %arg5: memref<64x256xf32, #tpu.memory_space<vmem>>, %arg6: memref<32x256xbf16, #tpu.memory_space<vmem>>, %arg7: memref<32x256xbf16, #tpu.memory_space<vmem>>, %arg8: memref<1x256xf32, #tpu.memory_space<vmem>>, %arg9: memref<64x256xf32, #tpu.memory_space<vmem>>, %arg10: memref<32x2xf32, #tpu.memory_space<vmem>>, %arg11: memref<32x2xf32, #tpu.memory_space<vmem>>, %arg12: memref<1x2xf32, #tpu.memory_space<vmem>>, %arg13: memref<1x8x2xf32, #tpu.memory_space<vmem>>, %arg14: memref<64x256xf32, #tpu.memory_space<vmem>>, %arg15: memref<64x32xf32, #tpu.memory_space<vmem>>, %arg16: memref<64x32xf32, #tpu.memory_space<vmem>>) attributes {dimension_semantics = [#tpu.dimension_semantics<parallel>, #tpu.dimension_semantics<arbitrary>], iteration_bounds = array<i64: 1, 2>, scalar_prefetch = 0 : i64, scratch_operands = 3 : i64, tpu.core_type = #tpu.core_type<tc>, window_params = [{transform_indices = @transform_0, window_bounds = array<i64: 1, 32, 32>}, {pipeline_mode = #tpu.pipeline_mode<synchronous>, transform_indices = @transform_1, window_bounds = array<i64: 32, 256>}, {pipeline_mode = #tpu.pipeline_mode<synchronous>, transform_indices = @transform_2, window_bounds = array<i64: 1, 256>}, {pipeline_mode = #tpu.pipeline_mode<synchronous>, transform_indices = @transform_3, window_bounds = array<i64: 64, 256>}, {pipeline_mode = #tpu.pipeline_mode<synchronous>, transform_indices = @transform_4, window_bounds = array<i64: 32, 256>}, {pipeline_mode = #tpu.pipeline_mode<synchronous>, transform_indices = @transform_5, window_bounds = array<i64: 32, 256>}, {pipeline_mode = #tpu.pipeline_mode<synchronous>, transform_indices = @transform_6, window_bounds = array<i64: 1, 256>}, {pipeline_mode = #tpu.pipeline_mode<synchronous>, transform_indices = @transform_7, window_bounds = array<i64: 64, 256>}, {pipeline_mode = #tpu.pipeline_mode<synchronous>, transform_indices = @transform_8, window_bounds = array<i64: 32, 2>}, {pipeline_mode = #tpu.pipeline_mode<synchronous>, transform_indices = @transform_9, window_bounds = array<i64: 32, 2>}, {pipeline_mode = #tpu.pipeline_mode<synchronous>, transform_indices = @transform_10, window_bounds = array<i64: 1, 2>}, {transform_indices = @transform_11, window_bounds = array<i64: 1, 8, 2>}]} {
    %c32_i32 = arith.constant 32 : i32
    %0 = arith.muli %arg1, %c32_i32 : i32
    %1 = tpu.assume_multiple %0, 8 : i32
    %c0 = arith.constant 0 : index
    %c0_0 = arith.constant 0 : index
    %c0_1 = arith.constant 0 : index
    %2 = vector.load %arg2[%c0, %c0_0, %c0_1] : memref<1x32x32xbf16, #tpu.memory_space<vmem>>, vector<1x32x32xbf16>
    %3 = vector.shape_cast %2 : vector<1x32x32xbf16> to vector<32x32xbf16>
    %c0_2 = arith.constant 0 : index
    %c0_3 = arith.constant 0 : index
    %4 = vector.load %arg3[%c0_2, %c0_3] : memref<32x256xbf16, #tpu.memory_space<vmem>>, vector<32x256xbf16>
    %cst = arith.constant dense<0.000000e+00> : vector<32x256xf32>
    %5 = tpu.matmul %3, %4, %cst {dimension_numbers = #tpu.dot_dimension_numbers<[1], [0], [0], [1], [0, 0, 1, 1], [], []>} : vector<32x32xbf16>, vector<32x256xbf16>, vector<32x256xf32> -> vector<32x256xf32>
    %c0_4 = arith.constant 0 : index
    %c0_5 = arith.constant 0 : index
    %6 = vector.load %arg4[%c0_4, %c0_5] : memref<1x256xf32, #tpu.memory_space<vmem>>, vector<1x256xf32>
    %7 = vector.broadcast %6 : vector<1x256xf32> to vector<32x256xf32>
    %8 = arith.addf %5, %7 : vector<32x256xf32>
    %9 = arith.index_cast %1 : i32 to index
    %c0_6 = arith.constant 0 : index
    %10 = vector.load %arg14[%9, %c0_6] : memref<64x256xf32, #tpu.memory_space<vmem>>, vector<32x256xf32>
    tpu.vector_store %arg14[%9, %c0_6], %8 {strides = array<i32>} : memref<64x256xf32, #tpu.memory_space<vmem>>, vector<32x256xf32>,
    %c1_i32 = arith.constant 1 : i32
    %11 = arith.cmpi eq, %arg1, %c1_i32 : i32
    %12 = arith.extui %11 : i1 to i32
    %c0_i32 = arith.constant 0 : i32
    %13 = arith.cmpi ne, %12, %c0_i32 : i32
    scf.if %13 {
      %c0_7 = arith.constant 0 : index
      %c0_8 = arith.constant 0 : index
      %14 = vector.load %arg5[%c0_7, %c0_8] : memref<64x256xf32, #tpu.memory_space<vmem>>, vector<64x256xf32>
      %c0_9 = arith.constant 0 : index
      %c0_10 = arith.constant 0 : index
      %15 = vector.load %arg9[%c0_9, %c0_10] : memref<64x256xf32, #tpu.memory_space<vmem>>, vector<64x256xf32>
      %cst_11 = arith.constant 0.000000e+00 : f32
      %16 = vector.broadcast %cst_11 : f32 to vector<8x64xf32>
      %cst_12 = arith.constant 0.000000e+00 : f32
      %17 = vector.broadcast %cst_12 : f32 to vector<8x32xf32>
      %c0_i32_13 = arith.constant 0 : i32
      %c8_i32 = arith.constant 8 : i32
      %18 = arith.muli %c0_i32_13, %c8_i32 : i32
      %19 = tpu.assume_multiple %18, 8 : i32
      %c7_i32 = arith.constant 7 : i32
      %20 = arith.subi %c7_i32, %c0_i32_13 : i32
      %c8_i32_14 = arith.constant 8 : i32
      %21 = arith.muli %20, %c8_i32_14 : i32
      %22 = tpu.assume_multiple %21, 8 : i32
      %cst_15 = arith.constant dense<0.000000e+00> : vector<8x256xf32>
      %23 = tpu.matmul %16, %14, %cst_15 {dimension_numbers = #tpu.dot_dimension_numbers<[1], [0], [0], [1], [0, 0, 1, 1], [], []>} : vector<8x64xf32>, vector<64x256xf32>, vector<8x256xf32> -> vector<8x256xf32>
      %24 = arith.index_cast %19 : i32 to index
      %c0_16 = arith.constant 0 : index
      %25 = vector.load %arg14[%24, %c0_16] : memref<64x256xf32, #tpu.memory_space<vmem>>, vector<8x128xf32>
      %26 = vector.extract_strided_slice %23 {offsets = [0, 0], sizes = [8, 128], strides = [1, 1]} : vector<8x256xf32> to vector<8x128xf32>
      %27 = arith.addf %25, %26 : vector<8x128xf32>
      %28 = arith.index_cast %22 : i32 to index
      %c128 = arith.constant 128 : index
      %29 = vector.load %arg14[%28, %c128] : memref<64x256xf32, #tpu.memory_space<vmem>>, vector<8x128xf32>
      %30 = vector.extract_strided_slice %23 {offsets = [0, 128], sizes = [8, 128], strides = [1, 1]} : vector<8x256xf32> to vector<8x128xf32>
      %31 = arith.addf %29, %30 : vector<8x128xf32>
      %32 = vector.extract_strided_slice %27 {offsets = [0, 0], sizes = [8, 96], strides = [1, 1]} : vector<8x128xf32> to vector<8x96xf32>
      %33 = arith.negf %32 : vector<8x96xf32>
      %34 = math.exp %33 : vector<8x96xf32>
      %cst_17 = arith.constant 1.000000e+00 : f32
      %35 = vector.broadcast %cst_17 : f32 to vector<8x96xf32>
      %36 = arith.addf %35, %34 : vector<8x96xf32>
      %37 = arith.divf %35, %36 : vector<8x96xf32>
      %38 = vector.extract_strided_slice %37 {offsets = [0, 0], sizes = [8, 32], strides = [1, 1]} : vector<8x96xf32> to vector<8x32xf32>
      %39 = vector.extract_strided_slice %37 {offsets = [0, 32], sizes = [8, 32], strides = [1, 1]} : vector<8x96xf32> to vector<8x32xf32>
      %40 = vector.extract_strided_slice %37 {offsets = [0, 64], sizes = [8, 32], strides = [1, 1]} : vector<8x96xf32> to vector<8x32xf32>
      %41 = vector.extract_strided_slice %27 {offsets = [0, 96], sizes = [8, 32], strides = [1, 1]} : vector<8x128xf32> to vector<8x32xf32>
      %42 = math.tanh %41 : vector<8x32xf32>
      %43 = arith.mulf %39, %17 : vector<8x32xf32>
      %44 = arith.mulf %38, %42 : vector<8x32xf32>
      %45 = arith.addf %43, %44 : vector<8x32xf32>
      %46 = math.tanh %45 : vector<8x32xf32>
      %47 = arith.mulf %40, %46 : vector<8x32xf32>
      %48 = vector.extract_strided_slice %31 {offsets = [0, 0], sizes = [8, 96], strides = [1, 1]} : vector<8x128xf32> to vector<8x96xf32>
      %49 = arith.negf %48 : vector<8x96xf32>
      %50 = math.exp %49 : vector<8x96xf32>
      %cst_18 = arith.constant 1.000000e+00 : f32
      %51 = vector.broadcast %cst_18 : f32 to vector<8x96xf32>
      %52 = arith.addf %51, %50 : vector<8x96xf32>
      %53 = arith.divf %51, %52 : vector<8x96xf32>
      %54 = vector.extract_strided_slice %53 {offsets = [0, 0], sizes = [8, 32], strides = [1, 1]} : vector<8x96xf32> to vector<8x32xf32>
      %55 = vector.extract_strided_slice %53 {offsets = [0, 32], sizes = [8, 32], strides = [1, 1]} : vector<8x96xf32> to vector<8x32xf32>
      %56 = vector.extract_strided_slice %53 {offsets = [0, 64], sizes = [8, 32], strides = [1, 1]} : vector<8x96xf32> to vector<8x32xf32>
      %57 = vector.extract_strided_slice %31 {offsets = [0, 96], sizes = [8, 32], strides = [1, 1]} : vector<8x128xf32> to vector<8x32xf32>
      %58 = math.tanh %57 : vector<8x32xf32>
      %59 = arith.mulf %55, %17 : vector<8x32xf32>
      %60 = arith.mulf %54, %58 : vector<8x32xf32>
      %61 = arith.addf %59, %60 : vector<8x32xf32>
      %62 = math.tanh %61 : vector<8x32xf32>
      %63 = arith.mulf %56, %62 : vector<8x32xf32>
      %64 = arith.index_cast %19 : i32 to index
      %c0_19 = arith.constant 0 : index
      %65 = vector.load %arg15[%64, %c0_19] : memref<64x32xf32, #tpu.memory_space<vmem>>, vector<8x32xf32>
      tpu.vector_store %arg15[%64, %c0_19], %47 {strides = array<i32>} : memref<64x32xf32, #tpu.memory_space<vmem>>, vector<8x32xf32>,
      %66 = arith.index_cast %22 : i32 to index
      %c0_20 = arith.constant 0 : index
      %67 = vector.load %arg16[%66, %c0_20] : memref<64x32xf32, #tpu.memory_space<vmem>>, vector<8x32xf32>
      tpu.vector_store %arg16[%66, %c0_20], %63 {strides = array<i32>} : memref<64x32xf32, #tpu.memory_space<vmem>>, vector<8x32xf32>,
      %68 = tpu.concatenate %47, %63 in 1 : vector<8x32xf32>, vector<8x32xf32> -> vector<8x64xf32>
      %c1_i32_21 = arith.constant 1 : i32
      %c8_i32_22 = arith.constant 8 : i32
      %69 = arith.muli %c1_i32_21, %c8_i32_22 : i32
      %70 = tpu.assume_multiple %69, 8 : i32
      %c7_i32_23 = arith.constant 7 : i32
      %71 = arith.subi %c7_i32_23, %c1_i32_21 : i32
      %c8_i32_24 = arith.constant 8 : i32
      %72 = arith.muli %71, %c8_i32_24 : i32
      %73 = tpu.assume_multiple %72, 8 : i32
      %cst_25 = arith.constant dense<0.000000e+00> : vector<8x256xf32>
      %74 = tpu.matmul %68, %14, %cst_25 {dimension_numbers = #tpu.dot_dimension_numbers<[1], [0], [0], [1], [0, 0, 1, 1], [], []>} : vector<8x64xf32>, vector<64x256xf32>, vector<8x256xf32> -> vector<8x256xf32>
      %75 = arith.index_cast %70 : i32 to index
      %c0_26 = arith.constant 0 : index
      %76 = vector.load %arg14[%75, %c0_26] : memref<64x256xf32, #tpu.memory_space<vmem>>, vector<8x128xf32>
      %77 = vector.extract_strided_slice %74 {offsets = [0, 0], sizes = [8, 128], strides = [1, 1]} : vector<8x256xf32> to vector<8x128xf32>
      %78 = arith.addf %76, %77 : vector<8x128xf32>
      %79 = arith.index_cast %73 : i32 to index
      %c128_27 = arith.constant 128 : index
      %80 = vector.load %arg14[%79, %c128_27] : memref<64x256xf32, #tpu.memory_space<vmem>>, vector<8x128xf32>
      %81 = vector.extract_strided_slice %74 {offsets = [0, 128], sizes = [8, 128], strides = [1, 1]} : vector<8x256xf32> to vector<8x128xf32>
      %82 = arith.addf %80, %81 : vector<8x128xf32>
      %83 = vector.extract_strided_slice %78 {offsets = [0, 0], sizes = [8, 96], strides = [1, 1]} : vector<8x128xf32> to vector<8x96xf32>
      %84 = arith.negf %83 : vector<8x96xf32>
      %85 = math.exp %84 : vector<8x96xf32>
      %cst_28 = arith.constant 1.000000e+00 : f32
      %86 = vector.broadcast %cst_28 : f32 to vector<8x96xf32>
      %87 = arith.addf %86, %85 : vector<8x96xf32>
      %88 = arith.divf %86, %87 : vector<8x96xf32>
      %89 = vector.extract_strided_slice %88 {offsets = [0, 0], sizes = [8, 32], strides = [1, 1]} : vector<8x96xf32> to vector<8x32xf32>
      %90 = vector.extract_strided_slice %88 {offsets = [0, 32], sizes = [8, 32], strides = [1, 1]} : vector<8x96xf32> to vector<8x32xf32>
      %91 = vector.extract_strided_slice %88 {offsets = [0, 64], sizes = [8, 32], strides = [1, 1]} : vector<8x96xf32> to vector<8x32xf32>
      %92 = vector.extract_strided_slice %78 {offsets = [0, 96], sizes = [8, 32], strides = [1, 1]} : vector<8x128xf32> to vector<8x32xf32>
      %93 = math.tanh %92 : vector<8x32xf32>
      %94 = arith.mulf %90, %45 : vector<8x32xf32>
      %95 = arith.mulf %89, %93 : vector<8x32xf32>
      %96 = arith.addf %94, %95 : vector<8x32xf32>
      %97 = math.tanh %96 : vector<8x32xf32>
      %98 = arith.mulf %91, %97 : vector<8x32xf32>
      %99 = vector.extract_strided_slice %82 {offsets = [0, 0], sizes = [8, 96], strides = [1, 1]} : vector<8x128xf32> to vector<8x96xf32>
      %100 = arith.negf %99 : vector<8x96xf32>
      %101 = math.exp %100 : vector<8x96xf32>
      %cst_29 = arith.constant 1.000000e+00 : f32
      %102 = vector.broadcast %cst_29 : f32 to vector<8x96xf32>
      %103 = arith.addf %102, %101 : vector<8x96xf32>
      %104 = arith.divf %102, %103 : vector<8x96xf32>
      %105 = vector.extract_strided_slice %104 {offsets = [0, 0], sizes = [8, 32], strides = [1, 1]} : vector<8x96xf32> to vector<8x32xf32>
      %106 = vector.extract_strided_slice %104 {offsets = [0, 32], sizes = [8, 32], strides = [1, 1]} : vector<8x96xf32> to vector<8x32xf32>
      %107 = vector.extract_strided_slice %104 {offsets = [0, 64], sizes = [8, 32], strides = [1, 1]} : vector<8x96xf32> to vector<8x32xf32>
      %108 = vector.extract_strided_slice %82 {offsets = [0, 96], sizes = [8, 32], strides = [1, 1]} : vector<8x128xf32> to vector<8x32xf32>
      %109 = math.tanh %108 : vector<8x32xf32>
      %110 = arith.mulf %106, %61 : vector<8x32xf32>
      %111 = arith.mulf %105, %109 : vector<8x32xf32>
      %112 = arith.addf %110, %111 : vector<8x32xf32>
      %113 = math.tanh %112 : vector<8x32xf32>
      %114 = arith.mulf %107, %113 : vector<8x32xf32>
      %115 = arith.index_cast %70 : i32 to index
      %c0_30 = arith.constant 0 : index
      %116 = vector.load %arg15[%115, %c0_30] : memref<64x32xf32, #tpu.memory_space<vmem>>, vector<8x32xf32>
      tpu.vector_store %arg15[%115, %c0_30], %98 {strides = array<i32>} : memref<64x32xf32, #tpu.memory_space<vmem>>, vector<8x32xf32>,
      %117 = arith.index_cast %73 : i32 to index
      %c0_31 = arith.constant 0 : index
      %118 = vector.load %arg16[%117, %c0_31] : memref<64x32xf32, #tpu.memory_space<vmem>>, vector<8x32xf32>
      tpu.vector_store %arg16[%117, %c0_31], %114 {strides = array<i32>} : memref<64x32xf32, #tpu.memory_space<vmem>>, vector<8x32xf32>,
      %119 = tpu.concatenate %98, %114 in 1 : vector<8x32xf32>, vector<8x32xf32> -> vector<8x64xf32>
      %c2_i32 = arith.constant 2 : i32
      %c8_i32_32 = arith.constant 8 : i32
      %120 = arith.muli %c2_i32, %c8_i32_32 : i32
      %121 = tpu.assume_multiple %120, 8 : i32
      %c7_i32_33 = arith.constant 7 : i32
      %122 = arith.subi %c7_i32_33, %c2_i32 : i32
      %c8_i32_34 = arith.constant 8 : i32
      %123 = arith.muli %122, %c8_i32_34 : i32
      %124 = tpu.assume_multiple %123, 8 : i32
      %cst_35 = arith.constant dense<0.000000e+00> : vector<8x256xf32>
      %125 = tpu.matmul %119, %14, %cst_35 {dimension_numbers = #tpu.dot_dimension_numbers<[1], [0], [0], [1], [0, 0, 1, 1], [], []>} : vector<8x64xf32>, vector<64x256xf32>, vector<8x256xf32> -> vector<8x256xf32>
      %126 = arith.index_cast %121 : i32 to index
      %c0_36 = arith.constant 0 : index
      %127 = vector.load %arg14[%126, %c0_36] : memref<64x256xf32, #tpu.memory_space<vmem>>, vector<8x128xf32>
      %128 = vector.extract_strided_slice %125 {offsets = [0, 0], sizes = [8, 128], strides = [1, 1]} : vector<8x256xf32> to vector<8x128xf32>
      %129 = arith.addf %127, %128 : vector<8x128xf32>
      %130 = arith.index_cast %124 : i32 to index
      %c128_37 = arith.constant 128 : index
      %131 = vector.load %arg14[%130, %c128_37] : memref<64x256xf32, #tpu.memory_space<vmem>>, vector<8x128xf32>
      %132 = vector.extract_strided_slice %125 {offsets = [0, 128], sizes = [8, 128], strides = [1, 1]} : vector<8x256xf32> to vector<8x128xf32>
      %133 = arith.addf %131, %132 : vector<8x128xf32>
      %134 = vector.extract_strided_slice %129 {offsets = [0, 0], sizes = [8, 96], strides = [1, 1]} : vector<8x128xf32> to vector<8x96xf32>
      %135 = arith.negf %134 : vector<8x96xf32>
      %136 = math.exp %135 : vector<8x96xf32>
      %cst_38 = arith.constant 1.000000e+00 : f32
      %137 = vector.broadcast %cst_38 : f32 to vector<8x96xf32>
      %138 = arith.addf %137, %136 : vector<8x96xf32>
      %139 = arith.divf %137, %138 : vector<8x96xf32>
      %140 = vector.extract_strided_slice %139 {offsets = [0, 0], sizes = [8, 32], strides = [1, 1]} : vector<8x96xf32> to vector<8x32xf32>
      %141 = vector.extract_strided_slice %139 {offsets = [0, 32], sizes = [8, 32], strides = [1, 1]} : vector<8x96xf32> to vector<8x32xf32>
      %142 = vector.extract_strided_slice %139 {offsets = [0, 64], sizes = [8, 32], strides = [1, 1]} : vector<8x96xf32> to vector<8x32xf32>
      %143 = vector.extract_strided_slice %129 {offsets = [0, 96], sizes = [8, 32], strides = [1, 1]} : vector<8x128xf32> to vector<8x32xf32>
      %144 = math.tanh %143 : vector<8x32xf32>
      %145 = arith.mulf %141, %96 : vector<8x32xf32>
      %146 = arith.mulf %140, %144 : vector<8x32xf32>
      %147 = arith.addf %145, %146 : vector<8x32xf32>
      %148 = math.tanh %147 : vector<8x32xf32>
      %149 = arith.mulf %142, %148 : vector<8x32xf32>
      %150 = vector.extract_strided_slice %133 {offsets = [0, 0], sizes = [8, 96], strides = [1, 1]} : vector<8x128xf32> to vector<8x96xf32>
      %151 = arith.negf %150 : vector<8x96xf32>
      %152 = math.exp %151 : vector<8x96xf32>
      %cst_39 = arith.constant 1.000000e+00 : f32
      %153 = vector.broadcast %cst_39 : f32 to vector<8x96xf32>
      %154 = arith.addf %153, %152 : vector<8x96xf32>
      %155 = arith.divf %153, %154 : vector<8x96xf32>
      %156 = vector.extract_strided_slice %155 {offsets = [0, 0], sizes = [8, 32], strides = [1, 1]} : vector<8x96xf32> to vector<8x32xf32>
      %157 = vector.extract_strided_slice %155 {offsets = [0, 32], sizes = [8, 32], strides = [1, 1]} : vector<8x96xf32> to vector<8x32xf32>
      %158 = vector.extract_strided_slice %155 {offsets = [0, 64], sizes = [8, 32], strides = [1, 1]} : vector<8x96xf32> to vector<8x32xf32>
      %159 = vector.extract_strided_slice %133 {offsets = [0, 96], sizes = [8, 32], strides = [1, 1]} : vector<8x128xf32> to vector<8x32xf32>
      %160 = math.tanh %159 : vector<8x32xf32>
      %161 = arith.mulf %157, %112 : vector<8x32xf32>
      %162 = arith.mulf %156, %160 : vector<8x32xf32>
      %163 = arith.addf %161, %162 : vector<8x32xf32>
      %164 = math.tanh %163 : vector<8x32xf32>
      %165 = arith.mulf %158, %164 : vector<8x32xf32>
      %166 = arith.index_cast %121 : i32 to index
      %c0_40 = arith.constant 0 : index
      %167 = vector.load %arg15[%166, %c0_40] : memref<64x32xf32, #tpu.memory_space<vmem>>, vector<8x32xf32>
      tpu.vector_store %arg15[%166, %c0_40], %149 {strides = array<i32>} : memref<64x32xf32, #tpu.memory_space<vmem>>, vector<8x32xf32>,
      %168 = arith.index_cast %124 : i32 to index
      %c0_41 = arith.constant 0 : index
      %169 = vector.load %arg16[%168, %c0_41] : memref<64x32xf32, #tpu.memory_space<vmem>>, vector<8x32xf32>
      tpu.vector_store %arg16[%168, %c0_41], %165 {strides = array<i32>} : memref<64x32xf32, #tpu.memory_space<vmem>>, vector<8x32xf32>,
      %170 = tpu.concatenate %149, %165 in 1 : vector<8x32xf32>, vector<8x32xf32> -> vector<8x64xf32>
      %c3_i32 = arith.constant 3 : i32
      %c8_i32_42 = arith.constant 8 : i32
      %171 = arith.muli %c3_i32, %c8_i32_42 : i32
      %172 = tpu.assume_multiple %171, 8 : i32
      %c7_i32_43 = arith.constant 7 : i32
      %173 = arith.subi %c7_i32_43, %c3_i32 : i32
      %c8_i32_44 = arith.constant 8 : i32
      %174 = arith.muli %173, %c8_i32_44 : i32
      %175 = tpu.assume_multiple %174, 8 : i32
      %cst_45 = arith.constant dense<0.000000e+00> : vector<8x256xf32>
      %176 = tpu.matmul %170, %14, %cst_45 {dimension_numbers = #tpu.dot_dimension_numbers<[1], [0], [0], [1], [0, 0, 1, 1], [], []>} : vector<8x64xf32>, vector<64x256xf32>, vector<8x256xf32> -> vector<8x256xf32>
      %177 = arith.index_cast %172 : i32 to index
      %c0_46 = arith.constant 0 : index
      %178 = vector.load %arg14[%177, %c0_46] : memref<64x256xf32, #tpu.memory_space<vmem>>, vector<8x128xf32>
      %179 = vector.extract_strided_slice %176 {offsets = [0, 0], sizes = [8, 128], strides = [1, 1]} : vector<8x256xf32> to vector<8x128xf32>
      %180 = arith.addf %178, %179 : vector<8x128xf32>
      %181 = arith.index_cast %175 : i32 to index
      %c128_47 = arith.constant 128 : index
      %182 = vector.load %arg14[%181, %c128_47] : memref<64x256xf32, #tpu.memory_space<vmem>>, vector<8x128xf32>
      %183 = vector.extract_strided_slice %176 {offsets = [0, 128], sizes = [8, 128], strides = [1, 1]} : vector<8x256xf32> to vector<8x128xf32>
      %184 = arith.addf %182, %183 : vector<8x128xf32>
      %185 = vector.extract_strided_slice %180 {offsets = [0, 0], sizes = [8, 96], strides = [1, 1]} : vector<8x128xf32> to vector<8x96xf32>
      %186 = arith.negf %185 : vector<8x96xf32>
      %187 = math.exp %186 : vector<8x96xf32>
      %cst_48 = arith.constant 1.000000e+00 : f32
      %188 = vector.broadcast %cst_48 : f32 to vector<8x96xf32>
      %189 = arith.addf %188, %187 : vector<8x96xf32>
      %190 = arith.divf %188, %189 : vector<8x96xf32>
      %191 = vector.extract_strided_slice %190 {offsets = [0, 0], sizes = [8, 32], strides = [1, 1]} : vector<8x96xf32> to vector<8x32xf32>
      %192 = vector.extract_strided_slice %190 {offsets = [0, 32], sizes = [8, 32], strides = [1, 1]} : vector<8x96xf32> to vector<8x32xf32>
      %193 = vector.extract_strided_slice %190 {offsets = [0, 64], sizes = [8, 32], strides = [1, 1]} : vector<8x96xf32> to vector<8x32xf32>
      %194 = vector.extract_strided_slice %180 {offsets = [0, 96], sizes = [8, 32], strides = [1, 1]} : vector<8x128xf32> to vector<8x32xf32>
      %195 = math.tanh %194 : vector<8x32xf32>
      %196 = arith.mulf %192, %147 : vector<8x32xf32>
      %197 = arith.mulf %191, %195 : vector<8x32xf32>
      %198 = arith.addf %196, %197 : vector<8x32xf32>
      %199 = math.tanh %198 : vector<8x32xf32>
      %200 = arith.mulf %193, %199 : vector<8x32xf32>
      %201 = vector.extract_strided_slice %184 {offsets = [0, 0], sizes = [8, 96], strides = [1, 1]} : vector<8x128xf32> to vector<8x96xf32>
      %202 = arith.negf %201 : vector<8x96xf32>
      %203 = math.exp %202 : vector<8x96xf32>
      %cst_49 = arith.constant 1.000000e+00 : f32
      %204 = vector.broadcast %cst_49 : f32 to vector<8x96xf32>
      %205 = arith.addf %204, %203 : vector<8x96xf32>
      %206 = arith.divf %204, %205 : vector<8x96xf32>
      %207 = vector.extract_strided_slice %206 {offsets = [0, 0], sizes = [8, 32], strides = [1, 1]} : vector<8x96xf32> to vector<8x32xf32>
      %208 = vector.extract_strided_slice %206 {offsets = [0, 32], sizes = [8, 32], strides = [1, 1]} : vector<8x96xf32> to vector<8x32xf32>
      %209 = vector.extract_strided_slice %206 {offsets = [0, 64], sizes = [8, 32], strides = [1, 1]} : vector<8x96xf32> to vector<8x32xf32>
      %210 = vector.extract_strided_slice %184 {offsets = [0, 96], sizes = [8, 32], strides = [1, 1]} : vector<8x128xf32> to vector<8x32xf32>
      %211 = math.tanh %210 : vector<8x32xf32>
      %212 = arith.mulf %208, %163 : vector<8x32xf32>
      %213 = arith.mulf %207, %211 : vector<8x32xf32>
      %214 = arith.addf %212, %213 : vector<8x32xf32>
      %215 = math.tanh %214 : vector<8x32xf32>
      %216 = arith.mulf %209, %215 : vector<8x32xf32>
      %217 = arith.index_cast %172 : i32 to index
      %c0_50 = arith.constant 0 : index
      %218 = vector.load %arg15[%217, %c0_50] : memref<64x32xf32, #tpu.memory_space<vmem>>, vector<8x32xf32>
      tpu.vector_store %arg15[%217, %c0_50], %200 {strides = array<i32>} : memref<64x32xf32, #tpu.memory_space<vmem>>, vector<8x32xf32>,
      %219 = arith.index_cast %175 : i32 to index
      %c0_51 = arith.constant 0 : index
      %220 = vector.load %arg16[%219, %c0_51] : memref<64x32xf32, #tpu.memory_space<vmem>>, vector<8x32xf32>
      tpu.vector_store %arg16[%219, %c0_51], %216 {strides = array<i32>} : memref<64x32xf32, #tpu.memory_space<vmem>>, vector<8x32xf32>,
      %221 = tpu.concatenate %200, %216 in 1 : vector<8x32xf32>, vector<8x32xf32> -> vector<8x64xf32>
      %c4_i32 = arith.constant 4 : i32
      %c8_i32_52 = arith.constant 8 : i32
      %222 = arith.muli %c4_i32, %c8_i32_52 : i32
      %223 = tpu.assume_multiple %222, 8 : i32
      %c7_i32_53 = arith.constant 7 : i32
      %224 = arith.subi %c7_i32_53, %c4_i32 : i32
      %c8_i32_54 = arith.constant 8 : i32
      %225 = arith.muli %224, %c8_i32_54 : i32
      %226 = tpu.assume_multiple %225, 8 : i32
      %cst_55 = arith.constant dense<0.000000e+00> : vector<8x256xf32>
      %227 = tpu.matmul %221, %14, %cst_55 {dimension_numbers = #tpu.dot_dimension_numbers<[1], [0], [0], [1], [0, 0, 1, 1], [], []>} : vector<8x64xf32>, vector<64x256xf32>, vector<8x256xf32> -> vector<8x256xf32>
      %228 = arith.index_cast %223 : i32 to index
      %c0_56 = arith.constant 0 : index
      %229 = vector.load %arg14[%228, %c0_56] : memref<64x256xf32, #tpu.memory_space<vmem>>, vector<8x128xf32>
      %230 = vector.extract_strided_slice %227 {offsets = [0, 0], sizes = [8, 128], strides = [1, 1]} : vector<8x256xf32> to vector<8x128xf32>
      %231 = arith.addf %229, %230 : vector<8x128xf32>
      %232 = arith.index_cast %226 : i32 to index
      %c128_57 = arith.constant 128 : index
      %233 = vector.load %arg14[%232, %c128_57] : memref<64x256xf32, #tpu.memory_space<vmem>>, vector<8x128xf32>
      %234 = vector.extract_strided_slice %227 {offsets = [0, 128], sizes = [8, 128], strides = [1, 1]} : vector<8x256xf32> to vector<8x128xf32>
      %235 = arith.addf %233, %234 : vector<8x128xf32>
      %236 = vector.extract_strided_slice %231 {offsets = [0, 0], sizes = [8, 96], strides = [1, 1]} : vector<8x128xf32> to vector<8x96xf32>
      %237 = arith.negf %236 : vector<8x96xf32>
      %238 = math.exp %237 : vector<8x96xf32>
      %cst_58 = arith.constant 1.000000e+00 : f32
      %239 = vector.broadcast %cst_58 : f32 to vector<8x96xf32>
      %240 = arith.addf %239, %238 : vector<8x96xf32>
      %241 = arith.divf %239, %240 : vector<8x96xf32>
      %242 = vector.extract_strided_slice %241 {offsets = [0, 0], sizes = [8, 32], strides = [1, 1]} : vector<8x96xf32> to vector<8x32xf32>
      %243 = vector.extract_strided_slice %241 {offsets = [0, 32], sizes = [8, 32], strides = [1, 1]} : vector<8x96xf32> to vector<8x32xf32>
      %244 = vector.extract_strided_slice %241 {offsets = [0, 64], sizes = [8, 32], strides = [1, 1]} : vector<8x96xf32> to vector<8x32xf32>
      %245 = vector.extract_strided_slice %231 {offsets = [0, 96], sizes = [8, 32], strides = [1, 1]} : vector<8x128xf32> to vector<8x32xf32>
      %246 = math.tanh %245 : vector<8x32xf32>
      %247 = arith.mulf %243, %198 : vector<8x32xf32>
      %248 = arith.mulf %242, %246 : vector<8x32xf32>
      %249 = arith.addf %247, %248 : vector<8x32xf32>
      %250 = math.tanh %249 : vector<8x32xf32>
      %251 = arith.mulf %244, %250 : vector<8x32xf32>
      %252 = vector.extract_strided_slice %235 {offsets = [0, 0], sizes = [8, 96], strides = [1, 1]} : vector<8x128xf32> to vector<8x96xf32>
      %253 = arith.negf %252 : vector<8x96xf32>
      %254 = math.exp %253 : vector<8x96xf32>
      %cst_59 = arith.constant 1.000000e+00 : f32
      %255 = vector.broadcast %cst_59 : f32 to vector<8x96xf32>
      %256 = arith.addf %255, %254 : vector<8x96xf32>
      %257 = arith.divf %255, %256 : vector<8x96xf32>
      %258 = vector.extract_strided_slice %257 {offsets = [0, 0], sizes = [8, 32], strides = [1, 1]} : vector<8x96xf32> to vector<8x32xf32>
      %259 = vector.extract_strided_slice %257 {offsets = [0, 32], sizes = [8, 32], strides = [1, 1]} : vector<8x96xf32> to vector<8x32xf32>
      %260 = vector.extract_strided_slice %257 {offsets = [0, 64], sizes = [8, 32], strides = [1, 1]} : vector<8x96xf32> to vector<8x32xf32>
      %261 = vector.extract_strided_slice %235 {offsets = [0, 96], sizes = [8, 32], strides = [1, 1]} : vector<8x128xf32> to vector<8x32xf32>
      %262 = math.tanh %261 : vector<8x32xf32>
      %263 = arith.mulf %259, %214 : vector<8x32xf32>
      %264 = arith.mulf %258, %262 : vector<8x32xf32>
      %265 = arith.addf %263, %264 : vector<8x32xf32>
      %266 = math.tanh %265 : vector<8x32xf32>
      %267 = arith.mulf %260, %266 : vector<8x32xf32>
      %268 = arith.index_cast %223 : i32 to index
      %c0_60 = arith.constant 0 : index
      %269 = vector.load %arg15[%268, %c0_60] : memref<64x32xf32, #tpu.memory_space<vmem>>, vector<8x32xf32>
      tpu.vector_store %arg15[%268, %c0_60], %251 {strides = array<i32>} : memref<64x32xf32, #tpu.memory_space<vmem>>, vector<8x32xf32>,
      %270 = arith.index_cast %226 : i32 to index
      %c0_61 = arith.constant 0 : index
      %271 = vector.load %arg16[%270, %c0_61] : memref<64x32xf32, #tpu.memory_space<vmem>>, vector<8x32xf32>
      tpu.vector_store %arg16[%270, %c0_61], %267 {strides = array<i32>} : memref<64x32xf32, #tpu.memory_space<vmem>>, vector<8x32xf32>,
      %272 = tpu.concatenate %251, %267 in 1 : vector<8x32xf32>, vector<8x32xf32> -> vector<8x64xf32>
      %c5_i32 = arith.constant 5 : i32
      %c8_i32_62 = arith.constant 8 : i32
      %273 = arith.muli %c5_i32, %c8_i32_62 : i32
      %274 = tpu.assume_multiple %273, 8 : i32
      %c7_i32_63 = arith.constant 7 : i32
      %275 = arith.subi %c7_i32_63, %c5_i32 : i32
      %c8_i32_64 = arith.constant 8 : i32
      %276 = arith.muli %275, %c8_i32_64 : i32
      %277 = tpu.assume_multiple %276, 8 : i32
      %cst_65 = arith.constant dense<0.000000e+00> : vector<8x256xf32>
      %278 = tpu.matmul %272, %14, %cst_65 {dimension_numbers = #tpu.dot_dimension_numbers<[1], [0], [0], [1], [0, 0, 1, 1], [], []>} : vector<8x64xf32>, vector<64x256xf32>, vector<8x256xf32> -> vector<8x256xf32>
      %279 = arith.index_cast %274 : i32 to index
      %c0_66 = arith.constant 0 : index
      %280 = vector.load %arg14[%279, %c0_66] : memref<64x256xf32, #tpu.memory_space<vmem>>, vector<8x128xf32>
      %281 = vector.extract_strided_slice %278 {offsets = [0, 0], sizes = [8, 128], strides = [1, 1]} : vector<8x256xf32> to vector<8x128xf32>
      %282 = arith.addf %280, %281 : vector<8x128xf32>
      %283 = arith.index_cast %277 : i32 to index
      %c128_67 = arith.constant 128 : index
      %284 = vector.load %arg14[%283, %c128_67] : memref<64x256xf32, #tpu.memory_space<vmem>>, vector<8x128xf32>
      %285 = vector.extract_strided_slice %278 {offsets = [0, 128], sizes = [8, 128], strides = [1, 1]} : vector<8x256xf32> to vector<8x128xf32>
      %286 = arith.addf %284, %285 : vector<8x128xf32>
      %287 = vector.extract_strided_slice %282 {offsets = [0, 0], sizes = [8, 96], strides = [1, 1]} : vector<8x128xf32> to vector<8x96xf32>
      %288 = arith.negf %287 : vector<8x96xf32>
      %289 = math.exp %288 : vector<8x96xf32>
      %cst_68 = arith.constant 1.000000e+00 : f32
      %290 = vector.broadcast %cst_68 : f32 to vector<8x96xf32>
      %291 = arith.addf %290, %289 : vector<8x96xf32>
      %292 = arith.divf %290, %291 : vector<8x96xf32>
      %293 = vector.extract_strided_slice %292 {offsets = [0, 0], sizes = [8, 32], strides = [1, 1]} : vector<8x96xf32> to vector<8x32xf32>
      %294 = vector.extract_strided_slice %292 {offsets = [0, 32], sizes = [8, 32], strides = [1, 1]} : vector<8x96xf32> to vector<8x32xf32>
      %295 = vector.extract_strided_slice %292 {offsets = [0, 64], sizes = [8, 32], strides = [1, 1]} : vector<8x96xf32> to vector<8x32xf32>
      %296 = vector.extract_strided_slice %282 {offsets = [0, 96], sizes = [8, 32], strides = [1, 1]} : vector<8x128xf32> to vector<8x32xf32>
      %297 = math.tanh %296 : vector<8x32xf32>
      %298 = arith.mulf %294, %249 : vector<8x32xf32>
      %299 = arith.mulf %293, %297 : vector<8x32xf32>
      %300 = arith.addf %298, %299 : vector<8x32xf32>
      %301 = math.tanh %300 : vector<8x32xf32>
      %302 = arith.mulf %295, %301 : vector<8x32xf32>
      %303 = vector.extract_strided_slice %286 {offsets = [0, 0], sizes = [8, 96], strides = [1, 1]} : vector<8x128xf32> to vector<8x96xf32>
      %304 = arith.negf %303 : vector<8x96xf32>
      %305 = math.exp %304 : vector<8x96xf32>
      %cst_69 = arith.constant 1.000000e+00 : f32
      %306 = vector.broadcast %cst_69 : f32 to vector<8x96xf32>
      %307 = arith.addf %306, %305 : vector<8x96xf32>
      %308 = arith.divf %306, %307 : vector<8x96xf32>
      %309 = vector.extract_strided_slice %308 {offsets = [0, 0], sizes = [8, 32], strides = [1, 1]} : vector<8x96xf32> to vector<8x32xf32>
      %310 = vector.extract_strided_slice %308 {offsets = [0, 32], sizes = [8, 32], strides = [1, 1]} : vector<8x96xf32> to vector<8x32xf32>
      %311 = vector.extract_strided_slice %308 {offsets = [0, 64], sizes = [8, 32], strides = [1, 1]} : vector<8x96xf32> to vector<8x32xf32>
      %312 = vector.extract_strided_slice %286 {offsets = [0, 96], sizes = [8, 32], strides = [1, 1]} : vector<8x128xf32> to vector<8x32xf32>
      %313 = math.tanh %312 : vector<8x32xf32>
      %314 = arith.mulf %310, %265 : vector<8x32xf32>
      %315 = arith.mulf %309, %313 : vector<8x32xf32>
      %316 = arith.addf %314, %315 : vector<8x32xf32>
      %317 = math.tanh %316 : vector<8x32xf32>
      %318 = arith.mulf %311, %317 : vector<8x32xf32>
      %319 = arith.index_cast %274 : i32 to index
      %c0_70 = arith.constant 0 : index
      %320 = vector.load %arg15[%319, %c0_70] : memref<64x32xf32, #tpu.memory_space<vmem>>, vector<8x32xf32>
      tpu.vector_store %arg15[%319, %c0_70], %302 {strides = array<i32>} : memref<64x32xf32, #tpu.memory_space<vmem>>, vector<8x32xf32>,
      %321 = arith.index_cast %277 : i32 to index
      %c0_71 = arith.constant 0 : index
      %322 = vector.load %arg16[%321, %c0_71] : memref<64x32xf32, #tpu.memory_space<vmem>>, vector<8x32xf32>
      tpu.vector_store %arg16[%321, %c0_71], %318 {strides = array<i32>} : memref<64x32xf32, #tpu.memory_space<vmem>>, vector<8x32xf32>,
      %323 = tpu.concatenate %302, %318 in 1 : vector<8x32xf32>, vector<8x32xf32> -> vector<8x64xf32>
      %c6_i32 = arith.constant 6 : i32
      %c8_i32_72 = arith.constant 8 : i32
      %324 = arith.muli %c6_i32, %c8_i32_72 : i32
      %325 = tpu.assume_multiple %324, 8 : i32
      %c7_i32_73 = arith.constant 7 : i32
      %326 = arith.subi %c7_i32_73, %c6_i32 : i32
      %c8_i32_74 = arith.constant 8 : i32
      %327 = arith.muli %326, %c8_i32_74 : i32
      %328 = tpu.assume_multiple %327, 8 : i32
      %cst_75 = arith.constant dense<0.000000e+00> : vector<8x256xf32>
      %329 = tpu.matmul %323, %14, %cst_75 {dimension_numbers = #tpu.dot_dimension_numbers<[1], [0], [0], [1], [0, 0, 1, 1], [], []>} : vector<8x64xf32>, vector<64x256xf32>, vector<8x256xf32> -> vector<8x256xf32>
      %330 = arith.index_cast %325 : i32 to index
      %c0_76 = arith.constant 0 : index
      %331 = vector.load %arg14[%330, %c0_76] : memref<64x256xf32, #tpu.memory_space<vmem>>, vector<8x128xf32>
      %332 = vector.extract_strided_slice %329 {offsets = [0, 0], sizes = [8, 128], strides = [1, 1]} : vector<8x256xf32> to vector<8x128xf32>
      %333 = arith.addf %331, %332 : vector<8x128xf32>
      %334 = arith.index_cast %328 : i32 to index
      %c128_77 = arith.constant 128 : index
      %335 = vector.load %arg14[%334, %c128_77] : memref<64x256xf32, #tpu.memory_space<vmem>>, vector<8x128xf32>
      %336 = vector.extract_strided_slice %329 {offsets = [0, 128], sizes = [8, 128], strides = [1, 1]} : vector<8x256xf32> to vector<8x128xf32>
      %337 = arith.addf %335, %336 : vector<8x128xf32>
      %338 = vector.extract_strided_slice %333 {offsets = [0, 0], sizes = [8, 96], strides = [1, 1]} : vector<8x128xf32> to vector<8x96xf32>
      %339 = arith.negf %338 : vector<8x96xf32>
      %340 = math.exp %339 : vector<8x96xf32>
      %cst_78 = arith.constant 1.000000e+00 : f32
      %341 = vector.broadcast %cst_78 : f32 to vector<8x96xf32>
      %342 = arith.addf %341, %340 : vector<8x96xf32>
      %343 = arith.divf %341, %342 : vector<8x96xf32>
      %344 = vector.extract_strided_slice %343 {offsets = [0, 0], sizes = [8, 32], strides = [1, 1]} : vector<8x96xf32> to vector<8x32xf32>
      %345 = vector.extract_strided_slice %343 {offsets = [0, 32], sizes = [8, 32], strides = [1, 1]} : vector<8x96xf32> to vector<8x32xf32>
      %346 = vector.extract_strided_slice %343 {offsets = [0, 64], sizes = [8, 32], strides = [1, 1]} : vector<8x96xf32> to vector<8x32xf32>
      %347 = vector.extract_strided_slice %333 {offsets = [0, 96], sizes = [8, 32], strides = [1, 1]} : vector<8x128xf32> to vector<8x32xf32>
      %348 = math.tanh %347 : vector<8x32xf32>
      %349 = arith.mulf %345, %300 : vector<8x32xf32>
      %350 = arith.mulf %344, %348 : vector<8x32xf32>
      %351 = arith.addf %349, %350 : vector<8x32xf32>
      %352 = math.tanh %351 : vector<8x32xf32>
      %353 = arith.mulf %346, %352 : vector<8x32xf32>
      %354 = vector.extract_strided_slice %337 {offsets = [0, 0], sizes = [8, 96], strides = [1, 1]} : vector<8x128xf32> to vector<8x96xf32>
      %355 = arith.negf %354 : vector<8x96xf32>
      %356 = math.exp %355 : vector<8x96xf32>
      %cst_79 = arith.constant 1.000000e+00 : f32
      %357 = vector.broadcast %cst_79 : f32 to vector<8x96xf32>
      %358 = arith.addf %357, %356 : vector<8x96xf32>
      %359 = arith.divf %357, %358 : vector<8x96xf32>
      %360 = vector.extract_strided_slice %359 {offsets = [0, 0], sizes = [8, 32], strides = [1, 1]} : vector<8x96xf32> to vector<8x32xf32>
      %361 = vector.extract_strided_slice %359 {offsets = [0, 32], sizes = [8, 32], strides = [1, 1]} : vector<8x96xf32> to vector<8x32xf32>
      %362 = vector.extract_strided_slice %359 {offsets = [0, 64], sizes = [8, 32], strides = [1, 1]} : vector<8x96xf32> to vector<8x32xf32>
      %363 = vector.extract_strided_slice %337 {offsets = [0, 96], sizes = [8, 32], strides = [1, 1]} : vector<8x128xf32> to vector<8x32xf32>
      %364 = math.tanh %363 : vector<8x32xf32>
      %365 = arith.mulf %361, %316 : vector<8x32xf32>
      %366 = arith.mulf %360, %364 : vector<8x32xf32>
      %367 = arith.addf %365, %366 : vector<8x32xf32>
      %368 = math.tanh %367 : vector<8x32xf32>
      %369 = arith.mulf %362, %368 : vector<8x32xf32>
      %370 = arith.index_cast %325 : i32 to index
      %c0_80 = arith.constant 0 : index
      %371 = vector.load %arg15[%370, %c0_80] : memref<64x32xf32, #tpu.memory_space<vmem>>, vector<8x32xf32>
      tpu.vector_store %arg15[%370, %c0_80], %353 {strides = array<i32>} : memref<64x32xf32, #tpu.memory_space<vmem>>, vector<8x32xf32>,
      %372 = arith.index_cast %328 : i32 to index
      %c0_81 = arith.constant 0 : index
      %373 = vector.load %arg16[%372, %c0_81] : memref<64x32xf32, #tpu.memory_space<vmem>>, vector<8x32xf32>
      tpu.vector_store %arg16[%372, %c0_81], %369 {strides = array<i32>} : memref<64x32xf32, #tpu.memory_space<vmem>>, vector<8x32xf32>,
      %374 = tpu.concatenate %353, %369 in 1 : vector<8x32xf32>, vector<8x32xf32> -> vector<8x64xf32>
      %c7_i32_82 = arith.constant 7 : i32
      %c8_i32_83 = arith.constant 8 : i32
      %375 = arith.muli %c7_i32_82, %c8_i32_83 : i32
      %376 = tpu.assume_multiple %375, 8 : i32
      %c7_i32_84 = arith.constant 7 : i32
      %377 = arith.subi %c7_i32_84, %c7_i32_82 : i32
      %c8_i32_85 = arith.constant 8 : i32
      %378 = arith.muli %377, %c8_i32_85 : i32
      %379 = tpu.assume_multiple %378, 8 : i32
      %cst_86 = arith.constant dense<0.000000e+00> : vector<8x256xf32>
      %380 = tpu.matmul %374, %14, %cst_86 {dimension_numbers = #tpu.dot_dimension_numbers<[1], [0], [0], [1], [0, 0, 1, 1], [], []>} : vector<8x64xf32>, vector<64x256xf32>, vector<8x256xf32> -> vector<8x256xf32>
      %381 = arith.index_cast %376 : i32 to index
      %c0_87 = arith.constant 0 : index
      %382 = vector.load %arg14[%381, %c0_87] : memref<64x256xf32, #tpu.memory_space<vmem>>, vector<8x128xf32>
      %383 = vector.extract_strided_slice %380 {offsets = [0, 0], sizes = [8, 128], strides = [1, 1]} : vector<8x256xf32> to vector<8x128xf32>
      %384 = arith.addf %382, %383 : vector<8x128xf32>
      %385 = arith.index_cast %379 : i32 to index
      %c128_88 = arith.constant 128 : index
      %386 = vector.load %arg14[%385, %c128_88] : memref<64x256xf32, #tpu.memory_space<vmem>>, vector<8x128xf32>
      %387 = vector.extract_strided_slice %380 {offsets = [0, 128], sizes = [8, 128], strides = [1, 1]} : vector<8x256xf32> to vector<8x128xf32>
      %388 = arith.addf %386, %387 : vector<8x128xf32>
      %389 = vector.extract_strided_slice %384 {offsets = [0, 0], sizes = [8, 96], strides = [1, 1]} : vector<8x128xf32> to vector<8x96xf32>
      %390 = arith.negf %389 : vector<8x96xf32>
      %391 = math.exp %390 : vector<8x96xf32>
      %cst_89 = arith.constant 1.000000e+00 : f32
      %392 = vector.broadcast %cst_89 : f32 to vector<8x96xf32>
      %393 = arith.addf %392, %391 : vector<8x96xf32>
      %394 = arith.divf %392, %393 : vector<8x96xf32>
      %395 = vector.extract_strided_slice %394 {offsets = [0, 0], sizes = [8, 32], strides = [1, 1]} : vector<8x96xf32> to vector<8x32xf32>
      %396 = vector.extract_strided_slice %394 {offsets = [0, 32], sizes = [8, 32], strides = [1, 1]} : vector<8x96xf32> to vector<8x32xf32>
      %397 = vector.extract_strided_slice %394 {offsets = [0, 64], sizes = [8, 32], strides = [1, 1]} : vector<8x96xf32> to vector<8x32xf32>
      %398 = vector.extract_strided_slice %384 {offsets = [0, 96], sizes = [8, 32], strides = [1, 1]} : vector<8x128xf32> to vector<8x32xf32>
      %399 = math.tanh %398 : vector<8x32xf32>
      %400 = arith.mulf %396, %351 : vector<8x32xf32>
      %401 = arith.mulf %395, %399 : vector<8x32xf32>
      %402 = arith.addf %400, %401 : vector<8x32xf32>
      %403 = math.tanh %402 : vector<8x32xf32>
      %404 = arith.mulf %397, %403 : vector<8x32xf32>
      %405 = vector.extract_strided_slice %388 {offsets = [0, 0], sizes = [8, 96], strides = [1, 1]} : vector<8x128xf32> to vector<8x96xf32>
      %406 = arith.negf %405 : vector<8x96xf32>
      %407 = math.exp %406 : vector<8x96xf32>
      %cst_90 = arith.constant 1.000000e+00 : f32
      %408 = vector.broadcast %cst_90 : f32 to vector<8x96xf32>
      %409 = arith.addf %408, %407 : vector<8x96xf32>
      %410 = arith.divf %408, %409 : vector<8x96xf32>
      %411 = vector.extract_strided_slice %410 {offsets = [0, 0], sizes = [8, 32], strides = [1, 1]} : vector<8x96xf32> to vector<8x32xf32>
      %412 = vector.extract_strided_slice %410 {offsets = [0, 32], sizes = [8, 32], strides = [1, 1]} : vector<8x96xf32> to vector<8x32xf32>
      %413 = vector.extract_strided_slice %410 {offsets = [0, 64], sizes = [8, 32], strides = [1, 1]} : vector<8x96xf32> to vector<8x32xf32>
      %414 = vector.extract_strided_slice %388 {offsets = [0, 96], sizes = [8, 32], strides = [1, 1]} : vector<8x128xf32> to vector<8x32xf32>
      %415 = math.tanh %414 : vector<8x32xf32>
      %416 = arith.mulf %412, %367 : vector<8x32xf32>
      %417 = arith.mulf %411, %415 : vector<8x32xf32>
      %418 = arith.addf %416, %417 : vector<8x32xf32>
      %419 = math.tanh %418 : vector<8x32xf32>
      %420 = arith.mulf %413, %419 : vector<8x32xf32>
      %421 = arith.index_cast %376 : i32 to index
      %c0_91 = arith.constant 0 : index
      %422 = vector.load %arg15[%421, %c0_91] : memref<64x32xf32, #tpu.memory_space<vmem>>, vector<8x32xf32>
      tpu.vector_store %arg15[%421, %c0_91], %404 {strides = array<i32>} : memref<64x32xf32, #tpu.memory_space<vmem>>, vector<8x32xf32>,
      %423 = arith.index_cast %379 : i32 to index
      %c0_92 = arith.constant 0 : index
      %424 = vector.load %arg16[%423, %c0_92] : memref<64x32xf32, #tpu.memory_space<vmem>>, vector<8x32xf32>
      tpu.vector_store %arg16[%423, %c0_92], %420 {strides = array<i32>} : memref<64x32xf32, #tpu.memory_space<vmem>>, vector<8x32xf32>,
      %425 = tpu.concatenate %404, %420 in 1 : vector<8x32xf32>, vector<8x32xf32> -> vector<8x64xf32>
      %c8_i32_93 = arith.constant 8 : i32
      %c0_94 = arith.constant 0 : index
      %c0_95 = arith.constant 0 : index
      %426 = vector.load %arg15[%c0_94, %c0_95] : memref<64x32xf32, #tpu.memory_space<vmem>>, vector<64x32xf32>
      %427 = arith.truncf %426 : vector<64x32xf32> to vector<64x32xbf16>
      %c0_96 = arith.constant 0 : index
      %c0_97 = arith.constant 0 : index
      %428 = vector.load %arg6[%c0_96, %c0_97] : memref<32x256xbf16, #tpu.memory_space<vmem>>, vector<32x256xbf16>
      %cst_98 = arith.constant dense<0.000000e+00> : vector<64x256xf32>
      %429 = tpu.matmul %427, %428, %cst_98 {dimension_numbers = #tpu.dot_dimension_numbers<[1], [0], [0], [1], [0, 0, 1, 1], [], []>} : vector<64x32xbf16>, vector<32x256xbf16>, vector<64x256xf32> -> vector<64x256xf32>
      %c0_99 = arith.constant 0 : index
      %c0_100 = arith.constant 0 : index
      %430 = vector.load %arg16[%c0_99, %c0_100] : memref<64x32xf32, #tpu.memory_space<vmem>>, vector<64x32xf32>
      %431 = arith.truncf %430 : vector<64x32xf32> to vector<64x32xbf16>
      %c0_101 = arith.constant 0 : index
      %c0_102 = arith.constant 0 : index
      %432 = vector.load %arg7[%c0_101, %c0_102] : memref<32x256xbf16, #tpu.memory_space<vmem>>, vector<32x256xbf16>
      %cst_103 = arith.constant dense<0.000000e+00> : vector<64x256xf32>
      %433 = tpu.matmul %431, %432, %cst_103 {dimension_numbers = #tpu.dot_dimension_numbers<[1], [0], [0], [1], [0, 0, 1, 1], [], []>} : vector<64x32xbf16>, vector<32x256xbf16>, vector<64x256xf32> -> vector<64x256xf32>
      %434 = arith.addf %429, %433 : vector<64x256xf32>
      %c0_104 = arith.constant 0 : index
      %c0_105 = arith.constant 0 : index
      %435 = vector.load %arg8[%c0_104, %c0_105] : memref<1x256xf32, #tpu.memory_space<vmem>>, vector<1x256xf32>
      %436 = vector.broadcast %435 : vector<1x256xf32> to vector<64x256xf32>
      %437 = arith.addf %434, %436 : vector<64x256xf32>
      %c0_106 = arith.constant 0 : index
      %c0_107 = arith.constant 0 : index
      %438 = vector.load %arg14[%c0_106, %c0_107] : memref<64x256xf32, #tpu.memory_space<vmem>>, vector<64x256xf32>
      tpu.vector_store %arg14[%c0_106, %c0_107], %437 {strides = array<i32>} : memref<64x256xf32, #tpu.memory_space<vmem>>, vector<64x256xf32>,
      %c0_i32_108 = arith.constant 0 : i32
      %c8_i32_109 = arith.constant 8 : i32
      %439 = arith.muli %c0_i32_108, %c8_i32_109 : i32
      %440 = tpu.assume_multiple %439, 8 : i32
      %c7_i32_110 = arith.constant 7 : i32
      %441 = arith.subi %c7_i32_110, %c0_i32_108 : i32
      %c8_i32_111 = arith.constant 8 : i32
      %442 = arith.muli %441, %c8_i32_111 : i32
      %443 = tpu.assume_multiple %442, 8 : i32
      %cst_112 = arith.constant dense<0.000000e+00> : vector<8x256xf32>
      %444 = tpu.matmul %16, %15, %cst_112 {dimension_numbers = #tpu.dot_dimension_numbers<[1], [0], [0], [1], [0, 0, 1, 1], [], []>} : vector<8x64xf32>, vector<64x256xf32>, vector<8x256xf32> -> vector<8x256xf32>
      %445 = arith.index_cast %440 : i32 to index
      %c0_113 = arith.constant 0 : index
      %446 = vector.load %arg14[%445, %c0_113] : memref<64x256xf32, #tpu.memory_space<vmem>>, vector<8x128xf32>
      %447 = vector.extract_strided_slice %444 {offsets = [0, 0], sizes = [8, 128], strides = [1, 1]} : vector<8x256xf32> to vector<8x128xf32>
      %448 = arith.addf %446, %447 : vector<8x128xf32>
      %449 = arith.index_cast %443 : i32 to index
      %c128_114 = arith.constant 128 : index
      %450 = vector.load %arg14[%449, %c128_114] : memref<64x256xf32, #tpu.memory_space<vmem>>, vector<8x128xf32>
      %451 = vector.extract_strided_slice %444 {offsets = [0, 128], sizes = [8, 128], strides = [1, 1]} : vector<8x256xf32> to vector<8x128xf32>
      %452 = arith.addf %450, %451 : vector<8x128xf32>
      %453 = vector.extract_strided_slice %448 {offsets = [0, 0], sizes = [8, 96], strides = [1, 1]} : vector<8x128xf32> to vector<8x96xf32>
      %454 = arith.negf %453 : vector<8x96xf32>
      %455 = math.exp %454 : vector<8x96xf32>
      %cst_115 = arith.constant 1.000000e+00 : f32
      %456 = vector.broadcast %cst_115 : f32 to vector<8x96xf32>
      %457 = arith.addf %456, %455 : vector<8x96xf32>
      %458 = arith.divf %456, %457 : vector<8x96xf32>
      %459 = vector.extract_strided_slice %458 {offsets = [0, 0], sizes = [8, 32], strides = [1, 1]} : vector<8x96xf32> to vector<8x32xf32>
      %460 = vector.extract_strided_slice %458 {offsets = [0, 32], sizes = [8, 32], strides = [1, 1]} : vector<8x96xf32> to vector<8x32xf32>
      %461 = vector.extract_strided_slice %458 {offsets = [0, 64], sizes = [8, 32], strides = [1, 1]} : vector<8x96xf32> to vector<8x32xf32>
      %462 = vector.extract_strided_slice %448 {offsets = [0, 96], sizes = [8, 32], strides = [1, 1]} : vector<8x128xf32> to vector<8x32xf32>
      %463 = math.tanh %462 : vector<8x32xf32>
      %464 = arith.mulf %460, %17 : vector<8x32xf32>
      %465 = arith.mulf %459, %463 : vector<8x32xf32>
      %466 = arith.addf %464, %465 : vector<8x32xf32>
      %467 = math.tanh %466 : vector<8x32xf32>
      %468 = arith.mulf %461, %467 : vector<8x32xf32>
      %469 = vector.extract_strided_slice %452 {offsets = [0, 0], sizes = [8, 96], strides = [1, 1]} : vector<8x128xf32> to vector<8x96xf32>
      %470 = arith.negf %469 : vector<8x96xf32>
      %471 = math.exp %470 : vector<8x96xf32>
      %cst_116 = arith.constant 1.000000e+00 : f32
      %472 = vector.broadcast %cst_116 : f32 to vector<8x96xf32>
      %473 = arith.addf %472, %471 : vector<8x96xf32>
      %474 = arith.divf %472, %473 : vector<8x96xf32>
      %475 = vector.extract_strided_slice %474 {offsets = [0, 0], sizes = [8, 32], strides = [1, 1]} : vector<8x96xf32> to vector<8x32xf32>
      %476 = vector.extract_strided_slice %474 {offsets = [0, 32], sizes = [8, 32], strides = [1, 1]} : vector<8x96xf32> to vector<8x32xf32>
      %477 = vector.extract_strided_slice %474 {offsets = [0, 64], sizes = [8, 32], strides = [1, 1]} : vector<8x96xf32> to vector<8x32xf32>
      %478 = vector.extract_strided_slice %452 {offsets = [0, 96], sizes = [8, 32], strides = [1, 1]} : vector<8x128xf32> to vector<8x32xf32>
      %479 = math.tanh %478 : vector<8x32xf32>
      %480 = arith.mulf %476, %17 : vector<8x32xf32>
      %481 = arith.mulf %475, %479 : vector<8x32xf32>
      %482 = arith.addf %480, %481 : vector<8x32xf32>
      %483 = math.tanh %482 : vector<8x32xf32>
      %484 = arith.mulf %477, %483 : vector<8x32xf32>
      %485 = tpu.concatenate %468, %484 in 1 : vector<8x32xf32>, vector<8x32xf32> -> vector<8x64xf32>
      %c1_i32_117 = arith.constant 1 : i32
      %c8_i32_118 = arith.constant 8 : i32
      %486 = arith.muli %c1_i32_117, %c8_i32_118 : i32
      %487 = tpu.assume_multiple %486, 8 : i32
      %c7_i32_119 = arith.constant 7 : i32
      %488 = arith.subi %c7_i32_119, %c1_i32_117 : i32
      %c8_i32_120 = arith.constant 8 : i32
      %489 = arith.muli %488, %c8_i32_120 : i32
      %490 = tpu.assume_multiple %489, 8 : i32
      %cst_121 = arith.constant dense<0.000000e+00> : vector<8x256xf32>
      %491 = tpu.matmul %485, %15, %cst_121 {dimension_numbers = #tpu.dot_dimension_numbers<[1], [0], [0], [1], [0, 0, 1, 1], [], []>} : vector<8x64xf32>, vector<64x256xf32>, vector<8x256xf32> -> vector<8x256xf32>
      %492 = arith.index_cast %487 : i32 to index
      %c0_122 = arith.constant 0 : index
      %493 = vector.load %arg14[%492, %c0_122] : memref<64x256xf32, #tpu.memory_space<vmem>>, vector<8x128xf32>
      %494 = vector.extract_strided_slice %491 {offsets = [0, 0], sizes = [8, 128], strides = [1, 1]} : vector<8x256xf32> to vector<8x128xf32>
      %495 = arith.addf %493, %494 : vector<8x128xf32>
      %496 = arith.index_cast %490 : i32 to index
      %c128_123 = arith.constant 128 : index
      %497 = vector.load %arg14[%496, %c128_123] : memref<64x256xf32, #tpu.memory_space<vmem>>, vector<8x128xf32>
      %498 = vector.extract_strided_slice %491 {offsets = [0, 128], sizes = [8, 128], strides = [1, 1]} : vector<8x256xf32> to vector<8x128xf32>
      %499 = arith.addf %497, %498 : vector<8x128xf32>
      %500 = vector.extract_strided_slice %495 {offsets = [0, 0], sizes = [8, 96], strides = [1, 1]} : vector<8x128xf32> to vector<8x96xf32>
      %501 = arith.negf %500 : vector<8x96xf32>
      %502 = math.exp %501 : vector<8x96xf32>
      %cst_124 = arith.constant 1.000000e+00 : f32
      %503 = vector.broadcast %cst_124 : f32 to vector<8x96xf32>
      %504 = arith.addf %503, %502 : vector<8x96xf32>
      %505 = arith.divf %503, %504 : vector<8x96xf32>
      %506 = vector.extract_strided_slice %505 {offsets = [0, 0], sizes = [8, 32], strides = [1, 1]} : vector<8x96xf32> to vector<8x32xf32>
      %507 = vector.extract_strided_slice %505 {offsets = [0, 32], sizes = [8, 32], strides = [1, 1]} : vector<8x96xf32> to vector<8x32xf32>
      %508 = vector.extract_strided_slice %505 {offsets = [0, 64], sizes = [8, 32], strides = [1, 1]} : vector<8x96xf32> to vector<8x32xf32>
      %509 = vector.extract_strided_slice %495 {offsets = [0, 96], sizes = [8, 32], strides = [1, 1]} : vector<8x128xf32> to vector<8x32xf32>
      %510 = math.tanh %509 : vector<8x32xf32>
      %511 = arith.mulf %507, %466 : vector<8x32xf32>
      %512 = arith.mulf %506, %510 : vector<8x32xf32>
      %513 = arith.addf %511, %512 : vector<8x32xf32>
      %514 = math.tanh %513 : vector<8x32xf32>
      %515 = arith.mulf %508, %514 : vector<8x32xf32>
      %516 = vector.extract_strided_slice %499 {offsets = [0, 0], sizes = [8, 96], strides = [1, 1]} : vector<8x128xf32> to vector<8x96xf32>
      %517 = arith.negf %516 : vector<8x96xf32>
      %518 = math.exp %517 : vector<8x96xf32>
      %cst_125 = arith.constant 1.000000e+00 : f32
      %519 = vector.broadcast %cst_125 : f32 to vector<8x96xf32>
      %520 = arith.addf %519, %518 : vector<8x96xf32>
      %521 = arith.divf %519, %520 : vector<8x96xf32>
      %522 = vector.extract_strided_slice %521 {offsets = [0, 0], sizes = [8, 32], strides = [1, 1]} : vector<8x96xf32> to vector<8x32xf32>
      %523 = vector.extract_strided_slice %521 {offsets = [0, 32], sizes = [8, 32], strides = [1, 1]} : vector<8x96xf32> to vector<8x32xf32>
      %524 = vector.extract_strided_slice %521 {offsets = [0, 64], sizes = [8, 32], strides = [1, 1]} : vector<8x96xf32> to vector<8x32xf32>
      %525 = vector.extract_strided_slice %499 {offsets = [0, 96], sizes = [8, 32], strides = [1, 1]} : vector<8x128xf32> to vector<8x32xf32>
      %526 = math.tanh %525 : vector<8x32xf32>
      %527 = arith.mulf %523, %482 : vector<8x32xf32>
      %528 = arith.mulf %522, %526 : vector<8x32xf32>
      %529 = arith.addf %527, %528 : vector<8x32xf32>
      %530 = math.tanh %529 : vector<8x32xf32>
      %531 = arith.mulf %524, %530 : vector<8x32xf32>
      %532 = tpu.concatenate %515, %531 in 1 : vector<8x32xf32>, vector<8x32xf32> -> vector<8x64xf32>
      %c2_i32_126 = arith.constant 2 : i32
      %c8_i32_127 = arith.constant 8 : i32
      %533 = arith.muli %c2_i32_126, %c8_i32_127 : i32
      %534 = tpu.assume_multiple %533, 8 : i32
      %c7_i32_128 = arith.constant 7 : i32
      %535 = arith.subi %c7_i32_128, %c2_i32_126 : i32
      %c8_i32_129 = arith.constant 8 : i32
      %536 = arith.muli %535, %c8_i32_129 : i32
      %537 = tpu.assume_multiple %536, 8 : i32
      %cst_130 = arith.constant dense<0.000000e+00> : vector<8x256xf32>
      %538 = tpu.matmul %532, %15, %cst_130 {dimension_numbers = #tpu.dot_dimension_numbers<[1], [0], [0], [1], [0, 0, 1, 1], [], []>} : vector<8x64xf32>, vector<64x256xf32>, vector<8x256xf32> -> vector<8x256xf32>
      %539 = arith.index_cast %534 : i32 to index
      %c0_131 = arith.constant 0 : index
      %540 = vector.load %arg14[%539, %c0_131] : memref<64x256xf32, #tpu.memory_space<vmem>>, vector<8x128xf32>
      %541 = vector.extract_strided_slice %538 {offsets = [0, 0], sizes = [8, 128], strides = [1, 1]} : vector<8x256xf32> to vector<8x128xf32>
      %542 = arith.addf %540, %541 : vector<8x128xf32>
      %543 = arith.index_cast %537 : i32 to index
      %c128_132 = arith.constant 128 : index
      %544 = vector.load %arg14[%543, %c128_132] : memref<64x256xf32, #tpu.memory_space<vmem>>, vector<8x128xf32>
      %545 = vector.extract_strided_slice %538 {offsets = [0, 128], sizes = [8, 128], strides = [1, 1]} : vector<8x256xf32> to vector<8x128xf32>
      %546 = arith.addf %544, %545 : vector<8x128xf32>
      %547 = vector.extract_strided_slice %542 {offsets = [0, 0], sizes = [8, 96], strides = [1, 1]} : vector<8x128xf32> to vector<8x96xf32>
      %548 = arith.negf %547 : vector<8x96xf32>
      %549 = math.exp %548 : vector<8x96xf32>
      %cst_133 = arith.constant 1.000000e+00 : f32
      %550 = vector.broadcast %cst_133 : f32 to vector<8x96xf32>
      %551 = arith.addf %550, %549 : vector<8x96xf32>
      %552 = arith.divf %550, %551 : vector<8x96xf32>
      %553 = vector.extract_strided_slice %552 {offsets = [0, 0], sizes = [8, 32], strides = [1, 1]} : vector<8x96xf32> to vector<8x32xf32>
      %554 = vector.extract_strided_slice %552 {offsets = [0, 32], sizes = [8, 32], strides = [1, 1]} : vector<8x96xf32> to vector<8x32xf32>
      %555 = vector.extract_strided_slice %552 {offsets = [0, 64], sizes = [8, 32], strides = [1, 1]} : vector<8x96xf32> to vector<8x32xf32>
      %556 = vector.extract_strided_slice %542 {offsets = [0, 96], sizes = [8, 32], strides = [1, 1]} : vector<8x128xf32> to vector<8x32xf32>
      %557 = math.tanh %556 : vector<8x32xf32>
      %558 = arith.mulf %554, %513 : vector<8x32xf32>
      %559 = arith.mulf %553, %557 : vector<8x32xf32>
      %560 = arith.addf %558, %559 : vector<8x32xf32>
      %561 = math.tanh %560 : vector<8x32xf32>
      %562 = arith.mulf %555, %561 : vector<8x32xf32>
      %563 = vector.extract_strided_slice %546 {offsets = [0, 0], sizes = [8, 96], strides = [1, 1]} : vector<8x128xf32> to vector<8x96xf32>
      %564 = arith.negf %563 : vector<8x96xf32>
      %565 = math.exp %564 : vector<8x96xf32>
      %cst_134 = arith.constant 1.000000e+00 : f32
      %566 = vector.broadcast %cst_134 : f32 to vector<8x96xf32>
      %567 = arith.addf %566, %565 : vector<8x96xf32>
      %568 = arith.divf %566, %567 : vector<8x96xf32>
      %569 = vector.extract_strided_slice %568 {offsets = [0, 0], sizes = [8, 32], strides = [1, 1]} : vector<8x96xf32> to vector<8x32xf32>
      %570 = vector.extract_strided_slice %568 {offsets = [0, 32], sizes = [8, 32], strides = [1, 1]} : vector<8x96xf32> to vector<8x32xf32>
      %571 = vector.extract_strided_slice %568 {offsets = [0, 64], sizes = [8, 32], strides = [1, 1]} : vector<8x96xf32> to vector<8x32xf32>
      %572 = vector.extract_strided_slice %546 {offsets = [0, 96], sizes = [8, 32], strides = [1, 1]} : vector<8x128xf32> to vector<8x32xf32>
      %573 = math.tanh %572 : vector<8x32xf32>
      %574 = arith.mulf %570, %529 : vector<8x32xf32>
      %575 = arith.mulf %569, %573 : vector<8x32xf32>
      %576 = arith.addf %574, %575 : vector<8x32xf32>
      %577 = math.tanh %576 : vector<8x32xf32>
      %578 = arith.mulf %571, %577 : vector<8x32xf32>
      %579 = tpu.concatenate %562, %578 in 1 : vector<8x32xf32>, vector<8x32xf32> -> vector<8x64xf32>
      %c3_i32_135 = arith.constant 3 : i32
      %c8_i32_136 = arith.constant 8 : i32
      %580 = arith.muli %c3_i32_135, %c8_i32_136 : i32
      %581 = tpu.assume_multiple %580, 8 : i32
      %c7_i32_137 = arith.constant 7 : i32
      %582 = arith.subi %c7_i32_137, %c3_i32_135 : i32
      %c8_i32_138 = arith.constant 8 : i32
      %583 = arith.muli %582, %c8_i32_138 : i32
      %584 = tpu.assume_multiple %583, 8 : i32
      %cst_139 = arith.constant dense<0.000000e+00> : vector<8x256xf32>
      %585 = tpu.matmul %579, %15, %cst_139 {dimension_numbers = #tpu.dot_dimension_numbers<[1], [0], [0], [1], [0, 0, 1, 1], [], []>} : vector<8x64xf32>, vector<64x256xf32>, vector<8x256xf32> -> vector<8x256xf32>
      %586 = arith.index_cast %581 : i32 to index
      %c0_140 = arith.constant 0 : index
      %587 = vector.load %arg14[%586, %c0_140] : memref<64x256xf32, #tpu.memory_space<vmem>>, vector<8x128xf32>
      %588 = vector.extract_strided_slice %585 {offsets = [0, 0], sizes = [8, 128], strides = [1, 1]} : vector<8x256xf32> to vector<8x128xf32>
      %589 = arith.addf %587, %588 : vector<8x128xf32>
      %590 = arith.index_cast %584 : i32 to index
      %c128_141 = arith.constant 128 : index
      %591 = vector.load %arg14[%590, %c128_141] : memref<64x256xf32, #tpu.memory_space<vmem>>, vector<8x128xf32>
      %592 = vector.extract_strided_slice %585 {offsets = [0, 128], sizes = [8, 128], strides = [1, 1]} : vector<8x256xf32> to vector<8x128xf32>
      %593 = arith.addf %591, %592 : vector<8x128xf32>
      %594 = vector.extract_strided_slice %589 {offsets = [0, 0], sizes = [8, 96], strides = [1, 1]} : vector<8x128xf32> to vector<8x96xf32>
      %595 = arith.negf %594 : vector<8x96xf32>
      %596 = math.exp %595 : vector<8x96xf32>
      %cst_142 = arith.constant 1.000000e+00 : f32
      %597 = vector.broadcast %cst_142 : f32 to vector<8x96xf32>
      %598 = arith.addf %597, %596 : vector<8x96xf32>
      %599 = arith.divf %597, %598 : vector<8x96xf32>
      %600 = vector.extract_strided_slice %599 {offsets = [0, 0], sizes = [8, 32], strides = [1, 1]} : vector<8x96xf32> to vector<8x32xf32>
      %601 = vector.extract_strided_slice %599 {offsets = [0, 32], sizes = [8, 32], strides = [1, 1]} : vector<8x96xf32> to vector<8x32xf32>
      %602 = vector.extract_strided_slice %599 {offsets = [0, 64], sizes = [8, 32], strides = [1, 1]} : vector<8x96xf32> to vector<8x32xf32>
      %603 = vector.extract_strided_slice %589 {offsets = [0, 96], sizes = [8, 32], strides = [1, 1]} : vector<8x128xf32> to vector<8x32xf32>
      %604 = math.tanh %603 : vector<8x32xf32>
      %605 = arith.mulf %601, %560 : vector<8x32xf32>
      %606 = arith.mulf %600, %604 : vector<8x32xf32>
      %607 = arith.addf %605, %606 : vector<8x32xf32>
      %608 = math.tanh %607 : vector<8x32xf32>
      %609 = arith.mulf %602, %608 : vector<8x32xf32>
      %610 = vector.extract_strided_slice %593 {offsets = [0, 0], sizes = [8, 96], strides = [1, 1]} : vector<8x128xf32> to vector<8x96xf32>
      %611 = arith.negf %610 : vector<8x96xf32>
      %612 = math.exp %611 : vector<8x96xf32>
      %cst_143 = arith.constant 1.000000e+00 : f32
      %613 = vector.broadcast %cst_143 : f32 to vector<8x96xf32>
      %614 = arith.addf %613, %612 : vector<8x96xf32>
      %615 = arith.divf %613, %614 : vector<8x96xf32>
      %616 = vector.extract_strided_slice %615 {offsets = [0, 0], sizes = [8, 32], strides = [1, 1]} : vector<8x96xf32> to vector<8x32xf32>
      %617 = vector.extract_strided_slice %615 {offsets = [0, 32], sizes = [8, 32], strides = [1, 1]} : vector<8x96xf32> to vector<8x32xf32>
      %618 = vector.extract_strided_slice %615 {offsets = [0, 64], sizes = [8, 32], strides = [1, 1]} : vector<8x96xf32> to vector<8x32xf32>
      %619 = vector.extract_strided_slice %593 {offsets = [0, 96], sizes = [8, 32], strides = [1, 1]} : vector<8x128xf32> to vector<8x32xf32>
      %620 = math.tanh %619 : vector<8x32xf32>
      %621 = arith.mulf %617, %576 : vector<8x32xf32>
      %622 = arith.mulf %616, %620 : vector<8x32xf32>
      %623 = arith.addf %621, %622 : vector<8x32xf32>
      %624 = math.tanh %623 : vector<8x32xf32>
      %625 = arith.mulf %618, %624 : vector<8x32xf32>
      %626 = tpu.concatenate %609, %625 in 1 : vector<8x32xf32>, vector<8x32xf32> -> vector<8x64xf32>
      %c4_i32_144 = arith.constant 4 : i32
      %c8_i32_145 = arith.constant 8 : i32
      %627 = arith.muli %c4_i32_144, %c8_i32_145 : i32
      %628 = tpu.assume_multiple %627, 8 : i32
      %c7_i32_146 = arith.constant 7 : i32
      %629 = arith.subi %c7_i32_146, %c4_i32_144 : i32
      %c8_i32_147 = arith.constant 8 : i32
      %630 = arith.muli %629, %c8_i32_147 : i32
      %631 = tpu.assume_multiple %630, 8 : i32
      %cst_148 = arith.constant dense<0.000000e+00> : vector<8x256xf32>
      %632 = tpu.matmul %626, %15, %cst_148 {dimension_numbers = #tpu.dot_dimension_numbers<[1], [0], [0], [1], [0, 0, 1, 1], [], []>} : vector<8x64xf32>, vector<64x256xf32>, vector<8x256xf32> -> vector<8x256xf32>
      %633 = arith.index_cast %628 : i32 to index
      %c0_149 = arith.constant 0 : index
      %634 = vector.load %arg14[%633, %c0_149] : memref<64x256xf32, #tpu.memory_space<vmem>>, vector<8x128xf32>
      %635 = vector.extract_strided_slice %632 {offsets = [0, 0], sizes = [8, 128], strides = [1, 1]} : vector<8x256xf32> to vector<8x128xf32>
      %636 = arith.addf %634, %635 : vector<8x128xf32>
      %637 = arith.index_cast %631 : i32 to index
      %c128_150 = arith.constant 128 : index
      %638 = vector.load %arg14[%637, %c128_150] : memref<64x256xf32, #tpu.memory_space<vmem>>, vector<8x128xf32>
      %639 = vector.extract_strided_slice %632 {offsets = [0, 128], sizes = [8, 128], strides = [1, 1]} : vector<8x256xf32> to vector<8x128xf32>
      %640 = arith.addf %638, %639 : vector<8x128xf32>
      %641 = vector.extract_strided_slice %636 {offsets = [0, 0], sizes = [8, 96], strides = [1, 1]} : vector<8x128xf32> to vector<8x96xf32>
      %642 = arith.negf %641 : vector<8x96xf32>
      %643 = math.exp %642 : vector<8x96xf32>
      %cst_151 = arith.constant 1.000000e+00 : f32
      %644 = vector.broadcast %cst_151 : f32 to vector<8x96xf32>
      %645 = arith.addf %644, %643 : vector<8x96xf32>
      %646 = arith.divf %644, %645 : vector<8x96xf32>
      %647 = vector.extract_strided_slice %646 {offsets = [0, 0], sizes = [8, 32], strides = [1, 1]} : vector<8x96xf32> to vector<8x32xf32>
      %648 = vector.extract_strided_slice %646 {offsets = [0, 32], sizes = [8, 32], strides = [1, 1]} : vector<8x96xf32> to vector<8x32xf32>
      %649 = vector.extract_strided_slice %646 {offsets = [0, 64], sizes = [8, 32], strides = [1, 1]} : vector<8x96xf32> to vector<8x32xf32>
      %650 = vector.extract_strided_slice %636 {offsets = [0, 96], sizes = [8, 32], strides = [1, 1]} : vector<8x128xf32> to vector<8x32xf32>
      %651 = math.tanh %650 : vector<8x32xf32>
      %652 = arith.mulf %648, %607 : vector<8x32xf32>
      %653 = arith.mulf %647, %651 : vector<8x32xf32>
      %654 = arith.addf %652, %653 : vector<8x32xf32>
      %655 = math.tanh %654 : vector<8x32xf32>
      %656 = arith.mulf %649, %655 : vector<8x32xf32>
      %657 = vector.extract_strided_slice %640 {offsets = [0, 0], sizes = [8, 96], strides = [1, 1]} : vector<8x128xf32> to vector<8x96xf32>
      %658 = arith.negf %657 : vector<8x96xf32>
      %659 = math.exp %658 : vector<8x96xf32>
      %cst_152 = arith.constant 1.000000e+00 : f32
      %660 = vector.broadcast %cst_152 : f32 to vector<8x96xf32>
      %661 = arith.addf %660, %659 : vector<8x96xf32>
      %662 = arith.divf %660, %661 : vector<8x96xf32>
      %663 = vector.extract_strided_slice %662 {offsets = [0, 0], sizes = [8, 32], strides = [1, 1]} : vector<8x96xf32> to vector<8x32xf32>
      %664 = vector.extract_strided_slice %662 {offsets = [0, 32], sizes = [8, 32], strides = [1, 1]} : vector<8x96xf32> to vector<8x32xf32>
      %665 = vector.extract_strided_slice %662 {offsets = [0, 64], sizes = [8, 32], strides = [1, 1]} : vector<8x96xf32> to vector<8x32xf32>
      %666 = vector.extract_strided_slice %640 {offsets = [0, 96], sizes = [8, 32], strides = [1, 1]} : vector<8x128xf32> to vector<8x32xf32>
      %667 = math.tanh %666 : vector<8x32xf32>
      %668 = arith.mulf %664, %623 : vector<8x32xf32>
      %669 = arith.mulf %663, %667 : vector<8x32xf32>
      %670 = arith.addf %668, %669 : vector<8x32xf32>
      %671 = math.tanh %670 : vector<8x32xf32>
      %672 = arith.mulf %665, %671 : vector<8x32xf32>
      %673 = tpu.concatenate %656, %672 in 1 : vector<8x32xf32>, vector<8x32xf32> -> vector<8x64xf32>
      %c5_i32_153 = arith.constant 5 : i32
      %c8_i32_154 = arith.constant 8 : i32
      %674 = arith.muli %c5_i32_153, %c8_i32_154 : i32
      %675 = tpu.assume_multiple %674, 8 : i32
      %c7_i32_155 = arith.constant 7 : i32
      %676 = arith.subi %c7_i32_155, %c5_i32_153 : i32
      %c8_i32_156 = arith.constant 8 : i32
      %677 = arith.muli %676, %c8_i32_156 : i32
      %678 = tpu.assume_multiple %677, 8 : i32
      %cst_157 = arith.constant dense<0.000000e+00> : vector<8x256xf32>
      %679 = tpu.matmul %673, %15, %cst_157 {dimension_numbers = #tpu.dot_dimension_numbers<[1], [0], [0], [1], [0, 0, 1, 1], [], []>} : vector<8x64xf32>, vector<64x256xf32>, vector<8x256xf32> -> vector<8x256xf32>
      %680 = arith.index_cast %675 : i32 to index
      %c0_158 = arith.constant 0 : index
      %681 = vector.load %arg14[%680, %c0_158] : memref<64x256xf32, #tpu.memory_space<vmem>>, vector<8x128xf32>
      %682 = vector.extract_strided_slice %679 {offsets = [0, 0], sizes = [8, 128], strides = [1, 1]} : vector<8x256xf32> to vector<8x128xf32>
      %683 = arith.addf %681, %682 : vector<8x128xf32>
      %684 = arith.index_cast %678 : i32 to index
      %c128_159 = arith.constant 128 : index
      %685 = vector.load %arg14[%684, %c128_159] : memref<64x256xf32, #tpu.memory_space<vmem>>, vector<8x128xf32>
      %686 = vector.extract_strided_slice %679 {offsets = [0, 128], sizes = [8, 128], strides = [1, 1]} : vector<8x256xf32> to vector<8x128xf32>
      %687 = arith.addf %685, %686 : vector<8x128xf32>
      %688 = vector.extract_strided_slice %683 {offsets = [0, 0], sizes = [8, 96], strides = [1, 1]} : vector<8x128xf32> to vector<8x96xf32>
      %689 = arith.negf %688 : vector<8x96xf32>
      %690 = math.exp %689 : vector<8x96xf32>
      %cst_160 = arith.constant 1.000000e+00 : f32
      %691 = vector.broadcast %cst_160 : f32 to vector<8x96xf32>
      %692 = arith.addf %691, %690 : vector<8x96xf32>
      %693 = arith.divf %691, %692 : vector<8x96xf32>
      %694 = vector.extract_strided_slice %693 {offsets = [0, 0], sizes = [8, 32], strides = [1, 1]} : vector<8x96xf32> to vector<8x32xf32>
      %695 = vector.extract_strided_slice %693 {offsets = [0, 32], sizes = [8, 32], strides = [1, 1]} : vector<8x96xf32> to vector<8x32xf32>
      %696 = vector.extract_strided_slice %693 {offsets = [0, 64], sizes = [8, 32], strides = [1, 1]} : vector<8x96xf32> to vector<8x32xf32>
      %697 = vector.extract_strided_slice %683 {offsets = [0, 96], sizes = [8, 32], strides = [1, 1]} : vector<8x128xf32> to vector<8x32xf32>
      %698 = math.tanh %697 : vector<8x32xf32>
      %699 = arith.mulf %695, %654 : vector<8x32xf32>
      %700 = arith.mulf %694, %698 : vector<8x32xf32>
      %701 = arith.addf %699, %700 : vector<8x32xf32>
      %702 = math.tanh %701 : vector<8x32xf32>
      %703 = arith.mulf %696, %702 : vector<8x32xf32>
      %704 = vector.extract_strided_slice %687 {offsets = [0, 0], sizes = [8, 96], strides = [1, 1]} : vector<8x128xf32> to vector<8x96xf32>
      %705 = arith.negf %704 : vector<8x96xf32>
      %706 = math.exp %705 : vector<8x96xf32>
      %cst_161 = arith.constant 1.000000e+00 : f32
      %707 = vector.broadcast %cst_161 : f32 to vector<8x96xf32>
      %708 = arith.addf %707, %706 : vector<8x96xf32>
      %709 = arith.divf %707, %708 : vector<8x96xf32>
      %710 = vector.extract_strided_slice %709 {offsets = [0, 0], sizes = [8, 32], strides = [1, 1]} : vector<8x96xf32> to vector<8x32xf32>
      %711 = vector.extract_strided_slice %709 {offsets = [0, 32], sizes = [8, 32], strides = [1, 1]} : vector<8x96xf32> to vector<8x32xf32>
      %712 = vector.extract_strided_slice %709 {offsets = [0, 64], sizes = [8, 32], strides = [1, 1]} : vector<8x96xf32> to vector<8x32xf32>
      %713 = vector.extract_strided_slice %687 {offsets = [0, 96], sizes = [8, 32], strides = [1, 1]} : vector<8x128xf32> to vector<8x32xf32>
      %714 = math.tanh %713 : vector<8x32xf32>
      %715 = arith.mulf %711, %670 : vector<8x32xf32>
      %716 = arith.mulf %710, %714 : vector<8x32xf32>
      %717 = arith.addf %715, %716 : vector<8x32xf32>
      %718 = math.tanh %717 : vector<8x32xf32>
      %719 = arith.mulf %712, %718 : vector<8x32xf32>
      %720 = tpu.concatenate %703, %719 in 1 : vector<8x32xf32>, vector<8x32xf32> -> vector<8x64xf32>
      %c6_i32_162 = arith.constant 6 : i32
      %c8_i32_163 = arith.constant 8 : i32
      %721 = arith.muli %c6_i32_162, %c8_i32_163 : i32
      %722 = tpu.assume_multiple %721, 8 : i32
      %c7_i32_164 = arith.constant 7 : i32
      %723 = arith.subi %c7_i32_164, %c6_i32_162 : i32
      %c8_i32_165 = arith.constant 8 : i32
      %724 = arith.muli %723, %c8_i32_165 : i32
      %725 = tpu.assume_multiple %724, 8 : i32
      %cst_166 = arith.constant dense<0.000000e+00> : vector<8x256xf32>
      %726 = tpu.matmul %720, %15, %cst_166 {dimension_numbers = #tpu.dot_dimension_numbers<[1], [0], [0], [1], [0, 0, 1, 1], [], []>} : vector<8x64xf32>, vector<64x256xf32>, vector<8x256xf32> -> vector<8x256xf32>
      %727 = arith.index_cast %722 : i32 to index
      %c0_167 = arith.constant 0 : index
      %728 = vector.load %arg14[%727, %c0_167] : memref<64x256xf32, #tpu.memory_space<vmem>>, vector<8x128xf32>
      %729 = vector.extract_strided_slice %726 {offsets = [0, 0], sizes = [8, 128], strides = [1, 1]} : vector<8x256xf32> to vector<8x128xf32>
      %730 = arith.addf %728, %729 : vector<8x128xf32>
      %731 = arith.index_cast %725 : i32 to index
      %c128_168 = arith.constant 128 : index
      %732 = vector.load %arg14[%731, %c128_168] : memref<64x256xf32, #tpu.memory_space<vmem>>, vector<8x128xf32>
      %733 = vector.extract_strided_slice %726 {offsets = [0, 128], sizes = [8, 128], strides = [1, 1]} : vector<8x256xf32> to vector<8x128xf32>
      %734 = arith.addf %732, %733 : vector<8x128xf32>
      %735 = vector.extract_strided_slice %730 {offsets = [0, 0], sizes = [8, 96], strides = [1, 1]} : vector<8x128xf32> to vector<8x96xf32>
      %736 = arith.negf %735 : vector<8x96xf32>
      %737 = math.exp %736 : vector<8x96xf32>
      %cst_169 = arith.constant 1.000000e+00 : f32
      %738 = vector.broadcast %cst_169 : f32 to vector<8x96xf32>
      %739 = arith.addf %738, %737 : vector<8x96xf32>
      %740 = arith.divf %738, %739 : vector<8x96xf32>
      %741 = vector.extract_strided_slice %740 {offsets = [0, 0], sizes = [8, 32], strides = [1, 1]} : vector<8x96xf32> to vector<8x32xf32>
      %742 = vector.extract_strided_slice %740 {offsets = [0, 32], sizes = [8, 32], strides = [1, 1]} : vector<8x96xf32> to vector<8x32xf32>
      %743 = vector.extract_strided_slice %740 {offsets = [0, 64], sizes = [8, 32], strides = [1, 1]} : vector<8x96xf32> to vector<8x32xf32>
      %744 = vector.extract_strided_slice %730 {offsets = [0, 96], sizes = [8, 32], strides = [1, 1]} : vector<8x128xf32> to vector<8x32xf32>
      %745 = math.tanh %744 : vector<8x32xf32>
      %746 = arith.mulf %742, %701 : vector<8x32xf32>
      %747 = arith.mulf %741, %745 : vector<8x32xf32>
      %748 = arith.addf %746, %747 : vector<8x32xf32>
      %749 = math.tanh %748 : vector<8x32xf32>
      %750 = arith.mulf %743, %749 : vector<8x32xf32>
      %751 = vector.extract_strided_slice %734 {offsets = [0, 0], sizes = [8, 96], strides = [1, 1]} : vector<8x128xf32> to vector<8x96xf32>
      %752 = arith.negf %751 : vector<8x96xf32>
      %753 = math.exp %752 : vector<8x96xf32>
      %cst_170 = arith.constant 1.000000e+00 : f32
      %754 = vector.broadcast %cst_170 : f32 to vector<8x96xf32>
      %755 = arith.addf %754, %753 : vector<8x96xf32>
      %756 = arith.divf %754, %755 : vector<8x96xf32>
      %757 = vector.extract_strided_slice %756 {offsets = [0, 0], sizes = [8, 32], strides = [1, 1]} : vector<8x96xf32> to vector<8x32xf32>
      %758 = vector.extract_strided_slice %756 {offsets = [0, 32], sizes = [8, 32], strides = [1, 1]} : vector<8x96xf32> to vector<8x32xf32>
      %759 = vector.extract_strided_slice %756 {offsets = [0, 64], sizes = [8, 32], strides = [1, 1]} : vector<8x96xf32> to vector<8x32xf32>
      %760 = vector.extract_strided_slice %734 {offsets = [0, 96], sizes = [8, 32], strides = [1, 1]} : vector<8x128xf32> to vector<8x32xf32>
      %761 = math.tanh %760 : vector<8x32xf32>
      %762 = arith.mulf %758, %717 : vector<8x32xf32>
      %763 = arith.mulf %757, %761 : vector<8x32xf32>
      %764 = arith.addf %762, %763 : vector<8x32xf32>
      %765 = math.tanh %764 : vector<8x32xf32>
      %766 = arith.mulf %759, %765 : vector<8x32xf32>
      %767 = tpu.concatenate %750, %766 in 1 : vector<8x32xf32>, vector<8x32xf32> -> vector<8x64xf32>
      %c7_i32_171 = arith.constant 7 : i32
      %c8_i32_172 = arith.constant 8 : i32
      %768 = arith.muli %c7_i32_171, %c8_i32_172 : i32
      %769 = tpu.assume_multiple %768, 8 : i32
      %c7_i32_173 = arith.constant 7 : i32
      %770 = arith.subi %c7_i32_173, %c7_i32_171 : i32
      %c8_i32_174 = arith.constant 8 : i32
      %771 = arith.muli %770, %c8_i32_174 : i32
      %772 = tpu.assume_multiple %771, 8 : i32
      %cst_175 = arith.constant dense<0.000000e+00> : vector<8x256xf32>
      %773 = tpu.matmul %767, %15, %cst_175 {dimension_numbers = #tpu.dot_dimension_numbers<[1], [0], [0], [1], [0, 0, 1, 1], [], []>} : vector<8x64xf32>, vector<64x256xf32>, vector<8x256xf32> -> vector<8x256xf32>
      %774 = arith.index_cast %769 : i32 to index
      %c0_176 = arith.constant 0 : index
      %775 = vector.load %arg14[%774, %c0_176] : memref<64x256xf32, #tpu.memory_space<vmem>>, vector<8x128xf32>
      %776 = vector.extract_strided_slice %773 {offsets = [0, 0], sizes = [8, 128], strides = [1, 1]} : vector<8x256xf32> to vector<8x128xf32>
      %777 = arith.addf %775, %776 : vector<8x128xf32>
      %778 = arith.index_cast %772 : i32 to index
      %c128_177 = arith.constant 128 : index
      %779 = vector.load %arg14[%778, %c128_177] : memref<64x256xf32, #tpu.memory_space<vmem>>, vector<8x128xf32>
      %780 = vector.extract_strided_slice %773 {offsets = [0, 128], sizes = [8, 128], strides = [1, 1]} : vector<8x256xf32> to vector<8x128xf32>
      %781 = arith.addf %779, %780 : vector<8x128xf32>
      %782 = vector.extract_strided_slice %777 {offsets = [0, 0], sizes = [8, 96], strides = [1, 1]} : vector<8x128xf32> to vector<8x96xf32>
      %783 = arith.negf %782 : vector<8x96xf32>
      %784 = math.exp %783 : vector<8x96xf32>
      %cst_178 = arith.constant 1.000000e+00 : f32
      %785 = vector.broadcast %cst_178 : f32 to vector<8x96xf32>
      %786 = arith.addf %785, %784 : vector<8x96xf32>
      %787 = arith.divf %785, %786 : vector<8x96xf32>
      %788 = vector.extract_strided_slice %787 {offsets = [0, 0], sizes = [8, 32], strides = [1, 1]} : vector<8x96xf32> to vector<8x32xf32>
      %789 = vector.extract_strided_slice %787 {offsets = [0, 32], sizes = [8, 32], strides = [1, 1]} : vector<8x96xf32> to vector<8x32xf32>
      %790 = vector.extract_strided_slice %787 {offsets = [0, 64], sizes = [8, 32], strides = [1, 1]} : vector<8x96xf32> to vector<8x32xf32>
      %791 = vector.extract_strided_slice %777 {offsets = [0, 96], sizes = [8, 32], strides = [1, 1]} : vector<8x128xf32> to vector<8x32xf32>
      %792 = math.tanh %791 : vector<8x32xf32>
      %793 = arith.mulf %789, %748 : vector<8x32xf32>
      %794 = arith.mulf %788, %792 : vector<8x32xf32>
      %795 = arith.addf %793, %794 : vector<8x32xf32>
      %796 = math.tanh %795 : vector<8x32xf32>
      %797 = arith.mulf %790, %796 : vector<8x32xf32>
      %798 = vector.extract_strided_slice %781 {offsets = [0, 0], sizes = [8, 96], strides = [1, 1]} : vector<8x128xf32> to vector<8x96xf32>
      %799 = arith.negf %798 : vector<8x96xf32>
      %800 = math.exp %799 : vector<8x96xf32>
      %cst_179 = arith.constant 1.000000e+00 : f32
      %801 = vector.broadcast %cst_179 : f32 to vector<8x96xf32>
      %802 = arith.addf %801, %800 : vector<8x96xf32>
      %803 = arith.divf %801, %802 : vector<8x96xf32>
      %804 = vector.extract_strided_slice %803 {offsets = [0, 0], sizes = [8, 32], strides = [1, 1]} : vector<8x96xf32> to vector<8x32xf32>
      %805 = vector.extract_strided_slice %803 {offsets = [0, 32], sizes = [8, 32], strides = [1, 1]} : vector<8x96xf32> to vector<8x32xf32>
      %806 = vector.extract_strided_slice %803 {offsets = [0, 64], sizes = [8, 32], strides = [1, 1]} : vector<8x96xf32> to vector<8x32xf32>
      %807 = vector.extract_strided_slice %781 {offsets = [0, 96], sizes = [8, 32], strides = [1, 1]} : vector<8x128xf32> to vector<8x32xf32>
      %808 = math.tanh %807 : vector<8x32xf32>
      %809 = arith.mulf %805, %764 : vector<8x32xf32>
      %810 = arith.mulf %804, %808 : vector<8x32xf32>
      %811 = arith.addf %809, %810 : vector<8x32xf32>
      %812 = math.tanh %811 : vector<8x32xf32>
      %813 = arith.mulf %806, %812 : vector<8x32xf32>
      %814 = tpu.concatenate %797, %813 in 1 : vector<8x32xf32>, vector<8x32xf32> -> vector<8x64xf32>
      %c8_i32_180 = arith.constant 8 : i32
      %815 = vector.extract_strided_slice %814 {offsets = [0, 0], sizes = [8, 32], strides = [1, 1]} : vector<8x64xf32> to vector<8x32xf32>
      %c0_181 = arith.constant 0 : index
      %c0_182 = arith.constant 0 : index
      %816 = vector.load %arg10[%c0_181, %c0_182] : memref<32x2xf32, #tpu.memory_space<vmem>>, vector<32x2xf32>
      %cst_183 = arith.constant dense<0.000000e+00> : vector<8x2xf32>
      %817 = tpu.matmul %815, %816, %cst_183 {dimension_numbers = #tpu.dot_dimension_numbers<[1], [0], [0], [1], [0, 0, 1, 1], [], []>} : vector<8x32xf32>, vector<32x2xf32>, vector<8x2xf32> -> vector<8x2xf32>
      %818 = vector.extract_strided_slice %814 {offsets = [0, 32], sizes = [8, 32], strides = [1, 1]} : vector<8x64xf32> to vector<8x32xf32>
      %c0_184 = arith.constant 0 : index
      %c0_185 = arith.constant 0 : index
      %819 = vector.load %arg11[%c0_184, %c0_185] : memref<32x2xf32, #tpu.memory_space<vmem>>, vector<32x2xf32>
      %cst_186 = arith.constant dense<0.000000e+00> : vector<8x2xf32>
      %820 = tpu.matmul %818, %819, %cst_186 {dimension_numbers = #tpu.dot_dimension_numbers<[1], [0], [0], [1], [0, 0, 1, 1], [], []>} : vector<8x32xf32>, vector<32x2xf32>, vector<8x2xf32> -> vector<8x2xf32>
      %821 = arith.addf %817, %820 : vector<8x2xf32>
      %c0_187 = arith.constant 0 : index
      %c0_188 = arith.constant 0 : index
      %822 = vector.load %arg12[%c0_187, %c0_188] : memref<1x2xf32, #tpu.memory_space<vmem>>, vector<1x2xf32>
      %823 = vector.broadcast %822 : vector<1x2xf32> to vector<8x2xf32>
      %824 = arith.addf %821, %823 : vector<8x2xf32>
      %c0_189 = arith.constant 0 : index
      %c0_190 = arith.constant 0 : index
      %c0_191 = arith.constant 0 : index
      %825 = vector.load %arg13[%c0_189, %c0_190, %c0_191] : memref<1x8x2xf32, #tpu.memory_space<vmem>>, vector<1x8x2xf32>
      %826 = vector.shape_cast %825 : vector<1x8x2xf32> to vector<8x2xf32>
      %827 = vector.shape_cast %824 : vector<8x2xf32> to vector<1x8x2xf32>
      tpu.vector_store %arg13[%c0_189, %c0_190, %c0_191], %827 {strides = array<i32>} : memref<1x8x2xf32, #tpu.memory_space<vmem>>, vector<1x8x2xf32>,
    } else {
    }
    return
  }
  func.func @transform_0(%arg0: i32, %arg1: i32) -> (i32, i32, i32) {
    %c0_i32 = arith.constant 0 : i32
    %c0_i32_0 = arith.constant 0 : i32
    return %arg0, %arg1, %c0_i32 : i32, i32, i32
  }
  func.func @transform_1(%arg0: i32, %arg1: i32) -> (i32, i32) {
    %c0_i32 = arith.constant 0 : i32
    %c0_i32_0 = arith.constant 0 : i32
    %c0_i32_1 = arith.constant 0 : i32
    return %c0_i32, %c0_i32_0 : i32, i32
  }
  func.func @transform_2(%arg0: i32, %arg1: i32) -> (i32, i32) {
    %c0_i32 = arith.constant 0 : i32
    %c0_i32_0 = arith.constant 0 : i32
    %c0_i32_1 = arith.constant 0 : i32
    return %c0_i32, %c0_i32_0 : i32, i32
  }
  func.func @transform_3(%arg0: i32, %arg1: i32) -> (i32, i32) {
    %c0_i32 = arith.constant 0 : i32
    %c0_i32_0 = arith.constant 0 : i32
    %c0_i32_1 = arith.constant 0 : i32
    return %c0_i32, %c0_i32_0 : i32, i32
  }
  func.func @transform_4(%arg0: i32, %arg1: i32) -> (i32, i32) {
    %c0_i32 = arith.constant 0 : i32
    %c0_i32_0 = arith.constant 0 : i32
    %c0_i32_1 = arith.constant 0 : i32
    return %c0_i32, %c0_i32_0 : i32, i32
  }
  func.func @transform_5(%arg0: i32, %arg1: i32) -> (i32, i32) {
    %c0_i32 = arith.constant 0 : i32
    %c0_i32_0 = arith.constant 0 : i32
    %c0_i32_1 = arith.constant 0 : i32
    return %c0_i32, %c0_i32_0 : i32, i32
  }
  func.func @transform_6(%arg0: i32, %arg1: i32) -> (i32, i32) {
    %c0_i32 = arith.constant 0 : i32
    %c0_i32_0 = arith.constant 0 : i32
    %c0_i32_1 = arith.constant 0 : i32
    return %c0_i32, %c0_i32_0 : i32, i32
  }
  func.func @transform_7(%arg0: i32, %arg1: i32) -> (i32, i32) {
    %c0_i32 = arith.constant 0 : i32
    %c0_i32_0 = arith.constant 0 : i32
    %c0_i32_1 = arith.constant 0 : i32
    return %c0_i32, %c0_i32_0 : i32, i32
  }
  func.func @transform_8(%arg0: i32, %arg1: i32) -> (i32, i32) {
    %c0_i32 = arith.constant 0 : i32
    %c0_i32_0 = arith.constant 0 : i32
    %c0_i32_1 = arith.constant 0 : i32
    return %c0_i32, %c0_i32_0 : i32, i32
  }
  func.func @transform_9(%arg0: i32, %arg1: i32) -> (i32, i32) {
    %c0_i32 = arith.constant 0 : i32
    %c0_i32_0 = arith.constant 0 : i32
    %c0_i32_1 = arith.constant 0 : i32
    return %c0_i32, %c0_i32_0 : i32, i32
  }
  func.func @transform_10(%arg0: i32, %arg1: i32) -> (i32, i32) {
    %c0_i32 = arith.constant 0 : i32
    %c0_i32_0 = arith.constant 0 : i32
    %c0_i32_1 = arith.constant 0 : i32
    return %c0_i32, %c0_i32_0 : i32, i32
  }
  func.func @transform_11(%arg0: i32, %arg1: i32) -> (i32, i32, i32) {
    %c0_i32 = arith.constant 0 : i32
    %c0_i32_0 = arith.constant 0 : i32
    %c0_i32_1 = arith.constant 0 : i32
    return %arg0, %c0_i32, %c0_i32_0 : i32, i32, i32
  }
}

</mosaic_0001>

<llo_original>
// kernel: tpu_custom_call.1
$region0: #{tpu_custom_call.1}
  #allocation0 [shape = 'u32[]', space=smem, size = 0x4, offset = 0x4, fixed_abs, tag = 'smem constant byte address 0x4 - core index']
  #allocation1 [shape = 'u32[72,128]{1,0:T(1,128)}', space=vmem, size = 0x9000, scoped, tag = 'internal scratch']
  #allocation2 [shape = 'f32[64,256]{1,0:T(8,128)}', space=vmem, size = 0x10000, scoped, tag = 'scratch operand']
  #allocation3 [shape = 'f32[64,32]{1,0:T(8,128)}', space=vmem, size = 0x8000, scoped, tag = 'scratch operand']
  #allocation4 [shape = 'f32[64,32]{1,0:T(8,128)}', space=vmem, size = 0x8000, scoped, tag = 'scratch operand']
  %s0 = inlined_call_operand.vmem [shape: bf16[1,64,32], index: 0, kind: input, shape index: {}]
  %s1 = inlined_call_operand.vmem [shape: bf16[32,256], index: 1, kind: input, shape index: {}]
  %s2 = inlined_call_operand.vmem [shape: f32[1,256], index: 2, kind: input, shape index: {}]
  %s3 = inlined_call_operand.hbm [shape: f32[64,256], index: 3, kind: input, shape index: {}]
  %s4 = inlined_call_operand.vmem [shape: bf16[32,256], index: 4, kind: input, shape index: {}]
  %s5 = inlined_call_operand.vmem [shape: bf16[32,256], index: 5, kind: input, shape index: {}]
  %s6 = inlined_call_operand.vmem [shape: f32[1,256], index: 6, kind: input, shape index: {}]
  %s7 = inlined_call_operand.hbm [shape: f32[64,256], index: 7, kind: input, shape index: {}]
  %s8 = inlined_call_operand.vmem [shape: f32[32,2], index: 8, kind: input, shape index: {}]
  %s9 = inlined_call_operand.vmem [shape: f32[32,2], index: 9, kind: input, shape index: {}]
  %s10 = inlined_call_operand.vmem [shape: f32[1,2], index: 10, kind: input, shape index: {}]
  %s11 = inlined_call_operand.vmem [shape: f32[1,8,2], index: 11, kind: output, shape index: {}]
  %s12 = sld [smem:[#allocation0]]
  $region89: #{tpu_custom_call.1} parent=0
    _
  %s14 = ssub.s32 1, %s12
  %s15 = scalar_select 0, %s14, %s12
  $region1: #{tpu_custom_call.1} parent=0
    #allocation5 [shape = 'u8[65536]{0}', space=vmem, size = 0x10000, scoped, tag = 'input window, operand 3, single buffered']
    #allocation6 [shape = 's32[2]{0}', space=sflag, size = 0x8, scoped, tag = 'scoped memory for tpu_custom_call.1']
    #allocation7 [shape = 'u8[65536]{0}', space=vmem, size = 0x10000, scoped, tag = 'input window, operand 7, single buffered']
    #allocation8 [shape = 's32[1]{0}', space=sflag, size = 0x4, scoped, tag = 'scoped memory for tpu_custom_call.1']
    %16 = vsyncpa [#allocation6], 0
    %17 = vsyncpa [#allocation8], 0
    loop: start=0, step=1, limit=4
    $region2: #{tpu_custom_call.1} parent=1 // loop_pre_header
      _
    $region3: #{tpu_custom_call.1} parent=1 // loop_header
      %s19 = sphi 0, %s23
      %p20 = scmp.ge.s32.totalorder %s19, 4
      %s26 = sphi 0, %s38
      %s27 = sphi 0, %s34
      %s28 = sphi 0, %s26
      %s29 = sphi 0, %s27
      %s30 = sphi 0, %s28
      %s31 = sphi 0, %s29
      %s43 = sphi 0, %s45
      %s46 = sphi 0, %s43
      %s47 = sphi 0, %s46
      %s63 = sphi 0, %s47
      %s67 = sphi 0, %s67
      %s69 = sphi 0, %s67
      %s70 = sphi 0, %s69
      %s84 = sphi 0, %s70
      %s88 = sphi 0, %s88
      %s90 = sphi 0, %s88
      %s91 = sphi 0, %s90
      %s105 = sphi 0, %s91
      %s109 = sphi 0, %s109
      %s111 = sphi 0, %s109
      %s112 = sphi 0, %s111
      %s126 = sphi 0, %s112
      %s130 = sphi 0, %s130
      %s132 = sphi 0, %s130
      %s133 = sphi 0, %s132
      %s147 = sphi 0, %s133
      %s151 = sphi 0, %s151
      %s153 = sphi 0, %s151
      %s154 = sphi 0, %s153
      %s168 = sphi 0, %s154
      %s172 = sphi 0, %s172
      %s174 = sphi 0, %s172
      %s175 = sphi 0, %s174
      %s189 = sphi 0, %s175
      %s193 = sphi 0, %s193
      %s195 = sphi 0, %s193
      %s196 = sphi 0, %s195
      %s210 = sphi 0, %s196
      %s214 = sphi 0, %s214
      %s216 = sphi 0, %s214
      %s217 = sphi 0, %s216
      %s231 = sphi 0, %s217
      %s235 = sphi 0, %s235
      %s237 = sphi 0, %s235
      %s238 = sphi 0, %s237
      %s252 = sphi 0, %s238
      %s256 = sphi 0, %s256
      %s258 = sphi 0, %s256
      %s259 = sphi 0, %s258
      %s273 = sphi 0, %s259
      %s279 = sphi 0, %s281
      %s282 = sphi 0, %s279
      %s283 = sphi 0, %s282
      %s299 = sphi 0, %s283
    $region4: #{tpu_custom_call.1} parent=1 // loop_header_branch
      %22 = sbr.rel (%p20) target = $region8
    $region5: #{tpu_custom_call.1} parent=1 // loop_body
      %s24 = ssub.s32 %s19, 1
      %s25 = ssub.s32 %s19, 2
      %s32 = sadd.s32 1, %s27
      %p33 = scmp.ge.s32.totalorder %s32, 2
      %s34 = scalar_select %p33, 0, %s32
      %s35 = sadd.s32 1, %s26
      %s36 = scalar_select %p33, %s35, %s26
      %p37 = scmp.ge.s32.totalorder %s36, 1
      %s38 = scalar_select %p37, 0, %s36
      %s39 = ssub.s32 %s26, %s38
      %s40 = ssub.s32 %s27, %s34
      %s41 = sor.u32 %s39, %s40
      %p42 = scmp.eq.s32.totalorder %s41, 0
      %s44 = sadd.s32 %s43, 1
      %s45 = scalar_select %p42, %s43, %s44
      %p48 = pneg %p42
      %p49 = scmp.eq.s32.totalorder %s19, 1
      %p50 = por %p48, %p49
      %p51 = scmp.ne.s32.totalorder %s43, %s46
      %p52 = scmp.eq.s32.totalorder %s19, 0
      %p53 = por %p51, %p52
      %p54 = scmp.ne.s32.totalorder %s43, %s46
      %p55 = scmp.eq.s32.totalorder %s24, 1
      %p56 = por %p54, %p55
      %p57 = scmp.ne.s32.totalorder %s46, %s47
      %p58 = scmp.eq.s32.totalorder %s24, 0
      %p59 = por %p57, %p58
      %p60 = scmp.ne.s32.totalorder %s46, %s47
      %p61 = scmp.eq.s32.totalorder %s25, 1
      %p62 = por %p60, %p61
      %p64 = scmp.ne.s32.totalorder %s47, %s63
      %p65 = scmp.eq.s32.totalorder %s25, 0
      %p66 = por %p64, %p65
      %s68 = sadd.s32 %s67, 1
      %p71 = scmp.eq.s32.totalorder %s19, 1
      %p72 = scmp.ne.s32.totalorder %s67, %s69
      %p73 = scmp.eq.s32.totalorder %s19, 0
      %p74 = por %p72, %p73
      %p75 = scmp.ne.s32.totalorder %s67, %s69
      %p76 = scmp.eq.s32.totalorder %s24, 1
      %p77 = por %p75, %p76
      %p78 = scmp.ne.s32.totalorder %s69, %s70
      %p79 = scmp.eq.s32.totalorder %s24, 0
      %p80 = por %p78, %p79
      %p81 = scmp.ne.s32.totalorder %s69, %s70
      %p82 = scmp.eq.s32.totalorder %s25, 1
      %p83 = por %p81, %p82
      %p85 = scmp.ne.s32.totalorder %s70, %s84
      %p86 = scmp.eq.s32.totalorder %s25, 0
      %p87 = por %p85, %p86
      %s89 = sadd.s32 %s88, 1
      %p92 = scmp.eq.s32.totalorder %s19, 1
      %p93 = scmp.ne.s32.totalorder %s88, %s90
      %p94 = scmp.eq.s32.totalorder %s19, 0
      %p95 = por %p93, %p94
      %p96 = scmp.ne.s32.totalorder %s88, %s90
      %p97 = scmp.eq.s32.totalorder %s24, 1
      %p98 = por %p96, %p97
      %p99 = scmp.ne.s32.totalorder %s90, %s91
      %p100 = scmp.eq.s32.totalorder %s24, 0
      %p101 = por %p99, %p100
      %p102 = scmp.ne.s32.totalorder %s90, %s91
      %p103 = scmp.eq.s32.totalorder %s25, 1
      %p104 = por %p102, %p103
      %p106 = scmp.ne.s32.totalorder %s91, %s105
      %p107 = scmp.eq.s32.totalorder %s25, 0
      %p108 = por %p106, %p107
      %s110 = sadd.s32 %s109, 1
      %p113 = scmp.eq.s32.totalorder %s19, 1
      %p114 = scmp.ne.s32.totalorder %s109, %s111
      %p115 = scmp.eq.s32.totalorder %s19, 0
      %p116 = por %p114, %p115
      %p117 = scmp.ne.s32.totalorder %s109, %s111
      %p118 = scmp.eq.s32.totalorder %s24, 1
      %p119 = por %p117, %p118
      %p120 = scmp.ne.s32.totalorder %s111, %s112
      %p121 = scmp.eq.s32.totalorder %s24, 0
      %p122 = por %p120, %p121
      %p123 = scmp.ne.s32.totalorder %s111, %s112
      %p124 = scmp.eq.s32.totalorder %s25, 1
      %p125 = por %p123, %p124
      %p127 = scmp.ne.s32.totalorder %s112, %s126
      %p128 = scmp.eq.s32.totalorder %s25, 0
      %p129 = por %p127, %p128
      %s131 = sadd.s32 %s130, 1
      %p134 = scmp.eq.s32.totalorder %s19, 1
      %p135 = scmp.ne.s32.totalorder %s130, %s132
      %p136 = scmp.eq.s32.totalorder %s19, 0
      %p137 = por %p135, %p136
      %p138 = scmp.ne.s32.totalorder %s130, %s132
      %p139 = scmp.eq.s32.totalorder %s24, 1
      %p140 = por %p138, %p139
      %p141 = scmp.ne.s32.totalorder %s132, %s133
      %p142 = scmp.eq.s32.totalorder %s24, 0
      %p143 = por %p141, %p142
      %p144 = scmp.ne.s32.totalorder %s132, %s133
      %p145 = scmp.eq.s32.totalorder %s25, 1
      %p146 = por %p144, %p145
      %p148 = scmp.ne.s32.totalorder %s133, %s147
      %p149 = scmp.eq.s32.totalorder %s25, 0
      %p150 = por %p148, %p149
      %s152 = sadd.s32 %s151, 1
      %p155 = scmp.eq.s32.totalorder %s19, 1
      %p156 = scmp.ne.s32.totalorder %s151, %s153
      %p157 = scmp.eq.s32.totalorder %s19, 0
      %p158 = por %p156, %p157
      %p159 = scmp.ne.s32.totalorder %s151, %s153
      %p160 = scmp.eq.s32.totalorder %s24, 1
      %p161 = por %p159, %p160
      %p162 = scmp.ne.s32.totalorder %s153, %s154
      %p163 = scmp.eq.s32.totalorder %s24, 0
      %p164 = por %p162, %p163
      %p165 = scmp.ne.s32.totalorder %s153, %s154
      %p166 = scmp.eq.s32.totalorder %s25, 1
      %p167 = por %p165, %p166
      %p169 = scmp.ne.s32.totalorder %s154, %s168
      %p170 = scmp.eq.s32.totalorder %s25, 0
      %p171 = por %p169, %p170
      %s173 = sadd.s32 %s172, 1
      %p176 = scmp.eq.s32.totalorder %s19, 1
      %p177 = scmp.ne.s32.totalorder %s172, %s174
      %p178 = scmp.eq.s32.totalorder %s19, 0
      %p179 = por %p177, %p178
      %p180 = scmp.ne.s32.totalorder %s172, %s174
      %p181 = scmp.eq.s32.totalorder %s24, 1
      %p182 = por %p180, %p181
      %p183 = scmp.ne.s32.totalorder %s174, %s175
      %p184 = scmp.eq.s32.totalorder %s24, 0
      %p185 = por %p183, %p184
      %p186 = scmp.ne.s32.totalorder %s174, %s175
      %p187 = scmp.eq.s32.totalorder %s25, 1
      %p188 = por %p186, %p187
      %p190 = scmp.ne.s32.totalorder %s175, %s189
      %p191 = scmp.eq.s32.totalorder %s25, 0
      %p192 = por %p190, %p191
      %s194 = sadd.s32 %s193, 1
      %p197 = scmp.eq.s32.totalorder %s19, 1
      %p198 = scmp.ne.s32.totalorder %s193, %s195
      %p199 = scmp.eq.s32.totalorder %s19, 0
      %p200 = por %p198, %p199
      %p201 = scmp.ne.s32.totalorder %s193, %s195
      %p202 = scmp.eq.s32.totalorder %s24, 1
      %p203 = por %p201, %p202
      %p204 = scmp.ne.s32.totalorder %s195, %s196
      %p205 = scmp.eq.s32.totalorder %s24, 0
      %p206 = por %p204, %p205
      %p207 = scmp.ne.s32.totalorder %s195, %s196
      %p208 = scmp.eq.s32.totalorder %s25, 1
      %p209 = por %p207, %p208
      %p211 = scmp.ne.s32.totalorder %s196, %s210
      %p212 = scmp.eq.s32.totalorder %s25, 0
      %p213 = por %p211, %p212
      %s215 = sadd.s32 %s214, 1
      %p218 = scmp.eq.s32.totalorder %s19, 1
      %p219 = scmp.ne.s32.totalorder %s214, %s216
      %p220 = scmp.eq.s32.totalorder %s19, 0
      %p221 = por %p219, %p220
      %p222 = scmp.ne.s32.totalorder %s214, %s216
      %p223 = scmp.eq.s32.totalorder %s24, 1
      %p224 = por %p222, %p223
      %p225 = scmp.ne.s32.totalorder %s216, %s217
      %p226 = scmp.eq.s32.totalorder %s24, 0
      %p227 = por %p225, %p226
      %p228 = scmp.ne.s32.totalorder %s216, %s217
      %p229 = scmp.eq.s32.totalorder %s25, 1
      %p230 = por %p228, %p229
      %p232 = scmp.ne.s32.totalorder %s217, %s231
      %p233 = scmp.eq.s32.totalorder %s25, 0
      %p234 = por %p232, %p233
      %s236 = sadd.s32 %s235, 1
      %p239 = scmp.eq.s32.totalorder %s19, 1
      %p240 = scmp.ne.s32.totalorder %s235, %s237
      %p241 = scmp.eq.s32.totalorder %s19, 0
      %p242 = por %p240, %p241
      %p243 = scmp.ne.s32.totalorder %s235, %s237
      %p244 = scmp.eq.s32.totalorder %s24, 1
      %p245 = por %p243, %p244
      %p246 = scmp.ne.s32.totalorder %s237, %s238
      %p247 = scmp.eq.s32.totalorder %s24, 0
      %p248 = por %p246, %p247
      %p249 = scmp.ne.s32.totalorder %s237, %s238
      %p250 = scmp.eq.s32.totalorder %s25, 1
      %p251 = por %p249, %p250
      %p253 = scmp.ne.s32.totalorder %s238, %s252
      %p254 = scmp.eq.s32.totalorder %s25, 0
      %p255 = por %p253, %p254
      %s257 = sadd.s32 %s256, 1
      %p260 = scmp.eq.s32.totalorder %s19, 1
      %p261 = scmp.ne.s32.totalorder %s256, %s258
      %p262 = scmp.eq.s32.totalorder %s19, 0
      %p263 = por %p261, %p262
      %p264 = scmp.ne.s32.totalorder %s256, %s258
      %p265 = scmp.eq.s32.totalorder %s24, 1
      %p266 = por %p264, %p265
      %p267 = scmp.ne.s32.totalorder %s258, %s259
      %p268 = scmp.eq.s32.totalorder %s24, 0
      %p269 = por %p267, %p268
      %p270 = scmp.ne.s32.totalorder %s258, %s259
      %p271 = scmp.eq.s32.totalorder %s25, 1
      %p272 = por %p270, %p271
      %p274 = scmp.ne.s32.totalorder %s259, %s273
      %p275 = scmp.eq.s32.totalorder %s25, 0
      %p276 = por %p274, %p275
      %s277 = ssub.s32 %s26, %s38
      %p278 = scmp.eq.s32.totalorder %s277, 0
      %s280 = sadd.s32 %s279, 1
      %s281 = scalar_select %p278, %s279, %s280
      %p284 = pneg %p278
      %p285 = scmp.eq.s32.totalorder %s19, 1
      %p286 = por %p284, %p285
      %p287 = scmp.ne.s32.totalorder %s279, %s282
      %p288 = scmp.eq.s32.totalorder %s19, 0
      %p289 = por %p287, %p288
      %p290 = scmp.ne.s32.totalorder %s279, %s282
      %p291 = scmp.eq.s32.totalorder %s24, 1
      %p292 = por %p290, %p291
      %p293 = scmp.ne.s32.totalorder %s282, %s283
      %p294 = scmp.eq.s32.totalorder %s24, 0
      %p295 = por %p293, %p294
      %p296 = scmp.ne.s32.totalorder %s282, %s283
      %p297 = scmp.eq.s32.totalorder %s25, 1
      %p298 = por %p296, %p297
      %p300 = scmp.ne.s32.totalorder %s283, %s299
      %p301 = scmp.eq.s32.totalorder %s25, 0
      %p302 = por %p300, %p301
      %p303 = scmp.le.s32.totalorder 1, %s19
      %p304 = scmp.lt.s32.totalorder %s19, 3
      %p305 = pnand %p303, %p304
      %p306 = pneg %p305
      // Predicated region
      $region9: #{tpu_custom_call.1} parent=5 // pred_check
        _
      $region10: #{tpu_custom_call.1} parent=5 // pred_check_branch
        %308 = sbr.rel (%p305) target = $region12
      $region11: #{tpu_custom_call.1} parent=5 // pred_region
        %s309 = ssub.s32 %s19, 1
        // Predicated region
        $region13: #{tpu_custom_call.1} parent=11 // pred_check
          %p310 = pneg %p80
        $region14: #{tpu_custom_call.1} parent=11 // pred_check_branch
          %312 = sbr.rel (%p310) target = $region16
        $region15: #{tpu_custom_call.1} parent=11 // pred_region
          _
        $region16: #{tpu_custom_call.1} parent=11 // pred_fallthru
          _
        // Predicated region
        $region17: #{tpu_custom_call.1} parent=11 // pred_check
          %p313 = pneg %p101
        $region18: #{tpu_custom_call.1} parent=11 // pred_check_branch
          %315 = sbr.rel (%p313) target = $region20
        $region19: #{tpu_custom_call.1} parent=11 // pred_region
          _
        $region20: #{tpu_custom_call.1} parent=11 // pred_fallthru
          _
        // Predicated region
        $region21: #{tpu_custom_call.1} parent=11 // pred_check
          %p316 = pneg %p122
        $region22: #{tpu_custom_call.1} parent=11 // pred_check_branch
          %318 = sbr.rel (%p316) target = $region24
        $region23: #{tpu_custom_call.1} parent=11 // pred_region
          %320 = vsyncadd [#allocation6], 0
          %s321 = sshll.u32 %s3, 4
          %s322 = int_to_ptr.hbm [resolvable:$true] %s321
          %s323 = sshll.u32 [#allocation5], 4
          %s324 = int_to_ptr.vmem [resolvable:$true] %s323
          %329 = dma.hbm_to_vmem [thread:$0]  %s322, 2048, %s324, [#allocation6], 256, 256, 16
        $region24: #{tpu_custom_call.1} parent=11 // pred_fallthru
          _
        // Predicated region
        $region25: #{tpu_custom_call.1} parent=11 // pred_check
          %p330 = pneg %p143
        $region26: #{tpu_custom_call.1} parent=11 // pred_check_branch
          %332 = sbr.rel (%p330) target = $region28
        $region27: #{tpu_custom_call.1} parent=11 // pred_region
          _
        $region28: #{tpu_custom_call.1} parent=11 // pred_fallthru
          _
        // Predicated region
        $region29: #{tpu_custom_call.1} parent=11 // pred_check
          %p333 = pneg %p164
        $region30: #{tpu_custom_call.1} parent=11 // pred_check_branch
          %335 = sbr.rel (%p333) target = $region32
        $region31: #{tpu_custom_call.1} parent=11 // pred_region
          _
        $region32: #{tpu_custom_call.1} parent=11 // pred_fallthru
          _
        // Predicated region
        $region33: #{tpu_custom_call.1} parent=11 // pred_check
          %p336 = pneg %p185
        $region34: #{tpu_custom_call.1} parent=11 // pred_check_branch
          %338 = sbr.rel (%p336) target = $region36
        $region35: #{tpu_custom_call.1} parent=11 // pred_region
          _
        $region36: #{tpu_custom_call.1} parent=11 // pred_fallthru
          _
        // Predicated region
        $region37: #{tpu_custom_call.1} parent=11 // pred_check
          %p339 = pneg %p206
        $region38: #{tpu_custom_call.1} parent=11 // pred_check_branch
          %341 = sbr.rel (%p339) target = $region40
        $region39: #{tpu_custom_call.1} parent=11 // pred_region
          %343 = vsyncadd [#allocation8], 0
          %s344 = sshll.u32 %s7, 4
          %s345 = int_to_ptr.hbm [resolvable:$true] %s344
          %s346 = sshll.u32 [#allocation7], 4
          %s347 = int_to_ptr.vmem [resolvable:$true] %s346
          %352 = dma.hbm_to_vmem [thread:$0]  %s345, 2048, %s347, [#allocation8], 256, 256, 16
        $region40: #{tpu_custom_call.1} parent=11 // pred_fallthru
          _
        // Predicated region
        $region41: #{tpu_custom_call.1} parent=11 // pred_check
          %p353 = pneg %p227
        $region42: #{tpu_custom_call.1} parent=11 // pred_check_branch
          %355 = sbr.rel (%p353) target = $region44
        $region43: #{tpu_custom_call.1} parent=11 // pred_region
          _
        $region44: #{tpu_custom_call.1} parent=11 // pred_fallthru
          _
        // Predicated region
        $region45: #{tpu_custom_call.1} parent=11 // pred_check
          %p356 = pneg %p248
        $region46: #{tpu_custom_call.1} parent=11 // pred_check_branch
          %358 = sbr.rel (%p356) target = $region48
        $region47: #{tpu_custom_call.1} parent=11 // pred_region
          _
        $region48: #{tpu_custom_call.1} parent=11 // pred_fallthru
          _
        // Predicated region
        $region49: #{tpu_custom_call.1} parent=11 // pred_check
          %p359 = pneg %p269
        $region50: #{tpu_custom_call.1} parent=11 // pred_check_branch
          %361 = sbr.rel (%p359) target = $region52
        $region51: #{tpu_custom_call.1} parent=11 // pred_region
          _
        $region52: #{tpu_custom_call.1} parent=11 // pred_fallthru
          _
      $region12: #{tpu_custom_call.1} parent=5 // pred_fallthru
        _
      %p362 = scmp.lt.s32.totalorder %s19, 2
      // Predicated region
      $region53: #{tpu_custom_call.1} parent=5 // pred_check
        %p363 = pneg %p362
      $region54: #{tpu_custom_call.1} parent=5 // pred_check_branch
        %365 = sbr.rel (%p363) target = $region56
      $region55: #{tpu_custom_call.1} parent=5 // pred_region
        // Predicated region
        $region57: #{tpu_custom_call.1} parent=55 // pred_check
          %p366 = pneg %p53
        $region58: #{tpu_custom_call.1} parent=55 // pred_check_branch
          %368 = sbr.rel (%p366) target = $region60
        $region59: #{tpu_custom_call.1} parent=55 // pred_region
          %s369 = smul.u32 4, %s27
          %p370 = scmp.lt.s32.totalorder %s26, 0
          %s371 = scalar_select %p370, %s26, 0
          %p372 = scmp.lt.s32.totalorder %s369, 7
          %s373 = scalar_select %p372, %s369, 7
          %s374 = smul.addr %s371, 8
          %s375 = sadd.s32 %s373, %s374
          %s376 = smul.addr %s375, 4
          %s377 = scalar_lea.vmem %s0, %s376
          %s378 = smul.u32 4, %s27
        $region60: #{tpu_custom_call.1} parent=55 // pred_fallthru
          _
      $region56: #{tpu_custom_call.1} parent=5 // pred_fallthru
        _
      %p379 = scmp.le.s32.totalorder 1, %s19
      %p380 = scmp.lt.s32.totalorder %s19, 3
      %p381 = pnand %p379, %p380
      %p382 = pneg %p381
      // Predicated region
      $region61: #{tpu_custom_call.1} parent=5 // pred_check
        _
      $region62: #{tpu_custom_call.1} parent=5 // pred_check_branch
        %384 = sbr.rel (%p381) target = $region64
      $region63: #{tpu_custom_call.1} parent=5 // pred_region
        %s385 = ssub.s32 %s19, 1
        // Predicated region
        $region65: #{tpu_custom_call.1} parent=63 // pred_check
          %p386 = pneg %p122
        $region66: #{tpu_custom_call.1} parent=63 // pred_check_branch
          %388 = sbr.rel (%p386) target = $region68
        $region67: #{tpu_custom_call.1} parent=63 // pred_region
          %390 = dma.done [#allocation6], 2048
        $region68: #{tpu_custom_call.1} parent=63 // pred_fallthru
          _
        // Predicated region
        $region69: #{tpu_custom_call.1} parent=63 // pred_check
          %p391 = pneg %p206
        $region70: #{tpu_custom_call.1} parent=63 // pred_check_branch
          %393 = sbr.rel (%p391) target = $region72
        $region71: #{tpu_custom_call.1} parent=63 // pred_region
          %395 = dma.done [#allocation8], 2048
        $region72: #{tpu_custom_call.1} parent=63 // pred_fallthru
          _
        %s396 = smul.u32 4, %s29
        %p397 = scmp.lt.s32.totalorder %s28, 0
        %s398 = scalar_select %p397, %s28, 0
        %p399 = scmp.lt.s32.totalorder %s396, 7
        %s400 = scalar_select %p399, %s396, 7
        %s401 = smul.addr %s398, 8
        %s402 = sadd.s32 %s400, %s401
        %s403 = smul.addr %s402, 4
        %s404 = scalar_lea.vmem %s0, %s403
        %p405 = pneg %p59
        %p406 = pneg %p56
        %p407 = pneg %p80
        %p408 = pneg %p77
        %p409 = pneg %p101
        %p410 = pneg %p98
        %p411 = pneg %p122
        %p412 = pneg %p119
        %p413 = pneg %p143
        %p414 = pneg %p140
        %p415 = pneg %p164
        %p416 = pneg %p161
        %p417 = pneg %p185
        %p418 = pneg %p182
        %p419 = pneg %p206
        %p420 = pneg %p203
        %p421 = pneg %p227
        %p422 = pneg %p224
        %p423 = pneg %p248
        %p424 = pneg %p245
        %p425 = pneg %p269
        %p426 = pneg %p266
        %p427 = pneg %p295
        %p428 = pneg %p292
        %p429 = scmp.lt.s32.totalorder %s28, 0
        %s430 = scalar_select %p429, %s28, 0
        %s431 = smul.addr %s430, 8
        %s432 = scalar_lea.vmem %s11, %s431
        %s433 = smul.u32 4, %s29
        %p434 = scmp.lt.s32.totalorder %s28, 0
        %s435 = scalar_select %p434, %s28, 0
        %p436 = scmp.lt.s32.totalorder %s433, 7
        %s437 = scalar_select %p436, %s433, 7
        %s438 = smul.addr %s435, 8
        %s439 = sadd.s32 %s437, %s438
        %s440 = smul.addr %s439, 4
        %s441 = scalar_lea.vmem %s0, %s440
        %s442 = smul.u32 4, %s29
        %p443 = scmp.lt.s32.totalorder %s28, 0
        %s444 = scalar_select %p443, %s28, 0
        %s445 = smul.addr %s444, 8
        %s446 = scalar_lea.vmem %s11, %s445
        %s448 = smul.u32 %s29, 32
        %v449 = vld [vmem:[%s441] sm:$0xf]
        %v450 = vld [vmem:[%s441 + $0x4] sm:$0xf]
        %v451 = vld [vmem:[%s441 + $0x8] sm:$0xf]
        %v452 = vld [vmem:[%s441 + $0xc] sm:$0xf]
        %v453 = vld [vmem:[%s1] sm:$0xff]
        %v454 = vld [vmem:[%s1 + $0x8] sm:$0xff]
        %v455 = vld [vmem:[%s1 + $0x10] sm:$0xff]
        %v456 = vld [vmem:[%s1 + $0x18] sm:$0xff]
        %v457 = vld [vmem:[%s2] sm:$0x3]
        %v459 = vperm.slane %v457, 0
        %v460 = vperm.slane %v457, 1
        %v467 = vunpack.c.l.b16 %v449
        %v468 = vunpack.c.l.b16 %v450
        %v469 = vunpack.c.l.b16 %v451
        %v470 = vunpack.c.l.b16 %v452
        %v471 = vpack.c.b16 %v468, %v467
        %v472 = vpack.c.b16 %v470, %v469
        %v477 = vunpack.c.l.b16 %v453
        %v478 = vunpack.c.h.b16 %v453
        %v479 = vunpack.c.l.b16 %v454
        %v480 = vunpack.c.h.b16 %v454
        %v481 = vunpack.c.l.b16 %v455
        %v482 = vunpack.c.h.b16 %v455
        %v483 = vunpack.c.l.b16 %v456
        %v484 = vunpack.c.h.b16 %v456
        %v485 = vpack.c.b16 %v479, %v477
        %v486 = vpack.c.b16 %v480, %v478
        %v487 = vpack.c.b16 %v483, %v481
        %v488 = vpack.c.b16 %v484, %v482
        %vm493 = vcmask 261120
        %v495 = vsel %vm493, %v471, 0
        %v498 = vsel %vm493, %v472, 0
        %500 = vmatpush.bf16.msra.mxu0 0
        %501 = vmatpush.bf16.msra.mxu0 0
        %502 = vmatpush.bf16.msra.mxu0 0
        %503 = vmatpush.bf16.msra.mxu0 0
        %504 = vmatpush.bf16.msra.mxu0 0
        %505 = vmatpush.bf16.msra.mxu0 0
        %506 = vmatpush.bf16.msra.mxu0 %v487
        %507 = vmatpush.bf16.msra.mxu0 %v485
        %508 = vmatmul.bf16.gmra.mxu0 %v495
        %v509 = vpop.f32.mrf.mxu0
        %v510 = vadd.f32 %v459, %v509
        %v511 = vpop.f32.mrf.mxu0
        %v512 = vadd.f32 %v459, %v511
        %513 = vmatmul.bf16.gmra.mxu0 %v498
        %v514 = vpop.f32.mrf.mxu0
        %v515 = vadd.f32 %v459, %v514
        %v516 = vpop.f32.mrf.mxu0
        %v517 = vadd.f32 %v459, %v516
        %518 = vdwg.mxu0
        %519 = vmatpush.bf16.msra.mxu0 0
        %520 = vmatpush.bf16.msra.mxu0 0
        %521 = vmatpush.bf16.msra.mxu0 0
        %522 = vmatpush.bf16.msra.mxu0 0
        %523 = vmatpush.bf16.msra.mxu0 0
        %524 = vmatpush.bf16.msra.mxu0 0
        %525 = vmatpush.bf16.msra.mxu0 %v488
        %526 = vmatpush.bf16.msra.mxu0 %v486
        %527 = vmatmul.bf16.gmra.mxu0 %v495
        %v528 = vpop.f32.mrf.mxu0
        %v529 = vadd.f32 %v460, %v528
        %v530 = vpop.f32.mrf.mxu0
        %v531 = vadd.f32 %v460, %v530
        %532 = vmatmul.bf16.gmra.mxu0 %v498
        %v533 = vpop.f32.mrf.mxu0
        %v534 = vadd.f32 %v460, %v533
        %v535 = vpop.f32.mrf.mxu0
        %v536 = vadd.f32 %v460, %v535
        %537 = vdwg.mxu0
        %s538 = sshra.s32 %s448, 3
        %s539 = sand.u32 %s448, 7
        %s540 = smul.u32 %s538, 2
        %s541 = smul.addr %s540, 8
        %s542 = scalar_lea.vmem [#allocation2], %s541
        %543 = vst [vmem:[%s542] sm:$0xff] %v510
        %544 = vst [vmem:[%s542 + $0x8] sm:$0xff] %v529
        %545 = vst [vmem:[%s542 + $0x10] sm:$0xff] %v512
        %546 = vst [vmem:[%s542 + $0x18] sm:$0xff] %v531
        %547 = vst [vmem:[%s542 + $0x20] sm:$0xff] %v515
        %548 = vst [vmem:[%s542 + $0x28] sm:$0xff] %v534
        %549 = vst [vmem:[%s542 + $0x30] sm:$0xff] %v517
        %550 = vst [vmem:[%s542 + $0x38] sm:$0xff] %v536
        %p551 = scmp.eq.s32.totalorder %s29, 1
        // Predicated region
        $region73: #{tpu_custom_call.1} parent=63 // pred_check
          %p552 = pneg %p551
        $region74: #{tpu_custom_call.1} parent=63 // pred_check_branch
          %554 = sbr.rel (%p552) target = $region76
        $region75: #{tpu_custom_call.1} parent=63 // pred_region
          %v555 = vld [vmem:[#allocation5] sm:$0xff]
          %v556 = vld [vmem:[#allocation5 + $0x8] sm:$0xff]
          %v557 = vld [vmem:[#allocation5 + $0x10] sm:$0xff]
          %v558 = vld [vmem:[#allocation5 + $0x18] sm:$0xff]
          %v559 = vld [vmem:[#allocation5 + $0x20] sm:$0xff]
          %v560 = vld [vmem:[#allocation5 + $0x28] sm:$0xff]
          %v561 = vld [vmem:[#allocation5 + $0x30] sm:$0xff]
          %v562 = vld [vmem:[#allocation5 + $0x38] sm:$0xff]
          %v563 = vld [vmem:[#allocation5 + $0x40] sm:$0xff]
          %v564 = vld [vmem:[#allocation5 + $0x48] sm:$0xff]
          %v565 = vld [vmem:[#allocation5 + $0x50] sm:$0xff]
          %v566 = vld [vmem:[#allocation5 + $0x58] sm:$0xff]
          %v567 = vld [vmem:[#allocation5 + $0x60] sm:$0xff]
          %v568 = vld [vmem:[#allocation5 + $0x68] sm:$0xff]
          %v569 = vld [vmem:[#allocation5 + $0x70] sm:$0xff]
          %v570 = vld [vmem:[#allocation5 + $0x78] sm:$0xff]
          %v571 = vld [vmem:[#allocation7] sm:$0xff]
          %v572 = vld [vmem:[#allocation7 + $0x8] sm:$0xff]
          %v573 = vld [vmem:[#allocation7 + $0x10] sm:$0xff]
          %v574 = vld [vmem:[#allocation7 + $0x18] sm:$0xff]
          %v575 = vld [vmem:[#allocation7 + $0x20] sm:$0xff]
          %v576 = vld [vmem:[#allocation7 + $0x28] sm:$0xff]
          %v577 = vld [vmem:[#allocation7 + $0x30] sm:$0xff]
          %v578 = vld [vmem:[#allocation7 + $0x38] sm:$0xff]
          %v579 = vld [vmem:[#allocation7 + $0x40] sm:$0xff]
          %v580 = vld [vmem:[#allocation7 + $0x48] sm:$0xff]
          %v581 = vld [vmem:[#allocation7 + $0x50] sm:$0xff]
          %v582 = vld [vmem:[#allocation7 + $0x58] sm:$0xff]
          %v583 = vld [vmem:[#allocation7 + $0x60] sm:$0xff]
          %v584 = vld [vmem:[#allocation7 + $0x68] sm:$0xff]
          %v585 = vld [vmem:[#allocation7 + $0x70] sm:$0xff]
          %v586 = vld [vmem:[#allocation7 + $0x78] sm:$0xff]
          %vm587 = vcmask 523264
          %v589 = vsel %vm587, 0.0, 0
          %591 = vmatpush.msra.mxu0 0.0
          %592 = vmatpush.msra.mxu0 0.0
          %593 = vmatpush.msra.mxu0 0.0
          %594 = vmatpush.msra.mxu0 0.0
          %595 = vmatpush.msra.mxu0 0.0
          %596 = vmatpush.msra.mxu0 0.0
          %597 = vmatpush.msra.mxu0 0.0
          %598 = vmatpush.msra.mxu0 0.0
          %599 = vmatpush.msra.mxu0 %v569
          %600 = vmatpush.msra.mxu0 %v567
          %601 = vmatpush.msra.mxu0 %v565
          %602 = vmatpush.msra.mxu0 %v563
          %603 = vmatpush.msra.mxu0 %v561
          %604 = vmatpush.msra.mxu0 %v559
          %605 = vmatpush.msra.mxu0 %v557
          %606 = vmatpush.msra.mxu0 %v555
          %607 = vmatmul.f32.gmra.mxu0 %v589
          %v608 = vpop.f32.mrf.mxu0
          %v609 = vadd.f32 0.0, %v608
          %610 = vdwg.mxu0
          %611 = vmatpush.msra.mxu0 0.0
          %612 = vmatpush.msra.mxu0 0.0
          %613 = vmatpush.msra.mxu0 0.0
          %614 = vmatpush.msra.mxu0 0.0
          %615 = vmatpush.msra.mxu0 0.0
          %616 = vmatpush.msra.mxu0 0.0
          %617 = vmatpush.msra.mxu0 0.0
          %618 = vmatpush.msra.mxu0 0.0
          %619 = vmatpush.msra.mxu0 %v570
          %620 = vmatpush.msra.mxu0 %v568
          %621 = vmatpush.msra.mxu0 %v566
          %622 = vmatpush.msra.mxu0 %v564
          %623 = vmatpush.msra.mxu0 %v562
          %624 = vmatpush.msra.mxu0 %v560
          %625 = vmatpush.msra.mxu0 %v558
          %626 = vmatpush.msra.mxu0 %v556
          %627 = vmatmul.f32.gmra.mxu0 %v589
          %v628 = vpop.f32.mrf.mxu0
          %v629 = vadd.f32 0.0, %v628
          %630 = vdwg.mxu0
          %s631 = smul.u32 0, 2
          %s632 = smul.addr %s631, 8
          %s633 = scalar_lea.vmem [#allocation2], %s632
          %v634 = vld [vmem:[%s633] sm:$0xff]
          %v635 = vadd.f32 %v634, %v609
          %s636 = smul.u32 7, 2
          %s637 = smul.addr %s636, 8
          %s638 = scalar_lea.vmem [#allocation2], %s637
          %v639 = vld [vmem:[%s638 + $0x8] sm:$0xff]
          %v640 = vadd.f32 %v639, %v629
          %v641 = vxor.u32 %v635, 2147483648
          %v642 = vmul.f32 %v641, 1.442695
          %v643 = vpow.pop %v642
          %v644 = vadd.f32 %v643, 1.0
          %v645 = vrcp.pop %v644
          %v646 = vmul.f32 %v644, %v645
          %v647 = vsub.f32 1.0, %v646
          %v648 = vmul.f32 %v645, %v647
          %v649 = vadd.f32 %v645, %v648
          %vm650 = vweird.f32 %v644
          %vm651 = vweird.f32 %v645
          %vm652 = vmor %vm650, %vm651
          %v653 = vsel %vm652, %v645, %v649
          %v654 = vand.u32 2147483647, %v644
          %vm655 = vcmp.eq.f32.partialorder %v654, 8.507059e+37
          %v656 = vand.u32 %v644, 2147483648
          %v657 = vor.u32 1.1754944e-38, %v656
          %v658 = vsel %vm655, %v657, %v653
          %v659 = vmul.f32 1.0, %v658
          %v660 = vtanh.pop %v635
          %v661 = vmul.f32 %v659, 0.0
          %663 = vrot.lane.b32.xlu0 %v660, 32
          %v664 = vpop.permute.xlu0 %663
          %v666 = vmul.f32 %v659, %v664
          %668 = vrot.lane.b32.xlu0 %v666, 32
          %v669 = vpop.permute.xlu0 %668
          %v671 = vadd.f32 %v661, %v669
          %v672 = vtanh.pop %v671
          %674 = vrot.lane.b32.xlu0 %v672, 32
          %v675 = vpop.permute.xlu0 %674
          %v677 = vmul.f32 %v659, %v675
          %v678 = vxor.u32 %v640, 2147483648
          %v679 = vmul.f32 %v678, 1.442695
          %v680 = vpow.pop %v679
          %v681 = vadd.f32 %v680, 1.0
          %v682 = vrcp.pop %v681
          %v683 = vmul.f32 %v681, %v682
          %v684 = vsub.f32 1.0, %v683
          %v685 = vmul.f32 %v682, %v684
          %v686 = vadd.f32 %v682, %v685
          %vm687 = vweird.f32 %v681
          %vm688 = vweird.f32 %v682
          %vm689 = vmor %vm687, %vm688
          %v690 = vsel %vm689, %v682, %v686
          %v691 = vand.u32 2147483647, %v681
          %vm692 = vcmp.eq.f32.partialorder %v691, 8.507059e+37
          %v693 = vand.u32 %v681, 2147483648
          %v694 = vor.u32 1.1754944e-38, %v693
          %v695 = vsel %vm692, %v694, %v690
          %v696 = vmul.f32 1.0, %v695
          %v697 = vtanh.pop %v640
          %v698 = vmul.f32 %v696, 0.0
          %700 = vrot.lane.b32.xlu0 %v697, 32
          %v701 = vpop.permute.xlu0 %700
          %v703 = vmul.f32 %v696, %v701
          %705 = vrot.lane.b32.xlu0 %v703, 32
          %v706 = vpop.permute.xlu0 %705
          %v708 = vadd.f32 %v698, %v706
          %v709 = vtanh.pop %v708
          %711 = vrot.lane.b32.xlu0 %v709, 32
          %v712 = vpop.permute.xlu0 %711
          %v714 = vmul.f32 %v696, %v712
          %716 = vrot.lane.b32.xlu0 %v677, 64
          %v717 = vpop.permute.xlu0 %716
          %719 = vst.msk [vmem:[#allocation3] sm:$0xff] %vm493, %v717
          %721 = vrot.lane.b32.xlu0 %v714, 64
          %v722 = vpop.permute.xlu0 %721
          %s724 = scalar_lea.vmem [#allocation4], 56
          %725 = vst.msk [vmem:[%s724] sm:$0xff] %vm493, %v722
          %726 = vrot.lane.b32.xlu0 %v714, 96
          %v727 = vpop.permute.xlu0 %726
          %v729 = vsel %vm493, %v717, %v727
          %v731 = vsel %vm587, %v729, 0
          %733 = vmatpush.msra.mxu0 0.0
          %734 = vmatpush.msra.mxu0 0.0
          %735 = vmatpush.msra.mxu0 0.0
          %736 = vmatpush.msra.mxu0 0.0
          %737 = vmatpush.msra.mxu0 0.0
          %738 = vmatpush.msra.mxu0 0.0
          %739 = vmatpush.msra.mxu0 0.0
          %740 = vmatpush.msra.mxu0 0.0
          %741 = vmatpush.msra.mxu0 %v569
          %742 = vmatpush.msra.mxu0 %v567
          %743 = vmatpush.msra.mxu0 %v565
          %744 = vmatpush.msra.mxu0 %v563
          %745 = vmatpush.msra.mxu0 %v561
          %746 = vmatpush.msra.mxu0 %v559
          %747 = vmatpush.msra.mxu0 %v557
          %748 = vmatpush.msra.mxu0 %v555
          %749 = vmatmul.f32.gmra.mxu0 %v731
          %v750 = vpop.f32.mrf.mxu0
          %v751 = vadd.f32 0.0, %v750
          %752 = vdwg.mxu0
          %753 = vmatpush.msra.mxu0 0.0
          %754 = vmatpush.msra.mxu0 0.0
          %755 = vmatpush.msra.mxu0 0.0
          %756 = vmatpush.msra.mxu0 0.0
          %757 = vmatpush.msra.mxu0 0.0
          %758 = vmatpush.msra.mxu0 0.0
          %759 = vmatpush.msra.mxu0 0.0
          %760 = vmatpush.msra.mxu0 0.0
          %761 = vmatpush.msra.mxu0 %v570
          %762 = vmatpush.msra.mxu0 %v568
          %763 = vmatpush.msra.mxu0 %v566
          %764 = vmatpush.msra.mxu0 %v564
          %765 = vmatpush.msra.mxu0 %v562
          %766 = vmatpush.msra.mxu0 %v560
          %767 = vmatpush.msra.mxu0 %v558
          %768 = vmatpush.msra.mxu0 %v556
          %769 = vmatmul.f32.gmra.mxu0 %v731
          %v770 = vpop.f32.mrf.mxu0
          %v771 = vadd.f32 0.0, %v770
          %772 = vdwg.mxu0
          %s773 = smul.u32 1, 2
          %s774 = smul.addr %s773, 8
          %s775 = scalar_lea.vmem [#allocation2], %s774
          %v776 = vld [vmem:[%s775] sm:$0xff]
          %v777 = vadd.f32 %v776, %v751
          %s778 = smul.u32 6, 2
          %s779 = smul.addr %s778, 8
          %s780 = scalar_lea.vmem [#allocation2], %s779
          %v781 = vld [vmem:[%s780 + $0x8] sm:$0xff]
          %v782 = vadd.f32 %v781, %v771
          %v783 = vxor.u32 %v777, 2147483648
          %v784 = vmul.f32 %v783, 1.442695
          %v785 = vpow.pop %v784
          %v786 = vadd.f32 %v785, 1.0
          %v787 = vrcp.pop %v786
          %v788 = vmul.f32 %v786, %v787
          %v789 = vsub.f32 1.0, %v788
          %v790 = vmul.f32 %v787, %v789
          %v791 = vadd.f32 %v787, %v790
          %vm792 = vweird.f32 %v786
          %vm793 = vweird.f32 %v787
          %vm794 = vmor %vm792, %vm793
          %v795 = vsel %vm794, %v787, %v791
          %v796 = vand.u32 2147483647, %v786
          %vm797 = vcmp.eq.f32.partialorder %v796, 8.507059e+37
          %v798 = vand.u32 %v786, 2147483648
          %v799 = vor.u32 1.1754944e-38, %v798
          %v800 = vsel %vm797, %v799, %v795
          %v801 = vmul.f32 1.0, %v800
          %v802 = vtanh.pop %v777
          %v803 = vmul.f32 %v801, %v671
          %805 = vrot.lane.b32.xlu0 %v802, 32
          %v806 = vpop.permute.xlu0 %805
          %v808 = vmul.f32 %v801, %v806
          %810 = vrot.lane.b32.xlu0 %v808, 32
          %v811 = vpop.permute.xlu0 %810
          %v813 = vadd.f32 %v803, %v811
          %v814 = vtanh.pop %v813
          %816 = vrot.lane.b32.xlu0 %v814, 32
          %v817 = vpop.permute.xlu0 %816
          %v819 = vmul.f32 %v801, %v817
          %v820 = vxor.u32 %v782, 2147483648
          %v821 = vmul.f32 %v820, 1.442695
          %v822 = vpow.pop %v821
          %v823 = vadd.f32 %v822, 1.0
          %v824 = vrcp.pop %v823
          %v825 = vmul.f32 %v823, %v824
          %v826 = vsub.f32 1.0, %v825
          %v827 = vmul.f32 %v824, %v826
          %v828 = vadd.f32 %v824, %v827
          %vm829 = vweird.f32 %v823
          %vm830 = vweird.f32 %v824
          %vm831 = vmor %vm829, %vm830
          %v832 = vsel %vm831, %v824, %v828
          %v833 = vand.u32 2147483647, %v823
          %vm834 = vcmp.eq.f32.partialorder %v833, 8.507059e+37
          %v835 = vand.u32 %v823, 2147483648
          %v836 = vor.u32 1.1754944e-38, %v835
          %v837 = vsel %vm834, %v836, %v832
          %v838 = vmul.f32 1.0, %v837
          %v839 = vtanh.pop %v782
          %v840 = vmul.f32 %v838, %v708
          %842 = vrot.lane.b32.xlu0 %v839, 32
          %v843 = vpop.permute.xlu0 %842
          %v845 = vmul.f32 %v838, %v843
          %847 = vrot.lane.b32.xlu0 %v845, 32
          %v848 = vpop.permute.xlu0 %847
          %v850 = vadd.f32 %v840, %v848
          %v851 = vtanh.pop %v850
          %853 = vrot.lane.b32.xlu0 %v851, 32
          %v854 = vpop.permute.xlu0 %853
          %v856 = vmul.f32 %v838, %v854
          %858 = vrot.lane.b32.xlu0 %v819, 64
          %v859 = vpop.permute.xlu0 %858
          %s861 = scalar_lea.vmem [#allocation3], 8
          %862 = vst.msk [vmem:[%s861] sm:$0xff] %vm493, %v859
          %864 = vrot.lane.b32.xlu0 %v856, 64
          %v865 = vpop.permute.xlu0 %864
          %s867 = scalar_lea.vmem [#allocation4], 48
          %868 = vst.msk [vmem:[%s867] sm:$0xff] %vm493, %v865
          %869 = vrot.lane.b32.xlu0 %v856, 96
          %v870 = vpop.permute.xlu0 %869
          %v872 = vsel %vm493, %v859, %v870
          %v874 = vsel %vm587, %v872, 0
          %876 = vmatpush.msra.mxu0 0.0
          %877 = vmatpush.msra.mxu0 0.0
          %878 = vmatpush.msra.mxu0 0.0
          %879 = vmatpush.msra.mxu0 0.0
          %880 = vmatpush.msra.mxu0 0.0
          %881 = vmatpush.msra.mxu0 0.0
          %882 = vmatpush.msra.mxu0 0.0
          %883 = vmatpush.msra.mxu0 0.0
          %884 = vmatpush.msra.mxu0 %v569
          %885 = vmatpush.msra.mxu0 %v567
          %886 = vmatpush.msra.mxu0 %v565
          %887 = vmatpush.msra.mxu0 %v563
          %888 = vmatpush.msra.mxu0 %v561
          %889 = vmatpush.msra.mxu0 %v559
          %890 = vmatpush.msra.mxu0 %v557
          %891 = vmatpush.msra.mxu0 %v555
          %892 = vmatmul.f32.gmra.mxu0 %v874
          %v893 = vpop.f32.mrf.mxu0
          %v894 = vadd.f32 0.0, %v893
          %895 = vdwg.mxu0
          %896 = vmatpush.msra.mxu0 0.0
          %897 = vmatpush.msra.mxu0 0.0
          %898 = vmatpush.msra.mxu0 0.0
          %899 = vmatpush.msra.mxu0 0.0
          %900 = vmatpush.msra.mxu0 0.0
          %901 = vmatpush.msra.mxu0 0.0
          %902 = vmatpush.msra.mxu0 0.0
          %903 = vmatpush.msra.mxu0 0.0
          %904 = vmatpush.msra.mxu0 %v570
          %905 = vmatpush.msra.mxu0 %v568
          %906 = vmatpush.msra.mxu0 %v566
          %907 = vmatpush.msra.mxu0 %v564
          %908 = vmatpush.msra.mxu0 %v562
          %909 = vmatpush.msra.mxu0 %v560
          %910 = vmatpush.msra.mxu0 %v558
          %911 = vmatpush.msra.mxu0 %v556
          %912 = vmatmul.f32.gmra.mxu0 %v874
          %v913 = vpop.f32.mrf.mxu0
          %v914 = vadd.f32 0.0, %v913
          %915 = vdwg.mxu0
          %s916 = smul.u32 2, 2
          %s917 = smul.addr %s916, 8
          %s918 = scalar_lea.vmem [#allocation2], %s917
          %v919 = vld [vmem:[%s918] sm:$0xff]
          %v920 = vadd.f32 %v919, %v894
          %s921 = smul.u32 5, 2
          %s922 = smul.addr %s921, 8
          %s923 = scalar_lea.vmem [#allocation2], %s922
          %v924 = vld [vmem:[%s923 + $0x8] sm:$0xff]
          %v925 = vadd.f32 %v924, %v914
          %v926 = vxor.u32 %v920, 2147483648
          %v927 = vmul.f32 %v926, 1.442695
          %v928 = vpow.pop %v927
          %v929 = vadd.f32 %v928, 1.0
          %v930 = vrcp.pop %v929
          %v931 = vmul.f32 %v929, %v930
          %v932 = vsub.f32 1.0, %v931
          %v933 = vmul.f32 %v930, %v932
          %v934 = vadd.f32 %v930, %v933
          %vm935 = vweird.f32 %v929
          %vm936 = vweird.f32 %v930
          %vm937 = vmor %vm935, %vm936
          %v938 = vsel %vm937, %v930, %v934
          %v939 = vand.u32 2147483647, %v929
          %vm940 = vcmp.eq.f32.partialorder %v939, 8.507059e+37
          %v941 = vand.u32 %v929, 2147483648
          %v942 = vor.u32 1.1754944e-38, %v941
          %v943 = vsel %vm940, %v942, %v938
          %v944 = vmul.f32 1.0, %v943
          %v945 = vtanh.pop %v920
          %v946 = vmul.f32 %v944, %v813
          %948 = vrot.lane.b32.xlu0 %v945, 32
          %v949 = vpop.permute.xlu0 %948
          %v951 = vmul.f32 %v944, %v949
          %953 = vrot.lane.b32.xlu0 %v951, 32
          %v954 = vpop.permute.xlu0 %953
          %v956 = vadd.f32 %v946, %v954
          %v957 = vtanh.pop %v956
          %959 = vrot.lane.b32.xlu0 %v957, 32
          %v960 = vpop.permute.xlu0 %959
          %v962 = vmul.f32 %v944, %v960
          %v963 = vxor.u32 %v925, 2147483648
          %v964 = vmul.f32 %v963, 1.442695
          %v965 = vpow.pop %v964
          %v966 = vadd.f32 %v965, 1.0
          %v967 = vrcp.pop %v966
          %v968 = vmul.f32 %v966, %v967
          %v969 = vsub.f32 1.0, %v968
          %v970 = vmul.f32 %v967, %v969
          %v971 = vadd.f32 %v967, %v970
          %vm972 = vweird.f32 %v966
          %vm973 = vweird.f32 %v967
          %vm974 = vmor %vm972, %vm973
          %v975 = vsel %vm974, %v967, %v971
          %v976 = vand.u32 2147483647, %v966
          %vm977 = vcmp.eq.f32.partialorder %v976, 8.507059e+37
          %v978 = vand.u32 %v966, 2147483648
          %v979 = vor.u32 1.1754944e-38, %v978
          %v980 = vsel %vm977, %v979, %v975
          %v981 = vmul.f32 1.0, %v980
          %v982 = vtanh.pop %v925
          %v983 = vmul.f32 %v981, %v850
          %985 = vrot.lane.b32.xlu0 %v982, 32
          %v986 = vpop.permute.xlu0 %985
          %v988 = vmul.f32 %v981, %v986
          %990 = vrot.lane.b32.xlu0 %v988, 32
          %v991 = vpop.permute.xlu0 %990
          %v993 = vadd.f32 %v983, %v991
          %v994 = vtanh.pop %v993
          %996 = vrot.lane.b32.xlu0 %v994, 32
          %v997 = vpop.permute.xlu0 %996
          %v999 = vmul.f32 %v981, %v997
          %1001 = vrot.lane.b32.xlu0 %v962, 64
          %v1002 = vpop.permute.xlu0 %1001
          %s1004 = scalar_lea.vmem [#allocation3], 16
          %1005 = vst.msk [vmem:[%s1004] sm:$0xff] %vm493, %v1002
          %1007 = vrot.lane.b32.xlu0 %v999, 64
          %v1008 = vpop.permute.xlu0 %1007
          %s1010 = scalar_lea.vmem [#allocation4], 40
          %1011 = vst.msk [vmem:[%s1010] sm:$0xff] %vm493, %v1008
          %1012 = vrot.lane.b32.xlu0 %v999, 96
          %v1013 = vpop.permute.xlu0 %1012
          %v1015 = vsel %vm493, %v1002, %v1013
          %v1017 = vsel %vm587, %v1015, 0
          %1019 = vmatpush.msra.mxu0 0.0
          %1020 = vmatpush.msra.mxu0 0.0
          %1021 = vmatpush.msra.mxu0 0.0
          %1022 = vmatpush.msra.mxu0 0.0
          %1023 = vmatpush.msra.mxu0 0.0
          %1024 = vmatpush.msra.mxu0 0.0
          %1025 = vmatpush.msra.mxu0 0.0
          %1026 = vmatpush.msra.mxu0 0.0
          %1027 = vmatpush.msra.mxu0 %v569
          %1028 = vmatpush.msra.mxu0 %v567
          %1029 = vmatpush.msra.mxu0 %v565
          %1030 = vmatpush.msra.mxu0 %v563
          %1031 = vmatpush.msra.mxu0 %v561
          %1032 = vmatpush.msra.mxu0 %v559
          %1033 = vmatpush.msra.mxu0 %v557
          %1034 = vmatpush.msra.mxu0 %v555
          %1035 = vmatmul.f32.gmra.mxu0 %v1017
          %v1036 = vpop.f32.mrf.mxu0
          %v1037 = vadd.f32 0.0, %v1036
          %1038 = vdwg.mxu0
          %1039 = vmatpush.msra.mxu0 0.0
          %1040 = vmatpush.msra.mxu0 0.0
          %1041 = vmatpush.msra.mxu0 0.0
          %1042 = vmatpush.msra.mxu0 0.0
          %1043 = vmatpush.msra.mxu0 0.0
          %1044 = vmatpush.msra.mxu0 0.0
          %1045 = vmatpush.msra.mxu0 0.0
          %1046 = vmatpush.msra.mxu0 0.0
          %1047 = vmatpush.msra.mxu0 %v570
          %1048 = vmatpush.msra.mxu0 %v568
          %1049 = vmatpush.msra.mxu0 %v566
          %1050 = vmatpush.msra.mxu0 %v564
          %1051 = vmatpush.msra.mxu0 %v562
          %1052 = vmatpush.msra.mxu0 %v560
          %1053 = vmatpush.msra.mxu0 %v558
          %1054 = vmatpush.msra.mxu0 %v556
          %1055 = vmatmul.f32.gmra.mxu0 %v1017
          %v1056 = vpop.f32.mrf.mxu0
          %v1057 = vadd.f32 0.0, %v1056
          %1058 = vdwg.mxu0
          %s1059 = smul.u32 3, 2
          %s1060 = smul.addr %s1059, 8
          %s1061 = scalar_lea.vmem [#allocation2], %s1060
          %v1062 = vld [vmem:[%s1061] sm:$0xff]
          %v1063 = vadd.f32 %v1062, %v1037
          %s1064 = smul.u32 4, 2
          %s1065 = smul.addr %s1064, 8
          %s1066 = scalar_lea.vmem [#allocation2], %s1065
          %v1067 = vld [vmem:[%s1066 + $0x8] sm:$0xff]
          %v1068 = vadd.f32 %v1067, %v1057
          %v1069 = vxor.u32 %v1063, 2147483648
          %v1070 = vmul.f32 %v1069, 1.442695
          %v1071 = vpow.pop %v1070
          %v1072 = vadd.f32 %v1071, 1.0
          %v1073 = vrcp.pop %v1072
          %v1074 = vmul.f32 %v1072, %v1073
          %v1075 = vsub.f32 1.0, %v1074
          %v1076 = vmul.f32 %v1073, %v1075
          %v1077 = vadd.f32 %v1073, %v1076
          %vm1078 = vweird.f32 %v1072
          %vm1079 = vweird.f32 %v1073
          %vm1080 = vmor %vm1078, %vm1079
          %v1081 = vsel %vm1080, %v1073, %v1077
          %v1082 = vand.u32 2147483647, %v1072
          %vm1083 = vcmp.eq.f32.partialorder %v1082, 8.507059e+37
          %v1084 = vand.u32 %v1072, 2147483648
          %v1085 = vor.u32 1.1754944e-38, %v1084
          %v1086 = vsel %vm1083, %v1085, %v1081
          %v1087 = vmul.f32 1.0, %v1086
          %v1088 = vtanh.pop %v1063
          %v1089 = vmul.f32 %v1087, %v956
          %1091 = vrot.lane.b32.xlu0 %v1088, 32
          %v1092 = vpop.permute.xlu0 %1091
          %v1094 = vmul.f32 %v1087, %v1092
          %1096 = vrot.lane.b32.xlu0 %v1094, 32
          %v1097 = vpop.permute.xlu0 %1096
          %v1099 = vadd.f32 %v1089, %v1097
          %v1100 = vtanh.pop %v1099
          %1102 = vrot.lane.b32.xlu0 %v1100, 32
          %v1103 = vpop.permute.xlu0 %1102
          %v1105 = vmul.f32 %v1087, %v1103
          %v1106 = vxor.u32 %v1068, 2147483648
          %v1107 = vmul.f32 %v1106, 1.442695
          %v1108 = vpow.pop %v1107
          %v1109 = vadd.f32 %v1108, 1.0
          %v1110 = vrcp.pop %v1109
          %v1111 = vmul.f32 %v1109, %v1110
          %v1112 = vsub.f32 1.0, %v1111
          %v1113 = vmul.f32 %v1110, %v1112
          %v1114 = vadd.f32 %v1110, %v1113
          %vm1115 = vweird.f32 %v1109
          %vm1116 = vweird.f32 %v1110
          %vm1117 = vmor %vm1115, %vm1116
          %v1118 = vsel %vm1117, %v1110, %v1114
          %v1119 = vand.u32 2147483647, %v1109
          %vm1120 = vcmp.eq.f32.partialorder %v1119, 8.507059e+37
          %v1121 = vand.u32 %v1109, 2147483648
          %v1122 = vor.u32 1.1754944e-38, %v1121
          %v1123 = vsel %vm1120, %v1122, %v1118
          %v1124 = vmul.f32 1.0, %v1123
          %v1125 = vtanh.pop %v1068
          %v1126 = vmul.f32 %v1124, %v993
          %1128 = vrot.lane.b32.xlu0 %v1125, 32
          %v1129 = vpop.permute.xlu0 %1128
          %v1131 = vmul.f32 %v1124, %v1129
          %1133 = vrot.lane.b32.xlu0 %v1131, 32
          %v1134 = vpop.permute.xlu0 %1133
          %v1136 = vadd.f32 %v1126, %v1134
          %v1137 = vtanh.pop %v1136
          %1139 = vrot.lane.b32.xlu0 %v1137, 32
          %v1140 = vpop.permute.xlu0 %1139
          %v1142 = vmul.f32 %v1124, %v1140
          %1144 = vrot.lane.b32.xlu0 %v1105, 64
          %v1145 = vpop.permute.xlu0 %1144
          %s1147 = scalar_lea.vmem [#allocation3], 24
          %1148 = vst.msk [vmem:[%s1147] sm:$0xff] %vm493, %v1145
          %1150 = vrot.lane.b32.xlu0 %v1142, 64
          %v1151 = vpop.permute.xlu0 %1150
          %s1153 = scalar_lea.vmem [#allocation4], 32
          %1154 = vst.msk [vmem:[%s1153] sm:$0xff] %vm493, %v1151
          %1155 = vrot.lane.b32.xlu0 %v1142, 96
          %v1156 = vpop.permute.xlu0 %1155
          %v1158 = vsel %vm493, %v1145, %v1156
          %v1160 = vsel %vm587, %v1158, 0
          %1162 = vmatpush.msra.mxu0 0.0
          %1163 = vmatpush.msra.mxu0 0.0
          %1164 = vmatpush.msra.mxu0 0.0
          %1165 = vmatpush.msra.mxu0 0.0
          %1166 = vmatpush.msra.mxu0 0.0
          %1167 = vmatpush.msra.mxu0 0.0
          %1168 = vmatpush.msra.mxu0 0.0
          %1169 = vmatpush.msra.mxu0 0.0
          %1170 = vmatpush.msra.mxu0 %v569
          %1171 = vmatpush.msra.mxu0 %v567
          %1172 = vmatpush.msra.mxu0 %v565
          %1173 = vmatpush.msra.mxu0 %v563
          %1174 = vmatpush.msra.mxu0 %v561
          %1175 = vmatpush.msra.mxu0 %v559
          %1176 = vmatpush.msra.mxu0 %v557
          %1177 = vmatpush.msra.mxu0 %v555
          %1178 = vmatmul.f32.gmra.mxu0 %v1160
          %v1179 = vpop.f32.mrf.mxu0
          %v1180 = vadd.f32 0.0, %v1179
          %1181 = vdwg.mxu0
          %1182 = vmatpush.msra.mxu0 0.0
          %1183 = vmatpush.msra.mxu0 0.0
          %1184 = vmatpush.msra.mxu0 0.0
          %1185 = vmatpush.msra.mxu0 0.0
          %1186 = vmatpush.msra.mxu0 0.0
          %1187 = vmatpush.msra.mxu0 0.0
          %1188 = vmatpush.msra.mxu0 0.0
          %1189 = vmatpush.msra.mxu0 0.0
          %1190 = vmatpush.msra.mxu0 %v570
          %1191 = vmatpush.msra.mxu0 %v568
          %1192 = vmatpush.msra.mxu0 %v566
          %1193 = vmatpush.msra.mxu0 %v564
          %1194 = vmatpush.msra.mxu0 %v562
          %1195 = vmatpush.msra.mxu0 %v560
          %1196 = vmatpush.msra.mxu0 %v558
          %1197 = vmatpush.msra.mxu0 %v556
          %1198 = vmatmul.f32.gmra.mxu0 %v1160
          %v1199 = vpop.f32.mrf.mxu0
          %v1200 = vadd.f32 0.0, %v1199
          %1201 = vdwg.mxu0
          %v1202 = vld [vmem:[%s1066] sm:$0xff]
          %v1203 = vadd.f32 %v1202, %v1180
          %v1204 = vld [vmem:[%s1061 + $0x8] sm:$0xff]
          %v1205 = vadd.f32 %v1204, %v1200
          %v1206 = vxor.u32 %v1203, 2147483648
          %v1207 = vmul.f32 %v1206, 1.442695
          %v1208 = vpow.pop %v1207
          %v1209 = vadd.f32 %v1208, 1.0
          %v1210 = vrcp.pop %v1209
          %v1211 = vmul.f32 %v1209, %v1210
          %v1212 = vsub.f32 1.0, %v1211
          %v1213 = vmul.f32 %v1210, %v1212
          %v1214 = vadd.f32 %v1210, %v1213
          %vm1215 = vweird.f32 %v1209
          %vm1216 = vweird.f32 %v1210
          %vm1217 = vmor %vm1215, %vm1216
          %v1218 = vsel %vm1217, %v1210, %v1214
          %v1219 = vand.u32 2147483647, %v1209
          %vm1220 = vcmp.eq.f32.partialorder %v1219, 8.507059e+37
          %v1221 = vand.u32 %v1209, 2147483648
          %v1222 = vor.u32 1.1754944e-38, %v1221
          %v1223 = vsel %vm1220, %v1222, %v1218
          %v1224 = vmul.f32 1.0, %v1223
          %v1225 = vtanh.pop %v1203
          %v1226 = vmul.f32 %v1224, %v1099
          %1228 = vrot.lane.b32.xlu0 %v1225, 32
          %v1229 = vpop.permute.xlu0 %1228
          %v1231 = vmul.f32 %v1224, %v1229
          %1233 = vrot.lane.b32.xlu0 %v1231, 32
          %v1234 = vpop.permute.xlu0 %1233
          %v1236 = vadd.f32 %v1226, %v1234
          %v1237 = vtanh.pop %v1236
          %1239 = vrot.lane.b32.xlu0 %v1237, 32
          %v1240 = vpop.permute.xlu0 %1239
          %v1242 = vmul.f32 %v1224, %v1240
          %v1243 = vxor.u32 %v1205, 2147483648
          %v1244 = vmul.f32 %v1243, 1.442695
          %v1245 = vpow.pop %v1244
          %v1246 = vadd.f32 %v1245, 1.0
          %v1247 = vrcp.pop %v1246
          %v1248 = vmul.f32 %v1246, %v1247
          %v1249 = vsub.f32 1.0, %v1248
          %v1250 = vmul.f32 %v1247, %v1249
          %v1251 = vadd.f32 %v1247, %v1250
          %vm1252 = vweird.f32 %v1246
          %vm1253 = vweird.f32 %v1247
          %vm1254 = vmor %vm1252, %vm1253
          %v1255 = vsel %vm1254, %v1247, %v1251
          %v1256 = vand.u32 2147483647, %v1246
          %vm1257 = vcmp.eq.f32.partialorder %v1256, 8.507059e+37
          %v1258 = vand.u32 %v1246, 2147483648
          %v1259 = vor.u32 1.1754944e-38, %v1258
          %v1260 = vsel %vm1257, %v1259, %v1255
          %v1261 = vmul.f32 1.0, %v1260
          %v1262 = vtanh.pop %v1205
          %v1263 = vmul.f32 %v1261, %v1136
          %1265 = vrot.lane.b32.xlu0 %v1262, 32
          %v1266 = vpop.permute.xlu0 %1265
          %v1268 = vmul.f32 %v1261, %v1266
          %1270 = vrot.lane.b32.xlu0 %v1268, 32
          %v1271 = vpop.permute.xlu0 %1270
          %v1273 = vadd.f32 %v1263, %v1271
          %v1274 = vtanh.pop %v1273
          %1276 = vrot.lane.b32.xlu0 %v1274, 32
          %v1277 = vpop.permute.xlu0 %1276
          %v1279 = vmul.f32 %v1261, %v1277
          %1281 = vrot.lane.b32.xlu0 %v1242, 64
          %v1282 = vpop.permute.xlu0 %1281
          %s1284 = scalar_lea.vmem [#allocation3], 32
          %1285 = vst.msk [vmem:[%s1284] sm:$0xff] %vm493, %v1282
          %1287 = vrot.lane.b32.xlu0 %v1279, 64
          %v1288 = vpop.permute.xlu0 %1287
          %s1290 = scalar_lea.vmem [#allocation4], 24
          %1291 = vst.msk [vmem:[%s1290] sm:$0xff] %vm493, %v1288
          %1292 = vrot.lane.b32.xlu0 %v1279, 96
          %v1293 = vpop.permute.xlu0 %1292
          %v1295 = vsel %vm493, %v1282, %v1293
          %v1297 = vsel %vm587, %v1295, 0
          %1299 = vmatpush.msra.mxu0 0.0
          %1300 = vmatpush.msra.mxu0 0.0
          %1301 = vmatpush.msra.mxu0 0.0
          %1302 = vmatpush.msra.mxu0 0.0
          %1303 = vmatpush.msra.mxu0 0.0
          %1304 = vmatpush.msra.mxu0 0.0
          %1305 = vmatpush.msra.mxu0 0.0
          %1306 = vmatpush.msra.mxu0 0.0
          %1307 = vmatpush.msra.mxu0 %v569
          %1308 = vmatpush.msra.mxu0 %v567
          %1309 = vmatpush.msra.mxu0 %v565
          %1310 = vmatpush.msra.mxu0 %v563
          %1311 = vmatpush.msra.mxu0 %v561
          %1312 = vmatpush.msra.mxu0 %v559
          %1313 = vmatpush.msra.mxu0 %v557
          %1314 = vmatpush.msra.mxu0 %v555
          %1315 = vmatmul.f32.gmra.mxu0 %v1297
          %v1316 = vpop.f32.mrf.mxu0
          %v1317 = vadd.f32 0.0, %v1316
          %1318 = vdwg.mxu0
          %1319 = vmatpush.msra.mxu0 0.0
          %1320 = vmatpush.msra.mxu0 0.0
          %1321 = vmatpush.msra.mxu0 0.0
          %1322 = vmatpush.msra.mxu0 0.0
          %1323 = vmatpush.msra.mxu0 0.0
          %1324 = vmatpush.msra.mxu0 0.0
          %1325 = vmatpush.msra.mxu0 0.0
          %1326 = vmatpush.msra.mxu0 0.0
          %1327 = vmatpush.msra.mxu0 %v570
          %1328 = vmatpush.msra.mxu0 %v568
          %1329 = vmatpush.msra.mxu0 %v566
          %1330 = vmatpush.msra.mxu0 %v564
          %1331 = vmatpush.msra.mxu0 %v562
          %1332 = vmatpush.msra.mxu0 %v560
          %1333 = vmatpush.msra.mxu0 %v558
          %1334 = vmatpush.msra.mxu0 %v556
          %1335 = vmatmul.f32.gmra.mxu0 %v1297
          %v1336 = vpop.f32.mrf.mxu0
          %v1337 = vadd.f32 0.0, %v1336
          %1338 = vdwg.mxu0
          %v1339 = vld [vmem:[%s923] sm:$0xff]
          %v1340 = vadd.f32 %v1339, %v1317
          %v1341 = vld [vmem:[%s918 + $0x8] sm:$0xff]
          %v1342 = vadd.f32 %v1341, %v1337
          %v1343 = vxor.u32 %v1340, 2147483648
          %v1344 = vmul.f32 %v1343, 1.442695
          %v1345 = vpow.pop %v1344
          %v1346 = vadd.f32 %v1345, 1.0
          %v1347 = vrcp.pop %v1346
          %v1348 = vmul.f32 %v1346, %v1347
          %v1349 = vsub.f32 1.0, %v1348
          %v1350 = vmul.f32 %v1347, %v1349
          %v1351 = vadd.f32 %v1347, %v1350
          %vm1352 = vweird.f32 %v1346
          %vm1353 = vweird.f32 %v1347
          %vm1354 = vmor %vm1352, %vm1353
          %v1355 = vsel %vm1354, %v1347, %v1351
          %v1356 = vand.u32 2147483647, %v1346
          %vm1357 = vcmp.eq.f32.partialorder %v1356, 8.507059e+37
          %v1358 = vand.u32 %v1346, 2147483648
          %v1359 = vor.u32 1.1754944e-38, %v1358
          %v1360 = vsel %vm1357, %v1359, %v1355
          %v1361 = vmul.f32 1.0, %v1360
          %v1362 = vtanh.pop %v1340
          %v1363 = vmul.f32 %v1361, %v1236
          %1365 = vrot.lane.b32.xlu0 %v1362, 32
          %v1366 = vpop.permute.xlu0 %1365
          %v1368 = vmul.f32 %v1361, %v1366
          %1370 = vrot.lane.b32.xlu0 %v1368, 32
          %v1371 = vpop.permute.xlu0 %1370
          %v1373 = vadd.f32 %v1363, %v1371
          %v1374 = vtanh.pop %v1373
          %1376 = vrot.lane.b32.xlu0 %v1374, 32
          %v1377 = vpop.permute.xlu0 %1376
          %v1379 = vmul.f32 %v1361, %v1377
          %v1380 = vxor.u32 %v1342, 2147483648
          %v1381 = vmul.f32 %v1380, 1.442695
          %v1382 = vpow.pop %v1381
          %v1383 = vadd.f32 %v1382, 1.0
          %v1384 = vrcp.pop %v1383
          %v1385 = vmul.f32 %v1383, %v1384
          %v1386 = vsub.f32 1.0, %v1385
          %v1387 = vmul.f32 %v1384, %v1386
          %v1388 = vadd.f32 %v1384, %v1387
          %vm1389 = vweird.f32 %v1383
          %vm1390 = vweird.f32 %v1384
          %vm1391 = vmor %vm1389, %vm1390
          %v1392 = vsel %vm1391, %v1384, %v1388
          %v1393 = vand.u32 2147483647, %v1383
          %vm1394 = vcmp.eq.f32.partialorder %v1393, 8.507059e+37
          %v1395 = vand.u32 %v1383, 2147483648
          %v1396 = vor.u32 1.1754944e-38, %v1395
          %v1397 = vsel %vm1394, %v1396, %v1392
          %v1398 = vmul.f32 1.0, %v1397
          %v1399 = vtanh.pop %v1342
          %v1400 = vmul.f32 %v1398, %v1273
          %1402 = vrot.lane.b32.xlu0 %v1399, 32
          %v1403 = vpop.permute.xlu0 %1402
          %v1405 = vmul.f32 %v1398, %v1403
          %1407 = vrot.lane.b32.xlu0 %v1405, 32
          %v1408 = vpop.permute.xlu0 %1407
          %v1410 = vadd.f32 %v1400, %v1408
          %v1411 = vtanh.pop %v1410
          %1413 = vrot.lane.b32.xlu0 %v1411, 32
          %v1414 = vpop.permute.xlu0 %1413
          %v1416 = vmul.f32 %v1398, %v1414
          %1418 = vrot.lane.b32.xlu0 %v1379, 64
          %v1419 = vpop.permute.xlu0 %1418
          %s1421 = scalar_lea.vmem [#allocation3], 40
          %1422 = vst.msk [vmem:[%s1421] sm:$0xff] %vm493, %v1419
          %1424 = vrot.lane.b32.xlu0 %v1416, 64
          %v1425 = vpop.permute.xlu0 %1424
          %s1427 = scalar_lea.vmem [#allocation4], 16
          %1428 = vst.msk [vmem:[%s1427] sm:$0xff] %vm493, %v1425
          %1429 = vrot.lane.b32.xlu0 %v1416, 96
          %v1430 = vpop.permute.xlu0 %1429
          %v1432 = vsel %vm493, %v1419, %v1430
          %v1434 = vsel %vm587, %v1432, 0
          %1436 = vmatpush.msra.mxu0 0.0
          %1437 = vmatpush.msra.mxu0 0.0
          %1438 = vmatpush.msra.mxu0 0.0
          %1439 = vmatpush.msra.mxu0 0.0
          %1440 = vmatpush.msra.mxu0 0.0
          %1441 = vmatpush.msra.mxu0 0.0
          %1442 = vmatpush.msra.mxu0 0.0
          %1443 = vmatpush.msra.mxu0 0.0
          %1444 = vmatpush.msra.mxu0 %v569
          %1445 = vmatpush.msra.mxu0 %v567
          %1446 = vmatpush.msra.mxu0 %v565
          %1447 = vmatpush.msra.mxu0 %v563
          %1448 = vmatpush.msra.mxu0 %v561
          %1449 = vmatpush.msra.mxu0 %v559
          %1450 = vmatpush.msra.mxu0 %v557
          %1451 = vmatpush.msra.mxu0 %v555
          %1452 = vmatmul.f32.gmra.mxu0 %v1434
          %v1453 = vpop.f32.mrf.mxu0
          %v1454 = vadd.f32 0.0, %v1453
          %1455 = vdwg.mxu0
          %1456 = vmatpush.msra.mxu0 0.0
          %1457 = vmatpush.msra.mxu0 0.0
          %1458 = vmatpush.msra.mxu0 0.0
          %1459 = vmatpush.msra.mxu0 0.0
          %1460 = vmatpush.msra.mxu0 0.0
          %1461 = vmatpush.msra.mxu0 0.0
          %1462 = vmatpush.msra.mxu0 0.0
          %1463 = vmatpush.msra.mxu0 0.0
          %1464 = vmatpush.msra.mxu0 %v570
          %1465 = vmatpush.msra.mxu0 %v568
          %1466 = vmatpush.msra.mxu0 %v566
          %1467 = vmatpush.msra.mxu0 %v564
          %1468 = vmatpush.msra.mxu0 %v562
          %1469 = vmatpush.msra.mxu0 %v560
          %1470 = vmatpush.msra.mxu0 %v558
          %1471 = vmatpush.msra.mxu0 %v556
          %1472 = vmatmul.f32.gmra.mxu0 %v1434
          %v1473 = vpop.f32.mrf.mxu0
          %v1474 = vadd.f32 0.0, %v1473
          %1475 = vdwg.mxu0
          %v1476 = vld [vmem:[%s780] sm:$0xff]
          %v1477 = vadd.f32 %v1476, %v1454
          %v1478 = vld [vmem:[%s775 + $0x8] sm:$0xff]
          %v1479 = vadd.f32 %v1478, %v1474
          %v1480 = vxor.u32 %v1477, 2147483648
          %v1481 = vmul.f32 %v1480, 1.442695
          %v1482 = vpow.pop %v1481
          %v1483 = vadd.f32 %v1482, 1.0
          %v1484 = vrcp.pop %v1483
          %v1485 = vmul.f32 %v1483, %v1484
          %v1486 = vsub.f32 1.0, %v1485
          %v1487 = vmul.f32 %v1484, %v1486
          %v1488 = vadd.f32 %v1484, %v1487
          %vm1489 = vweird.f32 %v1483
          %vm1490 = vweird.f32 %v1484
          %vm1491 = vmor %vm1489, %vm1490
          %v1492 = vsel %vm1491, %v1484, %v1488
          %v1493 = vand.u32 2147483647, %v1483
          %vm1494 = vcmp.eq.f32.partialorder %v1493, 8.507059e+37
          %v1495 = vand.u32 %v1483, 2147483648
          %v1496 = vor.u32 1.1754944e-38, %v1495
          %v1497 = vsel %vm1494, %v1496, %v1492
          %v1498 = vmul.f32 1.0, %v1497
          %v1499 = vtanh.pop %v1477
          %v1500 = vmul.f32 %v1498, %v1373
          %1502 = vrot.lane.b32.xlu0 %v1499, 32
          %v1503 = vpop.permute.xlu0 %1502
          %v1505 = vmul.f32 %v1498, %v1503
          %1507 = vrot.lane.b32.xlu0 %v1505, 32
          %v1508 = vpop.permute.xlu0 %1507
          %v1510 = vadd.f32 %v1500, %v1508
          %v1511 = vtanh.pop %v1510
          %1513 = vrot.lane.b32.xlu0 %v1511, 32
          %v1514 = vpop.permute.xlu0 %1513
          %v1516 = vmul.f32 %v1498, %v1514
          %v1517 = vxor.u32 %v1479, 2147483648
          %v1518 = vmul.f32 %v1517, 1.442695
          %v1519 = vpow.pop %v1518
          %v1520 = vadd.f32 %v1519, 1.0
          %v1521 = vrcp.pop %v1520
          %v1522 = vmul.f32 %v1520, %v1521
          %v1523 = vsub.f32 1.0, %v1522
          %v1524 = vmul.f32 %v1521, %v1523
          %v1525 = vadd.f32 %v1521, %v1524
          %vm1526 = vweird.f32 %v1520
          %vm1527 = vweird.f32 %v1521
          %vm1528 = vmor %vm1526, %vm1527
          %v1529 = vsel %vm1528, %v1521, %v1525
          %v1530 = vand.u32 2147483647, %v1520
          %vm1531 = vcmp.eq.f32.partialorder %v1530, 8.507059e+37
          %v1532 = vand.u32 %v1520, 2147483648
          %v1533 = vor.u32 1.1754944e-38, %v1532
          %v1534 = vsel %vm1531, %v1533, %v1529
          %v1535 = vmul.f32 1.0, %v1534
          %v1536 = vtanh.pop %v1479
          %v1537 = vmul.f32 %v1535, %v1410
          %1539 = vrot.lane.b32.xlu0 %v1536, 32
          %v1540 = vpop.permute.xlu0 %1539
          %v1542 = vmul.f32 %v1535, %v1540
          %1544 = vrot.lane.b32.xlu0 %v1542, 32
          %v1545 = vpop.permute.xlu0 %1544
          %v1547 = vadd.f32 %v1537, %v1545
          %v1548 = vtanh.pop %v1547
          %1550 = vrot.lane.b32.xlu0 %v1548, 32
          %v1551 = vpop.permute.xlu0 %1550
          %v1553 = vmul.f32 %v1535, %v1551
          %1555 = vrot.lane.b32.xlu0 %v1516, 64
          %v1556 = vpop.permute.xlu0 %1555
          %s1558 = scalar_lea.vmem [#allocation3], 48
          %1559 = vst.msk [vmem:[%s1558] sm:$0xff] %vm493, %v1556
          %1561 = vrot.lane.b32.xlu0 %v1553, 64
          %v1562 = vpop.permute.xlu0 %1561
          %s1564 = scalar_lea.vmem [#allocation4], 8
          %1565 = vst.msk [vmem:[%s1564] sm:$0xff] %vm493, %v1562
          %1566 = vrot.lane.b32.xlu0 %v1553, 96
          %v1567 = vpop.permute.xlu0 %1566
          %v1569 = vsel %vm493, %v1556, %v1567
          %v1571 = vsel %vm587, %v1569, 0
          %1573 = vmatpush.msra.mxu0 0.0
          %1574 = vmatpush.msra.mxu0 0.0
          %1575 = vmatpush.msra.mxu0 0.0
          %1576 = vmatpush.msra.mxu0 0.0
          %1577 = vmatpush.msra.mxu0 0.0
          %1578 = vmatpush.msra.mxu0 0.0
          %1579 = vmatpush.msra.mxu0 0.0
          %1580 = vmatpush.msra.mxu0 0.0
          %1581 = vmatpush.msra.mxu0 %v569
          %1582 = vmatpush.msra.mxu0 %v567
          %1583 = vmatpush.msra.mxu0 %v565
          %1584 = vmatpush.msra.mxu0 %v563
          %1585 = vmatpush.msra.mxu0 %v561
          %1586 = vmatpush.msra.mxu0 %v559
          %1587 = vmatpush.msra.mxu0 %v557
          %1588 = vmatpush.msra.mxu0 %v555
          %1589 = vmatmul.f32.gmra.mxu0 %v1571
          %v1590 = vpop.f32.mrf.mxu0
          %v1591 = vadd.f32 0.0, %v1590
          %1592 = vdwg.mxu0
          %1593 = vmatpush.msra.mxu0 0.0
          %1594 = vmatpush.msra.mxu0 0.0
          %1595 = vmatpush.msra.mxu0 0.0
          %1596 = vmatpush.msra.mxu0 0.0
          %1597 = vmatpush.msra.mxu0 0.0
          %1598 = vmatpush.msra.mxu0 0.0
          %1599 = vmatpush.msra.mxu0 0.0
          %1600 = vmatpush.msra.mxu0 0.0
          %1601 = vmatpush.msra.mxu0 %v570
          %1602 = vmatpush.msra.mxu0 %v568
          %1603 = vmatpush.msra.mxu0 %v566
          %1604 = vmatpush.msra.mxu0 %v564
          %1605 = vmatpush.msra.mxu0 %v562
          %1606 = vmatpush.msra.mxu0 %v560
          %1607 = vmatpush.msra.mxu0 %v558
          %1608 = vmatpush.msra.mxu0 %v556
          %1609 = vmatmul.f32.gmra.mxu0 %v1571
          %v1610 = vpop.f32.mrf.mxu0
          %v1611 = vadd.f32 0.0, %v1610
          %1612 = vdwg.mxu0
          %v1613 = vld [vmem:[%s638] sm:$0xff]
          %v1614 = vadd.f32 %v1613, %v1591
          %v1615 = vld [vmem:[%s633 + $0x8] sm:$0xff]
          %v1616 = vadd.f32 %v1615, %v1611
          %v1617 = vxor.u32 %v1614, 2147483648
          %v1618 = vmul.f32 %v1617, 1.442695
          %v1619 = vpow.pop %v1618
          %v1620 = vadd.f32 %v1619, 1.0
          %v1621 = vrcp.pop %v1620
          %v1622 = vmul.f32 %v1620, %v1621
          %v1623 = vsub.f32 1.0, %v1622
          %v1624 = vmul.f32 %v1621, %v1623
          %v1625 = vadd.f32 %v1621, %v1624
          %vm1626 = vweird.f32 %v1620
          %vm1627 = vweird.f32 %v1621
          %vm1628 = vmor %vm1626, %vm1627
          %v1629 = vsel %vm1628, %v1621, %v1625
          %v1630 = vand.u32 2147483647, %v1620
          %vm1631 = vcmp.eq.f32.partialorder %v1630, 8.507059e+37
          %v1632 = vand.u32 %v1620, 2147483648
          %v1633 = vor.u32 1.1754944e-38, %v1632
          %v1634 = vsel %vm1631, %v1633, %v1629
          %v1635 = vmul.f32 1.0, %v1634
          %v1636 = vtanh.pop %v1614
          %v1637 = vmul.f32 %v1635, %v1510
          %1639 = vrot.lane.b32.xlu0 %v1636, 32
          %v1640 = vpop.permute.xlu0 %1639
          %v1642 = vmul.f32 %v1635, %v1640
          %1644 = vrot.lane.b32.xlu0 %v1642, 32
          %v1645 = vpop.permute.xlu0 %1644
          %v1647 = vadd.f32 %v1637, %v1645
          %v1648 = vtanh.pop %v1647
          %1650 = vrot.lane.b32.xlu0 %v1648, 32
          %v1651 = vpop.permute.xlu0 %1650
          %v1653 = vmul.f32 %v1635, %v1651
          %v1654 = vxor.u32 %v1616, 2147483648
          %v1655 = vmul.f32 %v1654, 1.442695
          %v1656 = vpow.pop %v1655
          %v1657 = vadd.f32 %v1656, 1.0
          %v1658 = vrcp.pop %v1657
          %v1659 = vmul.f32 %v1657, %v1658
          %v1660 = vsub.f32 1.0, %v1659
          %v1661 = vmul.f32 %v1658, %v1660
          %v1662 = vadd.f32 %v1658, %v1661
          %vm1663 = vweird.f32 %v1657
          %vm1664 = vweird.f32 %v1658
          %vm1665 = vmor %vm1663, %vm1664
          %v1666 = vsel %vm1665, %v1658, %v1662
          %v1667 = vand.u32 2147483647, %v1657
          %vm1668 = vcmp.eq.f32.partialorder %v1667, 8.507059e+37
          %v1669 = vand.u32 %v1657, 2147483648
          %v1670 = vor.u32 1.1754944e-38, %v1669
          %v1671 = vsel %vm1668, %v1670, %v1666
          %v1672 = vmul.f32 1.0, %v1671
          %v1673 = vtanh.pop %v1616
          %v1674 = vmul.f32 %v1672, %v1547
          %1676 = vrot.lane.b32.xlu0 %v1673, 32
          %v1677 = vpop.permute.xlu0 %1676
          %v1679 = vmul.f32 %v1672, %v1677
          %1681 = vrot.lane.b32.xlu0 %v1679, 32
          %v1682 = vpop.permute.xlu0 %1681
          %v1684 = vadd.f32 %v1674, %v1682
          %v1685 = vtanh.pop %v1684
          %1687 = vrot.lane.b32.xlu0 %v1685, 32
          %v1688 = vpop.permute.xlu0 %1687
          %v1690 = vmul.f32 %v1672, %v1688
          %1692 = vrot.lane.b32.xlu0 %v1653, 64
          %v1693 = vpop.permute.xlu0 %1692
          %s1695 = scalar_lea.vmem [#allocation3], 56
          %1696 = vst.msk [vmem:[%s1695] sm:$0xff] %vm493, %v1693
          %1698 = vrot.lane.b32.xlu0 %v1690, 64
          %v1699 = vpop.permute.xlu0 %1698
          %1701 = vst.msk [vmem:[#allocation4] sm:$0xff] %vm493, %v1699
          %v1702 = vld [vmem:[#allocation3] sm:$0xff]
          %v1703 = vld [vmem:[#allocation3 + $0x8] sm:$0xff]
          %v1704 = vld [vmem:[#allocation3 + $0x10] sm:$0xff]
          %v1705 = vld [vmem:[#allocation3 + $0x18] sm:$0xff]
          %v1706 = vld [vmem:[#allocation3 + $0x20] sm:$0xff]
          %v1707 = vld [vmem:[#allocation3 + $0x28] sm:$0xff]
          %v1708 = vld [vmem:[#allocation3 + $0x30] sm:$0xff]
          %v1709 = vld [vmem:[#allocation3 + $0x38] sm:$0xff]
          %v1710 = vpack.c.bf16 %v1703, %v1702
          %v1711 = vpack.c.bf16 %v1705, %v1704
          %v1712 = vpack.c.bf16 %v1707, %v1706
          %v1713 = vpack.c.bf16 %v1709, %v1708
          %v1714 = vld [vmem:[%s4] sm:$0xff]
          %v1715 = vld [vmem:[%s4 + $0x8] sm:$0xff]
          %v1716 = vld [vmem:[%s4 + $0x10] sm:$0xff]
          %v1717 = vld [vmem:[%s4 + $0x18] sm:$0xff]
          %v1718 = vld [vmem:[#allocation4] sm:$0xff]
          %v1719 = vld [vmem:[#allocation4 + $0x8] sm:$0xff]
          %v1720 = vld [vmem:[#allocation4 + $0x10] sm:$0xff]
          %v1721 = vld [vmem:[#allocation4 + $0x18] sm:$0xff]
          %v1722 = vld [vmem:[#allocation4 + $0x20] sm:$0xff]
          %v1723 = vld [vmem:[#allocation4 + $0x28] sm:$0xff]
          %v1724 = vld [vmem:[#allocation4 + $0x30] sm:$0xff]
          %v1725 = vld [vmem:[#allocation4 + $0x38] sm:$0xff]
          %v1726 = vpack.c.bf16 %v1719, %v1718
          %v1727 = vpack.c.bf16 %v1721, %v1720
          %v1728 = vpack.c.bf16 %v1723, %v1722
          %v1729 = vpack.c.bf16 %v1725, %v1724
          %v1730 = vld [vmem:[%s5] sm:$0xff]
          %v1731 = vld [vmem:[%s5 + $0x8] sm:$0xff]
          %v1732 = vld [vmem:[%s5 + $0x10] sm:$0xff]
          %v1733 = vld [vmem:[%s5 + $0x18] sm:$0xff]
          %v1738 = vunpack.c.l.b16 %v1730
          %v1739 = vunpack.c.h.b16 %v1730
          %v1740 = vunpack.c.l.b16 %v1731
          %v1741 = vunpack.c.h.b16 %v1731
          %v1742 = vunpack.c.l.b16 %v1732
          %v1743 = vunpack.c.h.b16 %v1732
          %v1744 = vunpack.c.l.b16 %v1733
          %v1745 = vunpack.c.h.b16 %v1733
          %v1746 = vpack.c.b16 %v1740, %v1738
          %v1747 = vpack.c.b16 %v1741, %v1739
          %v1748 = vpack.c.b16 %v1744, %v1742
          %v1749 = vpack.c.b16 %v1745, %v1743
          %v1755 = vsel %vm493, %v1726, 0
          %v1758 = vsel %vm493, %v1727, 0
          %v1761 = vsel %vm493, %v1728, 0
          %v1764 = vsel %vm493, %v1729, 0
          %1766 = vmatpush.bf16.msra.mxu0 0
          %1767 = vmatpush.bf16.msra.mxu0 0
          %1768 = vmatpush.bf16.msra.mxu0 0
          %1769 = vmatpush.bf16.msra.mxu0 0
          %1770 = vmatpush.bf16.msra.mxu0 0
          %1771 = vmatpush.bf16.msra.mxu0 0
          %1772 = vmatpush.bf16.msra.mxu0 %v1748
          %1773 = vmatpush.bf16.msra.mxu0 %v1746
          %1774 = vmatmul.bf16.gmra.mxu0 %v1755
          %v1775 = vpop.f32.mrf.mxu0
          %v1776 = vadd.f32 0.0, %v1775
          %v1777 = vpop.f32.mrf.mxu0
          %v1778 = vadd.f32 0.0, %v1777
          %1779 = vmatmul.bf16.gmra.mxu0 %v1758
          %v1780 = vpop.f32.mrf.mxu0
          %v1781 = vadd.f32 0.0, %v1780
          %v1782 = vpop.f32.mrf.mxu0
          %v1783 = vadd.f32 0.0, %v1782
          %1784 = vmatmul.bf16.gmra.mxu0 %v1761
          %v1785 = vpop.f32.mrf.mxu0
          %v1786 = vadd.f32 0.0, %v1785
          %v1787 = vpop.f32.mrf.mxu0
          %v1788 = vadd.f32 0.0, %v1787
          %1789 = vmatmul.bf16.gmra.mxu0 %v1764
          %v1790 = vpop.f32.mrf.mxu0
          %v1791 = vadd.f32 0.0, %v1790
          %v1792 = vpop.f32.mrf.mxu0
          %v1793 = vadd.f32 0.0, %v1792
          %1794 = vdwg.mxu0
          %1795 = vmatpush.bf16.msra.mxu0 0
          %1796 = vmatpush.bf16.msra.mxu0 0
          %1797 = vmatpush.bf16.msra.mxu0 0
          %1798 = vmatpush.bf16.msra.mxu0 0
          %1799 = vmatpush.bf16.msra.mxu0 0
          %1800 = vmatpush.bf16.msra.mxu0 0
          %1801 = vmatpush.bf16.msra.mxu0 %v1749
          %1802 = vmatpush.bf16.msra.mxu0 %v1747
          %1803 = vmatmul.bf16.gmra.mxu0 %v1755
          %v1804 = vpop.f32.mrf.mxu0
          %v1805 = vadd.f32 0.0, %v1804
          %v1806 = vpop.f32.mrf.mxu0
          %v1807 = vadd.f32 0.0, %v1806
          %1808 = vmatmul.bf16.gmra.mxu0 %v1758
          %v1809 = vpop.f32.mrf.mxu0
          %v1810 = vadd.f32 0.0, %v1809
          %v1811 = vpop.f32.mrf.mxu0
          %v1812 = vadd.f32 0.0, %v1811
          %1813 = vmatmul.bf16.gmra.mxu0 %v1761
          %v1814 = vpop.f32.mrf.mxu0
          %v1815 = vadd.f32 0.0, %v1814
          %v1816 = vpop.f32.mrf.mxu0
          %v1817 = vadd.f32 0.0, %v1816
          %1818 = vmatmul.bf16.gmra.mxu0 %v1764
          %v1819 = vpop.f32.mrf.mxu0
          %v1820 = vadd.f32 0.0, %v1819
          %v1821 = vpop.f32.mrf.mxu0
          %v1822 = vadd.f32 0.0, %v1821
          %1823 = vdwg.mxu0
          %v1828 = vunpack.c.l.b16 %v1714
          %v1829 = vunpack.c.h.b16 %v1714
          %v1830 = vunpack.c.l.b16 %v1715
          %v1831 = vunpack.c.h.b16 %v1715
          %v1832 = vunpack.c.l.b16 %v1716
          %v1833 = vunpack.c.h.b16 %v1716
          %v1834 = vunpack.c.l.b16 %v1717
          %v1835 = vunpack.c.h.b16 %v1717
          %v1836 = vpack.c.b16 %v1830, %v1828
          %v1837 = vpack.c.b16 %v1831, %v1829
          %v1838 = vpack.c.b16 %v1834, %v1832
          %v1839 = vpack.c.b16 %v1835, %v1833
          %v1845 = vsel %vm493, %v1710, 0
          %v1848 = vsel %vm493, %v1711, 0
          %v1851 = vsel %vm493, %v1712, 0
          %v1854 = vsel %vm493, %v1713, 0
          %1856 = vmatpush.bf16.msra.mxu0 0
          %1857 = vmatpush.bf16.msra.mxu0 0
          %1858 = vmatpush.bf16.msra.mxu0 0
          %1859 = vmatpush.bf16.msra.mxu0 0
          %1860 = vmatpush.bf16.msra.mxu0 0
          %1861 = vmatpush.bf16.msra.mxu0 0
          %1862 = vmatpush.bf16.msra.mxu0 %v1838
          %1863 = vmatpush.bf16.msra.mxu0 %v1836
          %1864 = vmatmul.bf16.gmra.mxu0 %v1845
          %v1865 = vpop.f32.mrf.mxu0
          %v1866 = vadd.f32 %v1776, %v1865
          %v1867 = vpop.f32.mrf.mxu0
          %v1868 = vadd.f32 %v1778, %v1867
          %1869 = vmatmul.bf16.gmra.mxu0 %v1848
          %v1870 = vpop.f32.mrf.mxu0
          %v1871 = vadd.f32 %v1781, %v1870
          %v1872 = vpop.f32.mrf.mxu0
          %v1873 = vadd.f32 %v1783, %v1872
          %1874 = vmatmul.bf16.gmra.mxu0 %v1851
          %v1875 = vpop.f32.mrf.mxu0
          %v1876 = vadd.f32 %v1786, %v1875
          %v1877 = vpop.f32.mrf.mxu0
          %v1878 = vadd.f32 %v1788, %v1877
          %1879 = vmatmul.bf16.gmra.mxu0 %v1854
          %v1880 = vpop.f32.mrf.mxu0
          %v1881 = vadd.f32 %v1791, %v1880
          %v1882 = vpop.f32.mrf.mxu0
          %v1883 = vadd.f32 %v1793, %v1882
          %1884 = vdwg.mxu0
          %1885 = vmatpush.bf16.msra.mxu0 0
          %1886 = vmatpush.bf16.msra.mxu0 0
          %1887 = vmatpush.bf16.msra.mxu0 0
          %1888 = vmatpush.bf16.msra.mxu0 0
          %1889 = vmatpush.bf16.msra.mxu0 0
          %1890 = vmatpush.bf16.msra.mxu0 0
          %1891 = vmatpush.bf16.msra.mxu0 %v1839
          %1892 = vmatpush.bf16.msra.mxu0 %v1837
          %1893 = vmatmul.bf16.gmra.mxu0 %v1845
          %v1894 = vpop.f32.mrf.mxu0
          %v1895 = vadd.f32 %v1805, %v1894
          %v1896 = vpop.f32.mrf.mxu0
          %v1897 = vadd.f32 %v1807, %v1896
          %1898 = vmatmul.bf16.gmra.mxu0 %v1848
          %v1899 = vpop.f32.mrf.mxu0
          %v1900 = vadd.f32 %v1810, %v1899
          %v1901 = vpop.f32.mrf.mxu0
          %v1902 = vadd.f32 %v1812, %v1901
          %1903 = vmatmul.bf16.gmra.mxu0 %v1851
          %v1904 = vpop.f32.mrf.mxu0
          %v1905 = vadd.f32 %v1815, %v1904
          %v1906 = vpop.f32.mrf.mxu0
          %v1907 = vadd.f32 %v1817, %v1906
          %1908 = vmatmul.bf16.gmra.mxu0 %v1854
          %v1909 = vpop.f32.mrf.mxu0
          %v1910 = vadd.f32 %v1820, %v1909
          %v1911 = vpop.f32.mrf.mxu0
          %v1912 = vadd.f32 %v1822, %v1911
          %1913 = vdwg.mxu0
          %v1914 = vld [vmem:[%s6] sm:$0x3]
          %v1916 = vperm.slane %v1914, 0
          %v1917 = vperm.slane %v1914, 1
          %v1920 = vadd.f32 %v1866, %v1916
          %v1921 = vadd.f32 %v1895, %v1917
          %v1922 = vadd.f32 %v1868, %v1916
          %v1923 = vadd.f32 %v1897, %v1917
          %v1924 = vadd.f32 %v1871, %v1916
          %v1925 = vadd.f32 %v1900, %v1917
          %v1926 = vadd.f32 %v1873, %v1916
          %v1927 = vadd.f32 %v1902, %v1917
          %v1928 = vadd.f32 %v1876, %v1916
          %v1929 = vadd.f32 %v1905, %v1917
          %v1930 = vadd.f32 %v1878, %v1916
          %v1931 = vadd.f32 %v1907, %v1917
          %v1932 = vadd.f32 %v1881, %v1916
          %v1933 = vadd.f32 %v1910, %v1917
          %v1934 = vadd.f32 %v1883, %v1916
          %v1935 = vadd.f32 %v1912, %v1917
          %1936 = vst [vmem:[#allocation2] sm:$0xff] %v1920
          %1937 = vst [vmem:[#allocation2 + $0x8] sm:$0xff] %v1921
          %1938 = vst [vmem:[#allocation2 + $0x10] sm:$0xff] %v1922
          %1939 = vst [vmem:[#allocation2 + $0x18] sm:$0xff] %v1923
          %1940 = vst [vmem:[#allocation2 + $0x20] sm:$0xff] %v1924
          %1941 = vst [vmem:[#allocation2 + $0x28] sm:$0xff] %v1925
          %1942 = vst [vmem:[#allocation2 + $0x30] sm:$0xff] %v1926
          %1943 = vst [vmem:[#allocation2 + $0x38] sm:$0xff] %v1927
          %1944 = vst [vmem:[#allocation2 + $0x40] sm:$0xff] %v1928
          %1945 = vst [vmem:[#allocation2 + $0x48] sm:$0xff] %v1929
          %1946 = vst [vmem:[#allocation2 + $0x50] sm:$0xff] %v1930
          %1947 = vst [vmem:[#allocation2 + $0x58] sm:$0xff] %v1931
          %1948 = vst [vmem:[#allocation2 + $0x60] sm:$0xff] %v1932
          %1949 = vst [vmem:[#allocation2 + $0x68] sm:$0xff] %v1933
          %1950 = vst [vmem:[#allocation2 + $0x70] sm:$0xff] %v1934
          %1951 = vst [vmem:[#allocation2 + $0x78] sm:$0xff] %v1935
          %1952 = vmatpush.msra.mxu0 0.0
          %1953 = vmatpush.msra.mxu0 0.0
          %1954 = vmatpush.msra.mxu0 0.0
          %1955 = vmatpush.msra.mxu0 0.0
          %1956 = vmatpush.msra.mxu0 0.0
          %1957 = vmatpush.msra.mxu0 0.0
          %1958 = vmatpush.msra.mxu0 0.0
          %1959 = vmatpush.msra.mxu0 0.0
          %1960 = vmatpush.msra.mxu0 %v585
          %1961 = vmatpush.msra.mxu0 %v583
          %1962 = vmatpush.msra.mxu0 %v581
          %1963 = vmatpush.msra.mxu0 %v579
          %1964 = vmatpush.msra.mxu0 %v577
          %1965 = vmatpush.msra.mxu0 %v575
          %1966 = vmatpush.msra.mxu0 %v573
          %1967 = vmatpush.msra.mxu0 %v571
          %1968 = vmatmul.f32.gmra.mxu0 %v589
          %v1969 = vpop.f32.mrf.mxu0
          %v1970 = vadd.f32 0.0, %v1969
          %1971 = vdwg.mxu0
          %1972 = vmatpush.msra.mxu0 0.0
          %1973 = vmatpush.msra.mxu0 0.0
          %1974 = vmatpush.msra.mxu0 0.0
          %1975 = vmatpush.msra.mxu0 0.0
          %1976 = vmatpush.msra.mxu0 0.0
          %1977 = vmatpush.msra.mxu0 0.0
          %1978 = vmatpush.msra.mxu0 0.0
          %1979 = vmatpush.msra.mxu0 0.0
          %1980 = vmatpush.msra.mxu0 %v586
          %1981 = vmatpush.msra.mxu0 %v584
          %1982 = vmatpush.msra.mxu0 %v582
          %1983 = vmatpush.msra.mxu0 %v580
          %1984 = vmatpush.msra.mxu0 %v578
          %1985 = vmatpush.msra.mxu0 %v576
          %1986 = vmatpush.msra.mxu0 %v574
          %1987 = vmatpush.msra.mxu0 %v572
          %1988 = vmatmul.f32.gmra.mxu0 %v589
          %v1989 = vpop.f32.mrf.mxu0
          %v1990 = vadd.f32 0.0, %v1989
          %1991 = vdwg.mxu0
          %v1992 = vld [vmem:[%s633] sm:$0xff]
          %v1993 = vadd.f32 %v1992, %v1970
          %v1994 = vld [vmem:[%s638 + $0x8] sm:$0xff]
          %v1995 = vadd.f32 %v1994, %v1990
          %v1996 = vxor.u32 %v1993, 2147483648
          %v1997 = vmul.f32 %v1996, 1.442695
          %v1998 = vpow.pop %v1997
          %v1999 = vadd.f32 %v1998, 1.0
          %v2000 = vrcp.pop %v1999
          %v2001 = vmul.f32 %v1999, %v2000
          %v2002 = vsub.f32 1.0, %v2001
          %v2003 = vmul.f32 %v2000, %v2002
          %v2004 = vadd.f32 %v2000, %v2003
          %vm2005 = vweird.f32 %v1999
          %vm2006 = vweird.f32 %v2000
          %vm2007 = vmor %vm2005, %vm2006
          %v2008 = vsel %vm2007, %v2000, %v2004
          %v2009 = vand.u32 2147483647, %v1999
          %vm2010 = vcmp.eq.f32.partialorder %v2009, 8.507059e+37
          %v2011 = vand.u32 %v1999, 2147483648
          %v2012 = vor.u32 1.1754944e-38, %v2011
          %v2013 = vsel %vm2010, %v2012, %v2008
          %v2014 = vmul.f32 1.0, %v2013
          %v2015 = vtanh.pop %v1993
          %v2016 = vmul.f32 %v2014, 0.0
          %2018 = vrot.lane.b32.xlu0 %v2015, 32
          %v2019 = vpop.permute.xlu0 %2018
          %v2021 = vmul.f32 %v2014, %v2019
          %2023 = vrot.lane.b32.xlu0 %v2021, 32
          %v2024 = vpop.permute.xlu0 %2023
          %v2026 = vadd.f32 %v2016, %v2024
          %v2027 = vtanh.pop %v2026
          %2029 = vrot.lane.b32.xlu0 %v2027, 32
          %v2030 = vpop.permute.xlu0 %2029
          %v2032 = vmul.f32 %v2014, %v2030
          %v2033 = vxor.u32 %v1995, 2147483648
          %v2034 = vmul.f32 %v2033, 1.442695
          %v2035 = vpow.pop %v2034
          %v2036 = vadd.f32 %v2035, 1.0
          %v2037 = vrcp.pop %v2036
          %v2038 = vmul.f32 %v2036, %v2037
          %v2039 = vsub.f32 1.0, %v2038
          %v2040 = vmul.f32 %v2037, %v2039
          %v2041 = vadd.f32 %v2037, %v2040
          %vm2042 = vweird.f32 %v2036
          %vm2043 = vweird.f32 %v2037
          %vm2044 = vmor %vm2042, %vm2043
          %v2045 = vsel %vm2044, %v2037, %v2041
          %v2046 = vand.u32 2147483647, %v2036
          %vm2047 = vcmp.eq.f32.partialorder %v2046, 8.507059e+37
          %v2048 = vand.u32 %v2036, 2147483648
          %v2049 = vor.u32 1.1754944e-38, %v2048
          %v2050 = vsel %vm2047, %v2049, %v2045
          %v2051 = vmul.f32 1.0, %v2050
          %v2052 = vtanh.pop %v1995
          %v2053 = vmul.f32 %v2051, 0.0
          %2055 = vrot.lane.b32.xlu0 %v2052, 32
          %v2056 = vpop.permute.xlu0 %2055
          %v2058 = vmul.f32 %v2051, %v2056
          %2060 = vrot.lane.b32.xlu0 %v2058, 32
          %v2061 = vpop.permute.xlu0 %2060
          %v2063 = vadd.f32 %v2053, %v2061
          %v2064 = vtanh.pop %v2063
          %2066 = vrot.lane.b32.xlu0 %v2064, 32
          %v2067 = vpop.permute.xlu0 %2066
          %v2069 = vmul.f32 %v2051, %v2067
          %2071 = vrot.lane.b32.xlu0 %v2032, 64
          %v2072 = vpop.permute.xlu0 %2071
          %2075 = vrot.lane.b32.xlu0 %v2069, 96
          %v2076 = vpop.permute.xlu0 %2075
          %v2078 = vsel %vm493, %v2072, %v2076
          %v2080 = vsel %vm587, %v2078, 0
          %2082 = vmatpush.msra.mxu0 0.0
          %2083 = vmatpush.msra.mxu0 0.0
          %2084 = vmatpush.msra.mxu0 0.0
          %2085 = vmatpush.msra.mxu0 0.0
          %2086 = vmatpush.msra.mxu0 0.0
          %2087 = vmatpush.msra.mxu0 0.0
          %2088 = vmatpush.msra.mxu0 0.0
          %2089 = vmatpush.msra.mxu0 0.0
          %2090 = vmatpush.msra.mxu0 %v585
          %2091 = vmatpush.msra.mxu0 %v583
          %2092 = vmatpush.msra.mxu0 %v581
          %2093 = vmatpush.msra.mxu0 %v579
          %2094 = vmatpush.msra.mxu0 %v577
          %2095 = vmatpush.msra.mxu0 %v575
          %2096 = vmatpush.msra.mxu0 %v573
          %2097 = vmatpush.msra.mxu0 %v571
          %2098 = vmatmul.f32.gmra.mxu0 %v2080
          %v2099 = vpop.f32.mrf.mxu0
          %v2100 = vadd.f32 0.0, %v2099
          %2101 = vdwg.mxu0
          %2102 = vmatpush.msra.mxu0 0.0
          %2103 = vmatpush.msra.mxu0 0.0
          %2104 = vmatpush.msra.mxu0 0.0
          %2105 = vmatpush.msra.mxu0 0.0
          %2106 = vmatpush.msra.mxu0 0.0
          %2107 = vmatpush.msra.mxu0 0.0
          %2108 = vmatpush.msra.mxu0 0.0
          %2109 = vmatpush.msra.mxu0 0.0
          %2110 = vmatpush.msra.mxu0 %v586
          %2111 = vmatpush.msra.mxu0 %v584
          %2112 = vmatpush.msra.mxu0 %v582
          %2113 = vmatpush.msra.mxu0 %v580
          %2114 = vmatpush.msra.mxu0 %v578
          %2115 = vmatpush.msra.mxu0 %v576
          %2116 = vmatpush.msra.mxu0 %v574
          %2117 = vmatpush.msra.mxu0 %v572
          %2118 = vmatmul.f32.gmra.mxu0 %v2080
          %v2119 = vpop.f32.mrf.mxu0
          %v2120 = vadd.f32 0.0, %v2119
          %2121 = vdwg.mxu0
          %v2122 = vld [vmem:[%s775] sm:$0xff]
          %v2123 = vadd.f32 %v2122, %v2100
          %v2124 = vld [vmem:[%s780 + $0x8] sm:$0xff]
          %v2125 = vadd.f32 %v2124, %v2120
          %v2126 = vxor.u32 %v2123, 2147483648
          %v2127 = vmul.f32 %v2126, 1.442695
          %v2128 = vpow.pop %v2127
          %v2129 = vadd.f32 %v2128, 1.0
          %v2130 = vrcp.pop %v2129
          %v2131 = vmul.f32 %v2129, %v2130
          %v2132 = vsub.f32 1.0, %v2131
          %v2133 = vmul.f32 %v2130, %v2132
          %v2134 = vadd.f32 %v2130, %v2133
          %vm2135 = vweird.f32 %v2129
          %vm2136 = vweird.f32 %v2130
          %vm2137 = vmor %vm2135, %vm2136
          %v2138 = vsel %vm2137, %v2130, %v2134
          %v2139 = vand.u32 2147483647, %v2129
          %vm2140 = vcmp.eq.f32.partialorder %v2139, 8.507059e+37
          %v2141 = vand.u32 %v2129, 2147483648
          %v2142 = vor.u32 1.1754944e-38, %v2141
          %v2143 = vsel %vm2140, %v2142, %v2138
          %v2144 = vmul.f32 1.0, %v2143
          %v2145 = vtanh.pop %v2123
          %v2146 = vmul.f32 %v2144, %v2026
          %2148 = vrot.lane.b32.xlu0 %v2145, 32
          %v2149 = vpop.permute.xlu0 %2148
          %v2151 = vmul.f32 %v2144, %v2149
          %2153 = vrot.lane.b32.xlu0 %v2151, 32
          %v2154 = vpop.permute.xlu0 %2153
          %v2156 = vadd.f32 %v2146, %v2154
          %v2157 = vtanh.pop %v2156
          %2159 = vrot.lane.b32.xlu0 %v2157, 32
          %v2160 = vpop.permute.xlu0 %2159
          %v2162 = vmul.f32 %v2144, %v2160
          %v2163 = vxor.u32 %v2125, 2147483648
          %v2164 = vmul.f32 %v2163, 1.442695
          %v2165 = vpow.pop %v2164
          %v2166 = vadd.f32 %v2165, 1.0
          %v2167 = vrcp.pop %v2166
          %v2168 = vmul.f32 %v2166, %v2167
          %v2169 = vsub.f32 1.0, %v2168
          %v2170 = vmul.f32 %v2167, %v2169
          %v2171 = vadd.f32 %v2167, %v2170
          %vm2172 = vweird.f32 %v2166
          %vm2173 = vweird.f32 %v2167
          %vm2174 = vmor %vm2172, %vm2173
          %v2175 = vsel %vm2174, %v2167, %v2171
          %v2176 = vand.u32 2147483647, %v2166
          %vm2177 = vcmp.eq.f32.partialorder %v2176, 8.507059e+37
          %v2178 = vand.u32 %v2166, 2147483648
          %v2179 = vor.u32 1.1754944e-38, %v2178
          %v2180 = vsel %vm2177, %v2179, %v2175
          %v2181 = vmul.f32 1.0, %v2180
          %v2182 = vtanh.pop %v2125
          %v2183 = vmul.f32 %v2181, %v2063
          %2185 = vrot.lane.b32.xlu0 %v2182, 32
          %v2186 = vpop.permute.xlu0 %2185
          %v2188 = vmul.f32 %v2181, %v2186
          %2190 = vrot.lane.b32.xlu0 %v2188, 32
          %v2191 = vpop.permute.xlu0 %2190
          %v2193 = vadd.f32 %v2183, %v2191
          %v2194 = vtanh.pop %v2193
          %2196 = vrot.lane.b32.xlu0 %v2194, 32
          %v2197 = vpop.permute.xlu0 %2196
          %v2199 = vmul.f32 %v2181, %v2197
          %2201 = vrot.lane.b32.xlu0 %v2162, 64
          %v2202 = vpop.permute.xlu0 %2201
          %2205 = vrot.lane.b32.xlu0 %v2199, 96
          %v2206 = vpop.permute.xlu0 %2205
          %v2208 = vsel %vm493, %v2202, %v2206
          %v2210 = vsel %vm587, %v2208, 0
          %2212 = vmatpush.msra.mxu0 0.0
          %2213 = vmatpush.msra.mxu0 0.0
          %2214 = vmatpush.msra.mxu0 0.0
          %2215 = vmatpush.msra.mxu0 0.0
          %2216 = vmatpush.msra.mxu0 0.0
          %2217 = vmatpush.msra.mxu0 0.0
          %2218 = vmatpush.msra.mxu0 0.0
          %2219 = vmatpush.msra.mxu0 0.0
          %2220 = vmatpush.msra.mxu0 %v585
          %2221 = vmatpush.msra.mxu0 %v583
          %2222 = vmatpush.msra.mxu0 %v581
          %2223 = vmatpush.msra.mxu0 %v579
          %2224 = vmatpush.msra.mxu0 %v577
          %2225 = vmatpush.msra.mxu0 %v575
          %2226 = vmatpush.msra.mxu0 %v573
          %2227 = vmatpush.msra.mxu0 %v571
          %2228 = vmatmul.f32.gmra.mxu0 %v2210
          %v2229 = vpop.f32.mrf.mxu0
          %v2230 = vadd.f32 0.0, %v2229
          %2231 = vdwg.mxu0
          %2232 = vmatpush.msra.mxu0 0.0
          %2233 = vmatpush.msra.mxu0 0.0
          %2234 = vmatpush.msra.mxu0 0.0
          %2235 = vmatpush.msra.mxu0 0.0
          %2236 = vmatpush.msra.mxu0 0.0
          %2237 = vmatpush.msra.mxu0 0.0
          %2238 = vmatpush.msra.mxu0 0.0
          %2239 = vmatpush.msra.mxu0 0.0
          %2240 = vmatpush.msra.mxu0 %v586
          %2241 = vmatpush.msra.mxu0 %v584
          %2242 = vmatpush.msra.mxu0 %v582
          %2243 = vmatpush.msra.mxu0 %v580
          %2244 = vmatpush.msra.mxu0 %v578
          %2245 = vmatpush.msra.mxu0 %v576
          %2246 = vmatpush.msra.mxu0 %v574
          %2247 = vmatpush.msra.mxu0 %v572
          %2248 = vmatmul.f32.gmra.mxu0 %v2210
          %v2249 = vpop.f32.mrf.mxu0
          %v2250 = vadd.f32 0.0, %v2249
          %2251 = vdwg.mxu0
          %v2252 = vld [vmem:[%s918] sm:$0xff]
          %v2253 = vadd.f32 %v2252, %v2230
          %v2254 = vld [vmem:[%s923 + $0x8] sm:$0xff]
          %v2255 = vadd.f32 %v2254, %v2250
          %v2256 = vxor.u32 %v2253, 2147483648
          %v2257 = vmul.f32 %v2256, 1.442695
          %v2258 = vpow.pop %v2257
          %v2259 = vadd.f32 %v2258, 1.0
          %v2260 = vrcp.pop %v2259
          %v2261 = vmul.f32 %v2259, %v2260
          %v2262 = vsub.f32 1.0, %v2261
          %v2263 = vmul.f32 %v2260, %v2262
          %v2264 = vadd.f32 %v2260, %v2263
          %vm2265 = vweird.f32 %v2259
          %vm2266 = vweird.f32 %v2260
          %vm2267 = vmor %vm2265, %vm2266
          %v2268 = vsel %vm2267, %v2260, %v2264
          %v2269 = vand.u32 2147483647, %v2259
          %vm2270 = vcmp.eq.f32.partialorder %v2269, 8.507059e+37
          %v2271 = vand.u32 %v2259, 2147483648
          %v2272 = vor.u32 1.1754944e-38, %v2271
          %v2273 = vsel %vm2270, %v2272, %v2268
          %v2274 = vmul.f32 1.0, %v2273
          %v2275 = vtanh.pop %v2253
          %v2276 = vmul.f32 %v2274, %v2156
          %2278 = vrot.lane.b32.xlu0 %v2275, 32
          %v2279 = vpop.permute.xlu0 %2278
          %v2281 = vmul.f32 %v2274, %v2279
          %2283 = vrot.lane.b32.xlu0 %v2281, 32
          %v2284 = vpop.permute.xlu0 %2283
          %v2286 = vadd.f32 %v2276, %v2284
          %v2287 = vtanh.pop %v2286
          %2289 = vrot.lane.b32.xlu0 %v2287, 32
          %v2290 = vpop.permute.xlu0 %2289
          %v2292 = vmul.f32 %v2274, %v2290
          %v2293 = vxor.u32 %v2255, 2147483648
          %v2294 = vmul.f32 %v2293, 1.442695
          %v2295 = vpow.pop %v2294
          %v2296 = vadd.f32 %v2295, 1.0
          %v2297 = vrcp.pop %v2296
          %v2298 = vmul.f32 %v2296, %v2297
          %v2299 = vsub.f32 1.0, %v2298
          %v2300 = vmul.f32 %v2297, %v2299
          %v2301 = vadd.f32 %v2297, %v2300
          %vm2302 = vweird.f32 %v2296
          %vm2303 = vweird.f32 %v2297
          %vm2304 = vmor %vm2302, %vm2303
          %v2305 = vsel %vm2304, %v2297, %v2301
          %v2306 = vand.u32 2147483647, %v2296
          %vm2307 = vcmp.eq.f32.partialorder %v2306, 8.507059e+37
          %v2308 = vand.u32 %v2296, 2147483648
          %v2309 = vor.u32 1.1754944e-38, %v2308
          %v2310 = vsel %vm2307, %v2309, %v2305
          %v2311 = vmul.f32 1.0, %v2310
          %v2312 = vtanh.pop %v2255
          %v2313 = vmul.f32 %v2311, %v2193
          %2315 = vrot.lane.b32.xlu0 %v2312, 32
          %v2316 = vpop.permute.xlu0 %2315
          %v2318 = vmul.f32 %v2311, %v2316
          %2320 = vrot.lane.b32.xlu0 %v2318, 32
          %v2321 = vpop.permute.xlu0 %2320
          %v2323 = vadd.f32 %v2313, %v2321
          %v2324 = vtanh.pop %v2323
          %2326 = vrot.lane.b32.xlu0 %v2324, 32
          %v2327 = vpop.permute.xlu0 %2326
          %v2329 = vmul.f32 %v2311, %v2327
          %2331 = vrot.lane.b32.xlu0 %v2292, 64
          %v2332 = vpop.permute.xlu0 %2331
          %2335 = vrot.lane.b32.xlu0 %v2329, 96
          %v2336 = vpop.permute.xlu0 %2335
          %v2338 = vsel %vm493, %v2332, %v2336
          %v2340 = vsel %vm587, %v2338, 0
          %2342 = vmatpush.msra.mxu0 0.0
          %2343 = vmatpush.msra.mxu0 0.0
          %2344 = vmatpush.msra.mxu0 0.0
          %2345 = vmatpush.msra.mxu0 0.0
          %2346 = vmatpush.msra.mxu0 0.0
          %2347 = vmatpush.msra.mxu0 0.0
          %2348 = vmatpush.msra.mxu0 0.0
          %2349 = vmatpush.msra.mxu0 0.0
          %2350 = vmatpush.msra.mxu0 %v585
          %2351 = vmatpush.msra.mxu0 %v583
          %2352 = vmatpush.msra.mxu0 %v581
          %2353 = vmatpush.msra.mxu0 %v579
          %2354 = vmatpush.msra.mxu0 %v577
          %2355 = vmatpush.msra.mxu0 %v575
          %2356 = vmatpush.msra.mxu0 %v573
          %2357 = vmatpush.msra.mxu0 %v571
          %2358 = vmatmul.f32.gmra.mxu0 %v2340
          %v2359 = vpop.f32.mrf.mxu0
          %v2360 = vadd.f32 0.0, %v2359
          %2361 = vdwg.mxu0
          %2362 = vmatpush.msra.mxu0 0.0
          %2363 = vmatpush.msra.mxu0 0.0
          %2364 = vmatpush.msra.mxu0 0.0
          %2365 = vmatpush.msra.mxu0 0.0
          %2366 = vmatpush.msra.mxu0 0.0
          %2367 = vmatpush.msra.mxu0 0.0
          %2368 = vmatpush.msra.mxu0 0.0
          %2369 = vmatpush.msra.mxu0 0.0
          %2370 = vmatpush.msra.mxu0 %v586
          %2371 = vmatpush.msra.mxu0 %v584
          %2372 = vmatpush.msra.mxu0 %v582
          %2373 = vmatpush.msra.mxu0 %v580
          %2374 = vmatpush.msra.mxu0 %v578
          %2375 = vmatpush.msra.mxu0 %v576
          %2376 = vmatpush.msra.mxu0 %v574
          %2377 = vmatpush.msra.mxu0 %v572
          %2378 = vmatmul.f32.gmra.mxu0 %v2340
          %v2379 = vpop.f32.mrf.mxu0
          %v2380 = vadd.f32 0.0, %v2379
          %2381 = vdwg.mxu0
          %v2382 = vld [vmem:[%s1061] sm:$0xff]
          %v2383 = vadd.f32 %v2382, %v2360
          %v2384 = vld [vmem:[%s1066 + $0x8] sm:$0xff]
          %v2385 = vadd.f32 %v2384, %v2380
          %v2386 = vxor.u32 %v2383, 2147483648
          %v2387 = vmul.f32 %v2386, 1.442695
          %v2388 = vpow.pop %v2387
          %v2389 = vadd.f32 %v2388, 1.0
          %v2390 = vrcp.pop %v2389
          %v2391 = vmul.f32 %v2389, %v2390
          %v2392 = vsub.f32 1.0, %v2391
          %v2393 = vmul.f32 %v2390, %v2392
          %v2394 = vadd.f32 %v2390, %v2393
          %vm2395 = vweird.f32 %v2389
          %vm2396 = vweird.f32 %v2390
          %vm2397 = vmor %vm2395, %vm2396
          %v2398 = vsel %vm2397, %v2390, %v2394
          %v2399 = vand.u32 2147483647, %v2389
          %vm2400 = vcmp.eq.f32.partialorder %v2399, 8.507059e+37
          %v2401 = vand.u32 %v2389, 2147483648
          %v2402 = vor.u32 1.1754944e-38, %v2401
          %v2403 = vsel %vm2400, %v2402, %v2398
          %v2404 = vmul.f32 1.0, %v2403
          %v2405 = vtanh.pop %v2383
          %v2406 = vmul.f32 %v2404, %v2286
          %2408 = vrot.lane.b32.xlu0 %v2405, 32
          %v2409 = vpop.permute.xlu0 %2408
          %v2411 = vmul.f32 %v2404, %v2409
          %2413 = vrot.lane.b32.xlu0 %v2411, 32
          %v2414 = vpop.permute.xlu0 %2413
          %v2416 = vadd.f32 %v2406, %v2414
          %v2417 = vtanh.pop %v2416
          %2419 = vrot.lane.b32.xlu0 %v2417, 32
          %v2420 = vpop.permute.xlu0 %2419
          %v2422 = vmul.f32 %v2404, %v2420
          %v2423 = vxor.u32 %v2385, 2147483648
          %v2424 = vmul.f32 %v2423, 1.442695
          %v2425 = vpow.pop %v2424
          %v2426 = vadd.f32 %v2425, 1.0
          %v2427 = vrcp.pop %v2426
          %v2428 = vmul.f32 %v2426, %v2427
          %v2429 = vsub.f32 1.0, %v2428
          %v2430 = vmul.f32 %v2427, %v2429
          %v2431 = vadd.f32 %v2427, %v2430
          %vm2432 = vweird.f32 %v2426
          %vm2433 = vweird.f32 %v2427
          %vm2434 = vmor %vm2432, %vm2433
          %v2435 = vsel %vm2434, %v2427, %v2431
          %v2436 = vand.u32 2147483647, %v2426
          %vm2437 = vcmp.eq.f32.partialorder %v2436, 8.507059e+37
          %v2438 = vand.u32 %v2426, 2147483648
          %v2439 = vor.u32 1.1754944e-38, %v2438
          %v2440 = vsel %vm2437, %v2439, %v2435
          %v2441 = vmul.f32 1.0, %v2440
          %v2442 = vtanh.pop %v2385
          %v2443 = vmul.f32 %v2441, %v2323
          %2445 = vrot.lane.b32.xlu0 %v2442, 32
          %v2446 = vpop.permute.xlu0 %2445
          %v2448 = vmul.f32 %v2441, %v2446
          %2450 = vrot.lane.b32.xlu0 %v2448, 32
          %v2451 = vpop.permute.xlu0 %2450
          %v2453 = vadd.f32 %v2443, %v2451
          %v2454 = vtanh.pop %v2453
          %2456 = vrot.lane.b32.xlu0 %v2454, 32
          %v2457 = vpop.permute.xlu0 %2456
          %v2459 = vmul.f32 %v2441, %v2457
          %2461 = vrot.lane.b32.xlu0 %v2422, 64
          %v2462 = vpop.permute.xlu0 %2461
          %2465 = vrot.lane.b32.xlu0 %v2459, 96
          %v2466 = vpop.permute.xlu0 %2465
          %v2468 = vsel %vm493, %v2462, %v2466
          %v2470 = vsel %vm587, %v2468, 0
          %2472 = vmatpush.msra.mxu0 0.0
          %2473 = vmatpush.msra.mxu0 0.0
          %2474 = vmatpush.msra.mxu0 0.0
          %2475 = vmatpush.msra.mxu0 0.0
          %2476 = vmatpush.msra.mxu0 0.0
          %2477 = vmatpush.msra.mxu0 0.0
          %2478 = vmatpush.msra.mxu0 0.0
          %2479 = vmatpush.msra.mxu0 0.0
          %2480 = vmatpush.msra.mxu0 %v585
          %2481 = vmatpush.msra.mxu0 %v583
          %2482 = vmatpush.msra.mxu0 %v581
          %2483 = vmatpush.msra.mxu0 %v579
          %2484 = vmatpush.msra.mxu0 %v577
          %2485 = vmatpush.msra.mxu0 %v575
          %2486 = vmatpush.msra.mxu0 %v573
          %2487 = vmatpush.msra.mxu0 %v571
          %2488 = vmatmul.f32.gmra.mxu0 %v2470
          %v2489 = vpop.f32.mrf.mxu0
          %v2490 = vadd.f32 0.0, %v2489
          %2491 = vdwg.mxu0
          %2492 = vmatpush.msra.mxu0 0.0
          %2493 = vmatpush.msra.mxu0 0.0
          %2494 = vmatpush.msra.mxu0 0.0
          %2495 = vmatpush.msra.mxu0 0.0
          %2496 = vmatpush.msra.mxu0 0.0
          %2497 = vmatpush.msra.mxu0 0.0
          %2498 = vmatpush.msra.mxu0 0.0
          %2499 = vmatpush.msra.mxu0 0.0
          %2500 = vmatpush.msra.mxu0 %v586
          %2501 = vmatpush.msra.mxu0 %v584
          %2502 = vmatpush.msra.mxu0 %v582
          %2503 = vmatpush.msra.mxu0 %v580
          %2504 = vmatpush.msra.mxu0 %v578
          %2505 = vmatpush.msra.mxu0 %v576
          %2506 = vmatpush.msra.mxu0 %v574
          %2507 = vmatpush.msra.mxu0 %v572
          %2508 = vmatmul.f32.gmra.mxu0 %v2470
          %v2509 = vpop.f32.mrf.mxu0
          %v2510 = vadd.f32 0.0, %v2509
          %2511 = vdwg.mxu0
          %v2512 = vld [vmem:[%s1066] sm:$0xff]
          %v2513 = vadd.f32 %v2512, %v2490
          %v2514 = vld [vmem:[%s1061 + $0x8] sm:$0xff]
          %v2515 = vadd.f32 %v2514, %v2510
          %v2516 = vxor.u32 %v2513, 2147483648
          %v2517 = vmul.f32 %v2516, 1.442695
          %v2518 = vpow.pop %v2517
          %v2519 = vadd.f32 %v2518, 1.0
          %v2520 = vrcp.pop %v2519
          %v2521 = vmul.f32 %v2519, %v2520
          %v2522 = vsub.f32 1.0, %v2521
          %v2523 = vmul.f32 %v2520, %v2522
          %v2524 = vadd.f32 %v2520, %v2523
          %vm2525 = vweird.f32 %v2519
          %vm2526 = vweird.f32 %v2520
          %vm2527 = vmor %vm2525, %vm2526
          %v2528 = vsel %vm2527, %v2520, %v2524
          %v2529 = vand.u32 2147483647, %v2519
          %vm2530 = vcmp.eq.f32.partialorder %v2529, 8.507059e+37
          %v2531 = vand.u32 %v2519, 2147483648
          %v2532 = vor.u32 1.1754944e-38, %v2531
          %v2533 = vsel %vm2530, %v2532, %v2528
          %v2534 = vmul.f32 1.0, %v2533
          %v2535 = vtanh.pop %v2513
          %v2536 = vmul.f32 %v2534, %v2416
          %2538 = vrot.lane.b32.xlu0 %v2535, 32
          %v2539 = vpop.permute.xlu0 %2538
          %v2541 = vmul.f32 %v2534, %v2539
          %2543 = vrot.lane.b32.xlu0 %v2541, 32
          %v2544 = vpop.permute.xlu0 %2543
          %v2546 = vadd.f32 %v2536, %v2544
          %v2547 = vtanh.pop %v2546
          %2549 = vrot.lane.b32.xlu0 %v2547, 32
          %v2550 = vpop.permute.xlu0 %2549
          %v2552 = vmul.f32 %v2534, %v2550
          %v2553 = vxor.u32 %v2515, 2147483648
          %v2554 = vmul.f32 %v2553, 1.442695
          %v2555 = vpow.pop %v2554
          %v2556 = vadd.f32 %v2555, 1.0
          %v2557 = vrcp.pop %v2556
          %v2558 = vmul.f32 %v2556, %v2557
          %v2559 = vsub.f32 1.0, %v2558
          %v2560 = vmul.f32 %v2557, %v2559
          %v2561 = vadd.f32 %v2557, %v2560
          %vm2562 = vweird.f32 %v2556
          %vm2563 = vweird.f32 %v2557
          %vm2564 = vmor %vm2562, %vm2563
          %v2565 = vsel %vm2564, %v2557, %v2561
          %v2566 = vand.u32 2147483647, %v2556
          %vm2567 = vcmp.eq.f32.partialorder %v2566, 8.507059e+37
          %v2568 = vand.u32 %v2556, 2147483648
          %v2569 = vor.u32 1.1754944e-38, %v2568
          %v2570 = vsel %vm2567, %v2569, %v2565
          %v2571 = vmul.f32 1.0, %v2570
          %v2572 = vtanh.pop %v2515
          %v2573 = vmul.f32 %v2571, %v2453
          %2575 = vrot.lane.b32.xlu0 %v2572, 32
          %v2576 = vpop.permute.xlu0 %2575
          %v2578 = vmul.f32 %v2571, %v2576
          %2580 = vrot.lane.b32.xlu0 %v2578, 32
          %v2581 = vpop.permute.xlu0 %2580
          %v2583 = vadd.f32 %v2573, %v2581
          %v2584 = vtanh.pop %v2583
          %2586 = vrot.lane.b32.xlu0 %v2584, 32
          %v2587 = vpop.permute.xlu0 %2586
          %v2589 = vmul.f32 %v2571, %v2587
          %2591 = vrot.lane.b32.xlu0 %v2552, 64
          %v2592 = vpop.permute.xlu0 %2591
          %2595 = vrot.lane.b32.xlu0 %v2589, 96
          %v2596 = vpop.permute.xlu0 %2595
          %v2598 = vsel %vm493, %v2592, %v2596
          %v2600 = vsel %vm587, %v2598, 0
          %2602 = vmatpush.msra.mxu0 0.0
          %2603 = vmatpush.msra.mxu0 0.0
          %2604 = vmatpush.msra.mxu0 0.0
          %2605 = vmatpush.msra.mxu0 0.0
          %2606 = vmatpush.msra.mxu0 0.0
          %2607 = vmatpush.msra.mxu0 0.0
          %2608 = vmatpush.msra.mxu0 0.0
          %2609 = vmatpush.msra.mxu0 0.0
          %2610 = vmatpush.msra.mxu0 %v585
          %2611 = vmatpush.msra.mxu0 %v583
          %2612 = vmatpush.msra.mxu0 %v581
          %2613 = vmatpush.msra.mxu0 %v579
          %2614 = vmatpush.msra.mxu0 %v577
          %2615 = vmatpush.msra.mxu0 %v575
          %2616 = vmatpush.msra.mxu0 %v573
          %2617 = vmatpush.msra.mxu0 %v571
          %2618 = vmatmul.f32.gmra.mxu0 %v2600
          %v2619 = vpop.f32.mrf.mxu0
          %v2620 = vadd.f32 0.0, %v2619
          %2621 = vdwg.mxu0
          %2622 = vmatpush.msra.mxu0 0.0
          %2623 = vmatpush.msra.mxu0 0.0
          %2624 = vmatpush.msra.mxu0 0.0
          %2625 = vmatpush.msra.mxu0 0.0
          %2626 = vmatpush.msra.mxu0 0.0
          %2627 = vmatpush.msra.mxu0 0.0
          %2628 = vmatpush.msra.mxu0 0.0
          %2629 = vmatpush.msra.mxu0 0.0
          %2630 = vmatpush.msra.mxu0 %v586
          %2631 = vmatpush.msra.mxu0 %v584
          %2632 = vmatpush.msra.mxu0 %v582
          %2633 = vmatpush.msra.mxu0 %v580
          %2634 = vmatpush.msra.mxu0 %v578
          %2635 = vmatpush.msra.mxu0 %v576
          %2636 = vmatpush.msra.mxu0 %v574
          %2637 = vmatpush.msra.mxu0 %v572
          %2638 = vmatmul.f32.gmra.mxu0 %v2600
          %v2639 = vpop.f32.mrf.mxu0
          %v2640 = vadd.f32 0.0, %v2639
          %2641 = vdwg.mxu0
          %v2642 = vld [vmem:[%s923] sm:$0xff]
          %v2643 = vadd.f32 %v2642, %v2620
          %v2644 = vld [vmem:[%s918 + $0x8] sm:$0xff]
          %v2645 = vadd.f32 %v2644, %v2640
          %v2646 = vxor.u32 %v2643, 2147483648
          %v2647 = vmul.f32 %v2646, 1.442695
          %v2648 = vpow.pop %v2647
          %v2649 = vadd.f32 %v2648, 1.0
          %v2650 = vrcp.pop %v2649
          %v2651 = vmul.f32 %v2649, %v2650
          %v2652 = vsub.f32 1.0, %v2651
          %v2653 = vmul.f32 %v2650, %v2652
          %v2654 = vadd.f32 %v2650, %v2653
          %vm2655 = vweird.f32 %v2649
          %vm2656 = vweird.f32 %v2650
          %vm2657 = vmor %vm2655, %vm2656
          %v2658 = vsel %vm2657, %v2650, %v2654
          %v2659 = vand.u32 2147483647, %v2649
          %vm2660 = vcmp.eq.f32.partialorder %v2659, 8.507059e+37
          %v2661 = vand.u32 %v2649, 2147483648
          %v2662 = vor.u32 1.1754944e-38, %v2661
          %v2663 = vsel %vm2660, %v2662, %v2658
          %v2664 = vmul.f32 1.0, %v2663
          %v2665 = vtanh.pop %v2643
          %v2666 = vmul.f32 %v2664, %v2546
          %2668 = vrot.lane.b32.xlu0 %v2665, 32
          %v2669 = vpop.permute.xlu0 %2668
          %v2671 = vmul.f32 %v2664, %v2669
          %2673 = vrot.lane.b32.xlu0 %v2671, 32
          %v2674 = vpop.permute.xlu0 %2673
          %v2676 = vadd.f32 %v2666, %v2674
          %v2677 = vtanh.pop %v2676
          %2679 = vrot.lane.b32.xlu0 %v2677, 32
          %v2680 = vpop.permute.xlu0 %2679
          %v2682 = vmul.f32 %v2664, %v2680
          %v2683 = vxor.u32 %v2645, 2147483648
          %v2684 = vmul.f32 %v2683, 1.442695
          %v2685 = vpow.pop %v2684
          %v2686 = vadd.f32 %v2685, 1.0
          %v2687 = vrcp.pop %v2686
          %v2688 = vmul.f32 %v2686, %v2687
          %v2689 = vsub.f32 1.0, %v2688
          %v2690 = vmul.f32 %v2687, %v2689
          %v2691 = vadd.f32 %v2687, %v2690
          %vm2692 = vweird.f32 %v2686
          %vm2693 = vweird.f32 %v2687
          %vm2694 = vmor %vm2692, %vm2693
          %v2695 = vsel %vm2694, %v2687, %v2691
          %v2696 = vand.u32 2147483647, %v2686
          %vm2697 = vcmp.eq.f32.partialorder %v2696, 8.507059e+37
          %v2698 = vand.u32 %v2686, 2147483648
          %v2699 = vor.u32 1.1754944e-38, %v2698
          %v2700 = vsel %vm2697, %v2699, %v2695
          %v2701 = vmul.f32 1.0, %v2700
          %v2702 = vtanh.pop %v2645
          %v2703 = vmul.f32 %v2701, %v2583
          %2705 = vrot.lane.b32.xlu0 %v2702, 32
          %v2706 = vpop.permute.xlu0 %2705
          %v2708 = vmul.f32 %v2701, %v2706
          %2710 = vrot.lane.b32.xlu0 %v2708, 32
          %v2711 = vpop.permute.xlu0 %2710
          %v2713 = vadd.f32 %v2703, %v2711
          %v2714 = vtanh.pop %v2713
          %2716 = vrot.lane.b32.xlu0 %v2714, 32
          %v2717 = vpop.permute.xlu0 %2716
          %v2719 = vmul.f32 %v2701, %v2717
          %2721 = vrot.lane.b32.xlu0 %v2682, 64
          %v2722 = vpop.permute.xlu0 %2721
          %2725 = vrot.lane.b32.xlu0 %v2719, 96
          %v2726 = vpop.permute.xlu0 %2725
          %v2728 = vsel %vm493, %v2722, %v2726
          %v2730 = vsel %vm587, %v2728, 0
          %2732 = vmatpush.msra.mxu0 0.0
          %2733 = vmatpush.msra.mxu0 0.0
          %2734 = vmatpush.msra.mxu0 0.0
          %2735 = vmatpush.msra.mxu0 0.0
          %2736 = vmatpush.msra.mxu0 0.0
          %2737 = vmatpush.msra.mxu0 0.0
          %2738 = vmatpush.msra.mxu0 0.0
          %2739 = vmatpush.msra.mxu0 0.0
          %2740 = vmatpush.msra.mxu0 %v585
          %2741 = vmatpush.msra.mxu0 %v583
          %2742 = vmatpush.msra.mxu0 %v581
          %2743 = vmatpush.msra.mxu0 %v579
          %2744 = vmatpush.msra.mxu0 %v577
          %2745 = vmatpush.msra.mxu0 %v575
          %2746 = vmatpush.msra.mxu0 %v573
          %2747 = vmatpush.msra.mxu0 %v571
          %2748 = vmatmul.f32.gmra.mxu0 %v2730
          %v2749 = vpop.f32.mrf.mxu0
          %v2750 = vadd.f32 0.0, %v2749
          %2751 = vdwg.mxu0
          %2752 = vmatpush.msra.mxu0 0.0
          %2753 = vmatpush.msra.mxu0 0.0
          %2754 = vmatpush.msra.mxu0 0.0
          %2755 = vmatpush.msra.mxu0 0.0
          %2756 = vmatpush.msra.mxu0 0.0
          %2757 = vmatpush.msra.mxu0 0.0
          %2758 = vmatpush.msra.mxu0 0.0
          %2759 = vmatpush.msra.mxu0 0.0
          %2760 = vmatpush.msra.mxu0 %v586
          %2761 = vmatpush.msra.mxu0 %v584
          %2762 = vmatpush.msra.mxu0 %v582
          %2763 = vmatpush.msra.mxu0 %v580
          %2764 = vmatpush.msra.mxu0 %v578
          %2765 = vmatpush.msra.mxu0 %v576
          %2766 = vmatpush.msra.mxu0 %v574
          %2767 = vmatpush.msra.mxu0 %v572
          %2768 = vmatmul.f32.gmra.mxu0 %v2730
          %v2769 = vpop.f32.mrf.mxu0
          %v2770 = vadd.f32 0.0, %v2769
          %2771 = vdwg.mxu0
          %v2772 = vld [vmem:[%s780] sm:$0xff]
          %v2773 = vadd.f32 %v2772, %v2750
          %v2774 = vld [vmem:[%s775 + $0x8] sm:$0xff]
          %v2775 = vadd.f32 %v2774, %v2770
          %v2776 = vxor.u32 %v2773, 2147483648
          %v2777 = vmul.f32 %v2776, 1.442695
          %v2778 = vpow.pop %v2777
          %v2779 = vadd.f32 %v2778, 1.0
          %v2780 = vrcp.pop %v2779
          %v2781 = vmul.f32 %v2779, %v2780
          %v2782 = vsub.f32 1.0, %v2781
          %v2783 = vmul.f32 %v2780, %v2782
          %v2784 = vadd.f32 %v2780, %v2783
          %vm2785 = vweird.f32 %v2779
          %vm2786 = vweird.f32 %v2780
          %vm2787 = vmor %vm2785, %vm2786
          %v2788 = vsel %vm2787, %v2780, %v2784
          %v2789 = vand.u32 2147483647, %v2779
          %vm2790 = vcmp.eq.f32.partialorder %v2789, 8.507059e+37
          %v2791 = vand.u32 %v2779, 2147483648
          %v2792 = vor.u32 1.1754944e-38, %v2791
          %v2793 = vsel %vm2790, %v2792, %v2788
          %v2794 = vmul.f32 1.0, %v2793
          %v2795 = vtanh.pop %v2773
          %v2796 = vmul.f32 %v2794, %v2676
          %2798 = vrot.lane.b32.xlu0 %v2795, 32
          %v2799 = vpop.permute.xlu0 %2798
          %v2801 = vmul.f32 %v2794, %v2799
          %2803 = vrot.lane.b32.xlu0 %v2801, 32
          %v2804 = vpop.permute.xlu0 %2803
          %v2806 = vadd.f32 %v2796, %v2804
          %v2807 = vtanh.pop %v2806
          %2809 = vrot.lane.b32.xlu0 %v2807, 32
          %v2810 = vpop.permute.xlu0 %2809
          %v2812 = vmul.f32 %v2794, %v2810
          %v2813 = vxor.u32 %v2775, 2147483648
          %v2814 = vmul.f32 %v2813, 1.442695
          %v2815 = vpow.pop %v2814
          %v2816 = vadd.f32 %v2815, 1.0
          %v2817 = vrcp.pop %v2816
          %v2818 = vmul.f32 %v2816, %v2817
          %v2819 = vsub.f32 1.0, %v2818
          %v2820 = vmul.f32 %v2817, %v2819
          %v2821 = vadd.f32 %v2817, %v2820
          %vm2822 = vweird.f32 %v2816
          %vm2823 = vweird.f32 %v2817
          %vm2824 = vmor %vm2822, %vm2823
          %v2825 = vsel %vm2824, %v2817, %v2821
          %v2826 = vand.u32 2147483647, %v2816
          %vm2827 = vcmp.eq.f32.partialorder %v2826, 8.507059e+37
          %v2828 = vand.u32 %v2816, 2147483648
          %v2829 = vor.u32 1.1754944e-38, %v2828
          %v2830 = vsel %vm2827, %v2829, %v2825
          %v2831 = vmul.f32 1.0, %v2830
          %v2832 = vtanh.pop %v2775
          %v2833 = vmul.f32 %v2831, %v2713
          %2835 = vrot.lane.b32.xlu0 %v2832, 32
          %v2836 = vpop.permute.xlu0 %2835
          %v2838 = vmul.f32 %v2831, %v2836
          %2840 = vrot.lane.b32.xlu0 %v2838, 32
          %v2841 = vpop.permute.xlu0 %2840
          %v2843 = vadd.f32 %v2833, %v2841
          %v2844 = vtanh.pop %v2843
          %2846 = vrot.lane.b32.xlu0 %v2844, 32
          %v2847 = vpop.permute.xlu0 %2846
          %v2849 = vmul.f32 %v2831, %v2847
          %2851 = vrot.lane.b32.xlu0 %v2812, 64
          %v2852 = vpop.permute.xlu0 %2851
          %2855 = vrot.lane.b32.xlu0 %v2849, 96
          %v2856 = vpop.permute.xlu0 %2855
          %v2858 = vsel %vm493, %v2852, %v2856
          %v2860 = vsel %vm587, %v2858, 0
          %2862 = vmatpush.msra.mxu0 0.0
          %2863 = vmatpush.msra.mxu0 0.0
          %2864 = vmatpush.msra.mxu0 0.0
          %2865 = vmatpush.msra.mxu0 0.0
          %2866 = vmatpush.msra.mxu0 0.0
          %2867 = vmatpush.msra.mxu0 0.0
          %2868 = vmatpush.msra.mxu0 0.0
          %2869 = vmatpush.msra.mxu0 0.0
          %2870 = vmatpush.msra.mxu0 %v585
          %2871 = vmatpush.msra.mxu0 %v583
          %2872 = vmatpush.msra.mxu0 %v581
          %2873 = vmatpush.msra.mxu0 %v579
          %2874 = vmatpush.msra.mxu0 %v577
          %2875 = vmatpush.msra.mxu0 %v575
          %2876 = vmatpush.msra.mxu0 %v573
          %2877 = vmatpush.msra.mxu0 %v571
          %2878 = vmatmul.f32.gmra.mxu0 %v2860
          %v2879 = vpop.f32.mrf.mxu0
          %v2880 = vadd.f32 0.0, %v2879
          %2881 = vdwg.mxu0
          %2882 = vmatpush.msra.mxu0 0.0
          %2883 = vmatpush.msra.mxu0 0.0
          %2884 = vmatpush.msra.mxu0 0.0
          %2885 = vmatpush.msra.mxu0 0.0
          %2886 = vmatpush.msra.mxu0 0.0
          %2887 = vmatpush.msra.mxu0 0.0
          %2888 = vmatpush.msra.mxu0 0.0
          %2889 = vmatpush.msra.mxu0 0.0
          %2890 = vmatpush.msra.mxu0 %v586
          %2891 = vmatpush.msra.mxu0 %v584
          %2892 = vmatpush.msra.mxu0 %v582
          %2893 = vmatpush.msra.mxu0 %v580
          %2894 = vmatpush.msra.mxu0 %v578
          %2895 = vmatpush.msra.mxu0 %v576
          %2896 = vmatpush.msra.mxu0 %v574
          %2897 = vmatpush.msra.mxu0 %v572
          %2898 = vmatmul.f32.gmra.mxu0 %v2860
          %v2899 = vpop.f32.mrf.mxu0
          %v2900 = vadd.f32 0.0, %v2899
          %2901 = vdwg.mxu0
          %v2902 = vld [vmem:[%s638] sm:$0xff]
          %v2903 = vadd.f32 %v2902, %v2880
          %v2904 = vld [vmem:[%s633 + $0x8] sm:$0xff]
          %v2905 = vadd.f32 %v2904, %v2900
          %v2906 = vxor.u32 %v2903, 2147483648
          %v2907 = vmul.f32 %v2906, 1.442695
          %v2908 = vpow.pop %v2907
          %v2909 = vadd.f32 %v2908, 1.0
          %v2910 = vrcp.pop %v2909
          %v2911 = vmul.f32 %v2909, %v2910
          %v2912 = vsub.f32 1.0, %v2911
          %v2913 = vmul.f32 %v2910, %v2912
          %v2914 = vadd.f32 %v2910, %v2913
          %vm2915 = vweird.f32 %v2909
          %vm2916 = vweird.f32 %v2910
          %vm2917 = vmor %vm2915, %vm2916
          %v2918 = vsel %vm2917, %v2910, %v2914
          %v2919 = vand.u32 2147483647, %v2909
          %vm2920 = vcmp.eq.f32.partialorder %v2919, 8.507059e+37
          %v2921 = vand.u32 %v2909, 2147483648
          %v2922 = vor.u32 1.1754944e-38, %v2921
          %v2923 = vsel %vm2920, %v2922, %v2918
          %v2924 = vmul.f32 1.0, %v2923
          %v2925 = vtanh.pop %v2903
          %v2926 = vmul.f32 %v2924, %v2806
          %2928 = vrot.lane.b32.xlu0 %v2925, 32
          %v2929 = vpop.permute.xlu0 %2928
          %v2931 = vmul.f32 %v2924, %v2929
          %2933 = vrot.lane.b32.xlu0 %v2931, 32
          %v2934 = vpop.permute.xlu0 %2933
          %v2936 = vadd.f32 %v2926, %v2934
          %v2937 = vtanh.pop %v2936
          %2939 = vrot.lane.b32.xlu0 %v2937, 32
          %v2940 = vpop.permute.xlu0 %2939
          %v2942 = vmul.f32 %v2924, %v2940
          %v2943 = vxor.u32 %v2905, 2147483648
          %v2944 = vmul.f32 %v2943, 1.442695
          %v2945 = vpow.pop %v2944
          %v2946 = vadd.f32 %v2945, 1.0
          %v2947 = vrcp.pop %v2946
          %v2948 = vmul.f32 %v2946, %v2947
          %v2949 = vsub.f32 1.0, %v2948
          %v2950 = vmul.f32 %v2947, %v2949
          %v2951 = vadd.f32 %v2947, %v2950
          %vm2952 = vweird.f32 %v2946
          %vm2953 = vweird.f32 %v2947
          %vm2954 = vmor %vm2952, %vm2953
          %v2955 = vsel %vm2954, %v2947, %v2951
          %v2956 = vand.u32 2147483647, %v2946
          %vm2957 = vcmp.eq.f32.partialorder %v2956, 8.507059e+37
          %v2958 = vand.u32 %v2946, 2147483648
          %v2959 = vor.u32 1.1754944e-38, %v2958
          %v2960 = vsel %vm2957, %v2959, %v2955
          %v2961 = vmul.f32 1.0, %v2960
          %v2962 = vtanh.pop %v2905
          %v2963 = vmul.f32 %v2961, %v2843
          %2965 = vrot.lane.b32.xlu0 %v2962, 32
          %v2966 = vpop.permute.xlu0 %2965
          %v2968 = vmul.f32 %v2961, %v2966
          %2970 = vrot.lane.b32.xlu0 %v2968, 32
          %v2971 = vpop.permute.xlu0 %2970
          %v2973 = vadd.f32 %v2963, %v2971
          %v2974 = vtanh.pop %v2973
          %2976 = vrot.lane.b32.xlu0 %v2974, 32
          %v2977 = vpop.permute.xlu0 %2976
          %v2979 = vmul.f32 %v2961, %v2977
          %2981 = vrot.lane.b32.xlu0 %v2942, 64
          %v2982 = vpop.permute.xlu0 %2981
          %2985 = vrot.lane.b32.xlu0 %v2979, 96
          %v2986 = vpop.permute.xlu0 %2985
          %v2988 = vsel %vm493, %v2982, %v2986
          %v2989 = vld [vmem:[%s8] sm:$0xff]
          %v2990 = vld [vmem:[%s8 + $0x8] sm:$0xff]
          %v2991 = vld [vmem:[%s8 + $0x10] sm:$0xff]
          %v2992 = vld [vmem:[%s8 + $0x18] sm:$0xff]
          %v2993 = vld [vmem:[%s9] sm:$0xff]
          %v2994 = vld [vmem:[%s9 + $0x8] sm:$0xff]
          %v2995 = vld [vmem:[%s9 + $0x10] sm:$0xff]
          %v2996 = vld [vmem:[%s9 + $0x18] sm:$0xff]
          %2998 = vrot.lane.b32.xlu0 %v2988, 96
          %v2999 = vpop.permute.xlu0 %2998
          %v3000 = vsel %vm493, %v2999, 0
          %3002 = vmatpush.msra.mxu0 0.0
          %3003 = vmatpush.msra.mxu0 0.0
          %3004 = vmatpush.msra.mxu0 0.0
          %3005 = vmatpush.msra.mxu0 0.0
          %3006 = vmatpush.msra.mxu0 0.0
          %3007 = vmatpush.msra.mxu0 0.0
          %3008 = vmatpush.msra.mxu0 0.0
          %3009 = vmatpush.msra.mxu0 0.0
          %3010 = vmatpush.msra.mxu0 0.0
          %3011 = vmatpush.msra.mxu0 0.0
          %3012 = vmatpush.msra.mxu0 0.0
          %3013 = vmatpush.msra.mxu0 0.0
          %3014 = vmatpush.msra.mxu0 %v2996
          %3015 = vmatpush.msra.mxu0 %v2995
          %3016 = vmatpush.msra.mxu0 %v2994
          %3017 = vmatpush.msra.mxu0 %v2993
          %3018 = vmatmul.f32.gmra.mxu0 %v3000
          %v3019 = vpop.f32.mrf.mxu0
          %v3020 = vadd.f32 0.0, %v3019
          %3021 = vdwg.mxu0
          %v3022 = vsel %vm493, %v2988, 0
          %3024 = vmatpush.msra.mxu0 0.0
          %3025 = vmatpush.msra.mxu0 0.0
          %3026 = vmatpush.msra.mxu0 0.0
          %3027 = vmatpush.msra.mxu0 0.0
          %3028 = vmatpush.msra.mxu0 0.0
          %3029 = vmatpush.msra.mxu0 0.0
          %3030 = vmatpush.msra.mxu0 0.0
          %3031 = vmatpush.msra.mxu0 0.0
          %3032 = vmatpush.msra.mxu0 0.0
          %3033 = vmatpush.msra.mxu0 0.0
          %3034 = vmatpush.msra.mxu0 0.0
          %3035 = vmatpush.msra.mxu0 0.0
          %3036 = vmatpush.msra.mxu0 %v2992
          %3037 = vmatpush.msra.mxu0 %v2991
          %3038 = vmatpush.msra.mxu0 %v2990
          %3039 = vmatpush.msra.mxu0 %v2989
          %3040 = vmatmul.f32.gmra.mxu0 %v3022
          %v3041 = vpop.f32.mrf.mxu0
          %v3042 = vadd.f32 %v3020, %v3041
          %3043 = vdwg.mxu0
          %v3044 = vld [vmem:[%s10] sm:$0x1]
          %v3046 = vperm.slane %v3044, 0
          %v3048 = vadd.f32 %v3042, %v3046
          %vm3049 = vcmask 15360
          %3050 = vst.msk [vmem:[%s446] sm:$0xff] %vm3049, %v3048
        $region76: #{tpu_custom_call.1} parent=63 // pred_fallthru
          _
        %p3051 = scmp.lt.s32.totalorder %s28, 0
        %s3052 = scalar_select %p3051, %s28, 0
        %s3053 = smul.addr %s3052, 8
        %s3054 = scalar_lea.vmem %s11, %s3053
        // Predicated region
        $region77: #{tpu_custom_call.1} parent=63 // pred_check
          %p3055 = pneg %p292
        $region78: #{tpu_custom_call.1} parent=63 // pred_check_branch
          %3057 = sbr.rel (%p3055) target = $region80
        $region79: #{tpu_custom_call.1} parent=63 // pred_region
          _
        $region80: #{tpu_custom_call.1} parent=63 // pred_fallthru
          _
        // Predicated region
        $region81: #{tpu_custom_call.1} parent=63 // pred_check
          %p3058 = pneg %p292
        $region82: #{tpu_custom_call.1} parent=63 // pred_check_branch
          %3060 = sbr.rel (%p3058) target = $region84
        $region83: #{tpu_custom_call.1} parent=63 // pred_region
          %p3061 = scmp.lt.s32.totalorder %s28, 0
          %s3062 = scalar_select %p3061, %s28, 0
          %s3063 = smul.addr %s3062, 8
          %s3064 = scalar_lea.vmem %s11, %s3063
        $region84: #{tpu_custom_call.1} parent=63 // pred_fallthru
          _
      $region64: #{tpu_custom_call.1} parent=5 // pred_fallthru
        _
      %p3065 = scmp.le.s32.totalorder 2, %s19
      // Predicated region
      $region85: #{tpu_custom_call.1} parent=5 // pred_check
        %p3066 = pneg %p3065
      $region86: #{tpu_custom_call.1} parent=5 // pred_check_branch
        %3068 = sbr.rel (%p3066) target = $region88
      $region87: #{tpu_custom_call.1} parent=5 // pred_region
        %s3069 = ssub.s32 %s19, 2
      $region88: #{tpu_custom_call.1} parent=5 // pred_fallthru
        _
    $region6: #{tpu_custom_call.1} parent=1 // loop_footer
      %s23 = sadd.s32 1, %s19
    $region7: #{tpu_custom_call.1} parent=1 // loop_footer_branch
      %18 = sbr.rel target = $region3
    $region8: #{tpu_custom_call.1} parent=1 // loop_exit
      _
    %3070 = vsyncpa [#allocation6], 1
    %s3071 = scalar_lea.sflag [#allocation6], 1
    %3072 = vsyncpa %s3071, 1
    %3073 = vsyncpa [#allocation8], 1

</llo_original>
